<compile_context>
chip_gen: v6e
topology: v6e:2x2x1
jax: 0.10.0
libtpu: 0.0.40
codegen_flags: <defaults>
</compile_context>

<pallas_src>
import math

import jax
import jax.numpy as jnp
from jax import lax
from jax.experimental import pallas as pl
from jax.experimental.pallas import tpu as pltpu

H = 256            # hidden width
XDIM = 2           # x feature dim
ZIN = 3            # func_Z input dim (x0, x1, y)
XZDIM = XDIM + H   # 258 = fc_M_1 / fc_K_1 input width in the PyTorch module

_VMEM = pl.BlockSpec(memory_space=pltpu.MemorySpace.VMEM)
_SMEM = pl.BlockSpec(memory_space=pltpu.MemorySpace.SMEM)


# --------------------------------------------------------------------------
# Single fused kernel: func_Z (+mean), func_B, func_M, func_K on all rows and
# both pairwise kernel matrices, written to one packed output slab.
# --------------------------------------------------------------------------
def _fused_kernel(s_ref, q_ref, xst_ref, wz1_ref, w1x_ref, wbig_ref,
                  bias_ref, scal_ref, out_ref):
    f32 = jnp.float32
    s = s_ref[...]                       # (N, 3) = [x0, x1, y]
    q = q_ref[...]                       # (Q, 2)
    xst = xst_ref[...]                   # (2, N) support x, transposed (host prep)
    N = s.shape[0]
    NQ = N + q.shape[0]

    bias = bias_ref[...]                 # (2, 768)
    b_z1 = bias[0:1, 0:H]
    b_z2 = bias[0:1, H:2 * H]
    b_k2 = bias[0:1, 2 * H:3 * H]
    b_zcat = bias[1:2, :]                # (1, 768) = [b_B1 | b_M1 | b_K1]

    # ---- func_Z, with the support mean folded before the second matmul ----
    # TODO(synk): nn.Dropout(0.1) is identity in eval mode; not implemented.
    hz = jnp.maximum(
        jnp.dot(s, wz1_ref[...], preferred_element_type=f32) + b_z1, 0.0)
    hz_mean = jnp.mean(hz, axis=0, keepdims=True)                       # (1, 256)
    z = jnp.dot(hz_mean, wbig_ref[:, 0:H],
                preferred_element_type=f32) + b_z2                      # (1, 256)

    # ---- one fused Z-side matmul: [func_B layer1 | func_M z-bias | func_K z-bias]
    zcat = jnp.dot(z, wbig_ref[:, H:4 * H],
                   preferred_element_type=f32) + b_zcat                 # (1, 768)
    hb = jnp.maximum(zcat[:, 0:H], 0.0)                                 # (1, 256)
    mk_bias = zcat[:, H:3 * H]                                          # (1, 512) pre-relu

    # ---- support + query rows batched through the fused M|K first layer ----
    xall = jnp.concatenate([s[:, 0:XDIM], q], axis=0)                   # (NQ, 2)
    h_mk = jnp.maximum(
        jnp.dot(xall, w1x_ref[...], preferred_element_type=f32) + mk_bias, 0.0)
    hm = h_mk[:, 0:H]                                                   # (NQ, 256)
    hk = h_mk[:, H:2 * H]                                               # (NQ, 256)

    # ---- second layers: B|M scalar heads share one (256,2) weight push ----
    stacked = jnp.concatenate([hb, hm], axis=0)                         # (1+NQ, 256)
    small = jnp.dot(stacked, wbig_ref[:, 5 * H:5 * H + 2],
                    preferred_element_type=f32)                         # (1+NQ, 2)
    b_scalar = small[0:1, 0:1] + scal_ref[0]                            # (1,1) func_B(Z)
    m_all = small[1:, 1:2] + scal_ref[1]                                # (NQ,1) func_M

    k_all = jnp.dot(hk, wbig_ref[:, 4 * H:5 * H],
                    preferred_element_type=f32) + b_k2                  # (NQ, 256)

    # ---- pairwise distances via one Gram matmul against the support features ----
    nt = (((1,), (1,)), ((), ()))        # contract last dims: A @ B^T, no transpose
    gram = lax.dot_general(k_all, k_all[0:N, :], nt,
                           preferred_element_type=f32)                  # (NQ, N)

    row_i = lax.broadcasted_iota(jnp.int32, (NQ, N), 0)
    col_i = lax.broadcasted_iota(jnp.int32, (NQ, N), 1)
    eye = jnp.where(row_i == col_i, 1.0, 0.0)                           # support diag mask
    sq_row = jnp.sum(gram * eye, axis=0, keepdims=True)                 # (1, N) ||k_s||^2
    sq_col_sup = jnp.sum(gram * eye, axis=1, keepdims=True)             # (NQ,1), 0 on query rows
    sq_col_vpu = jnp.sum(k_all * k_all, axis=1, keepdims=True)          # (NQ,1)
    is_sup = lax.broadcasted_iota(jnp.int32, (NQ, 1), 0) < N
    sq_col = jnp.where(is_sup, sq_col_sup, sq_col_vpu)

    d2 = jnp.maximum(sq_col + sq_row - 2.0 * gram, 0.0)                 # (NQ, N)

    # ---- exact x-equality delta; exact-zero distance on matches (incl. diagonal)
    delta = jnp.where(
        jnp.logical_and(xall[:, 0:1] == xst[0:1, :], xall[:, 1:2] == xst[1:2, :]),
        1.0, 0.0)                                                       # (NQ, N)
    d2 = jnp.where(delta > 0.5, 0.0, d2)
    kern = jnp.exp(-jnp.sqrt(d2)) + b_scalar * delta                    # (NQ, N)

    # ---- one packed output slab: [self_k; mix_k | resid; m_q] ----
    out_ref[:, 0:N] = kern
    out_ref[0:N, N:N + 1] = s[:, XDIM:XDIM + 1] - m_all[0:N]            # support_y - m_s
    out_ref[N:, N:N + 1] = m_all[N:]                                    # query means


# --------------------------------------------------------------------------
# Full forward pass (equivalent to meta_learning.forward in eval mode)
# --------------------------------------------------------------------------
def meta_learning_forward(support_set, query_set, packed):
    N = support_set.shape[0]
    Q = query_set.shape[0]

    # Tiny per-call prep: transposed support-x so the kernel needs no transposes.
    xst = jnp.transpose(support_set[:, :XDIM])                          # (2, N)

    out = pl.pallas_call(
        _fused_kernel,
        out_shape=jax.ShapeDtypeStruct((N + Q, N + 1), jnp.float32),
        in_specs=[_VMEM] * 7 + [_SMEM],
        out_specs=_VMEM,
    )(support_set, query_set, xst,
      packed["wz1"], packed["w1x"], packed["wbig"], packed["bias"], packed["scal"])

    self_k = out[:N, :N]
    mix_k = out[N:, :N]
    resid = out[:N, N]
    m_q = out[N:, N]

    # TODO(synk): torch.linalg.pinv (SVD) has no Pallas equivalent; plain JAX.
    # (Per review, this tiny host-side SVD dominates end-to-end latency; kept
    #  for exact parity with the reference's pseudo-inverse behaviour.)
    y = m_q + mix_k @ (jnp.linalg.pinv(self_k) @ resid)                 # (Q,)
    return y


# --------------------------------------------------------------------------
# One-time parameter packing (done outside the jitted forward call)
# --------------------------------------------------------------------------
def pack_params(p):
    wm1x, wm1z = p["W_M1"][:XDIM], p["W_M1"][XDIM:]
    wk1x, wk1z = p["W_K1"][:XDIM], p["W_K1"][XDIM:]
    # (256, 1282): [W_Z2 | W_B1 | W_M1z | W_K1z | W_K2 | W_B2 | W_M2]
    wbig = jnp.concatenate(
        [p["W_Z2"], p["W_B1"], wm1z, wk1z, p["W_K2"], p["W_B2"], p["W_M2"]], axis=1)
    # (2, 768): row0 = [b_Z1 | b_Z2 | b_K2], row1 = [b_B1 | b_M1 | b_K1]
    bias = jnp.concatenate(
        [jnp.concatenate([p["b_Z1"], p["b_Z2"], p["b_K2"]], axis=1),
         jnp.concatenate([p["b_B1"], p["b_M1"], p["b_K1"]], axis=1)], axis=0)
    return {
        "wz1": p["W_Z1"],                                                # (3, 256)
        "w1x": jnp.concatenate([wm1x, wk1x], axis=1),                    # (2, 512)
        "wbig": wbig,                                                    # (256, 1282)
        "bias": bias,                                                    # (2, 768)
        "scal": jnp.concatenate(                                         # (2,) SMEM scalars
            [p["b_B2"].reshape(-1), p["b_M2"].reshape(-1)]),
    }


# --------------------------------------------------------------------------
# Deterministic parameter init (mirrors nn.Linear default U(-1/sqrt(in), 1/sqrt(in)))
# --------------------------------------------------------------------------
def _init_linear(key, fan_in, fan_out):
    kw, kb = jax.random.split(key)
    bound = 1.0 / math.sqrt(fan_in)
    w = jax.random.uniform(kw, (fan_in, fan_out), jnp.float32, -bound, bound)
    b = jax.random.uniform(kb, (1, fan_out), jnp.float32, -bound, bound)
    return w, b


def init_params(key):
    ks = jax.random.split(key, 8)
    p = {}
    p["W_Z1"], p["b_Z1"] = _init_linear(ks[0], ZIN, H)
    p["W_Z2"], p["b_Z2"] = _init_linear(ks[1], H, H)
    p["W_B1"], p["b_B1"] = _init_linear(ks[2], H, H)
    p["W_B2"], p["b_B2"] = _init_linear(ks[3], H, 1)
    p["W_M1"], p["b_M1"] = _init_linear(ks[4], XZDIM, H)
    p["W_M2"], p["b_M2"] = _init_linear(ks[5], H, 1)
    p["W_K1"], p["b_K1"] = _init_linear(ks[6], XZDIM, H)
    p["W_K2"], p["b_K2"] = _init_linear(ks[7], H, H)
    return p


if __name__ == "__main__":
    key = jax.random.PRNGKey(0)
    k_params, k_sup, k_qry = jax.random.split(key, 3)

    params = init_params(k_params)
    packed = pack_params(params)                      # one-time packing, not per call
    support_set = jax.random.normal(k_sup, (8, 3), jnp.float32)   # (N, 3)
    query_set = jax.random.normal(k_qry, (4, 2), jnp.float32)     # (Q, 2)

    fwd = jax.jit(meta_learning_forward)
    y = jax.block_until_ready(fwd(support_set, query_set, packed))
    assert y.shape == (4,) and bool(jnp.all(jnp.isfinite(y)))
    print("KERNEL_OK")
</pallas_src>

<mosaic_0001>
module attributes {stable_mosaic.version = 11 : i64} {
  func.func @_fused_kernel(%arg0: memref<8x3xf32, #tpu.memory_space<vmem>>, %arg1: memref<4x2xf32, #tpu.memory_space<vmem>>, %arg2: memref<2x8xf32, #tpu.memory_space<vmem>>, %arg3: memref<3x256xf32, #tpu.memory_space<vmem>>, %arg4: memref<2x512xf32, #tpu.memory_space<vmem>>, %arg5: memref<256x1282xf32, #tpu.memory_space<vmem>>, %arg6: memref<2x768xf32, #tpu.memory_space<vmem>>, %arg7: memref<2xf32, #tpu.memory_space<smem>>, %arg8: memref<12x9xf32, #tpu.memory_space<vmem>>) attributes {dimension_semantics = [], scalar_prefetch = 0 : i64, scratch_operands = 0 : i64, tpu.core_type = #tpu.core_type<tc>} {
    %c0 = arith.constant 0 : index
    %c0_0 = arith.constant 0 : index
    %0 = vector.load %arg0[%c0, %c0_0] : memref<8x3xf32, #tpu.memory_space<vmem>>, vector<8x3xf32>
    %c0_1 = arith.constant 0 : index
    %c0_2 = arith.constant 0 : index
    %1 = vector.load %arg1[%c0_1, %c0_2] : memref<4x2xf32, #tpu.memory_space<vmem>>, vector<4x2xf32>
    %c0_3 = arith.constant 0 : index
    %c0_4 = arith.constant 0 : index
    %2 = vector.load %arg2[%c0_3, %c0_4] : memref<2x8xf32, #tpu.memory_space<vmem>>, vector<2x8xf32>
    %c0_5 = arith.constant 0 : index
    %c0_6 = arith.constant 0 : index
    %3 = vector.load %arg6[%c0_5, %c0_6] : memref<2x768xf32, #tpu.memory_space<vmem>>, vector<2x768xf32>
    %4 = vector.extract_strided_slice %3 {offsets = [0, 0], sizes = [1, 256], strides = [1, 1]} : vector<2x768xf32> to vector<1x256xf32>
    %5 = vector.extract_strided_slice %3 {offsets = [0, 256], sizes = [1, 256], strides = [1, 1]} : vector<2x768xf32> to vector<1x256xf32>
    %6 = vector.extract_strided_slice %3 {offsets = [0, 512], sizes = [1, 256], strides = [1, 1]} : vector<2x768xf32> to vector<1x256xf32>
    %7 = vector.extract_strided_slice %3 {offsets = [1, 0], sizes = [1, 768], strides = [1, 1]} : vector<2x768xf32> to vector<1x768xf32>
    %c0_7 = arith.constant 0 : index
    %c0_8 = arith.constant 0 : index
    %8 = vector.load %arg3[%c0_7, %c0_8] : memref<3x256xf32, #tpu.memory_space<vmem>>, vector<3x256xf32>
    %cst = arith.constant dense<0.000000e+00> : vector<8x256xf32>
    %9 = tpu.matmul %0, %8, %cst {dimension_numbers = #tpu.dot_dimension_numbers<[1], [0], [0], [1], [0, 0, 1, 1], [], []>} : vector<8x3xf32>, vector<3x256xf32>, vector<8x256xf32> -> vector<8x256xf32>
    %10 = vector.broadcast %4 : vector<1x256xf32> to vector<8x256xf32>
    %11 = arith.addf %9, %10 : vector<8x256xf32>
    %cst_9 = arith.constant 0.000000e+00 : f32
    %12 = vector.broadcast %cst_9 : f32 to vector<8x256xf32>
    %13 = arith.maximumf %11, %12 : vector<8x256xf32>
    %cst_10 = arith.constant dense<0.000000e+00> : vector<256xf32>
    %14 = vector.multi_reduction <add>, %13, %cst_10 [0] : vector<8x256xf32> to vector<256xf32>
    %15 = vector.shape_cast %14 : vector<256xf32> to vector<1x256xf32>
    %cst_11 = arith.constant 8.000000e+00 : f32
    %16 = vector.broadcast %cst_11 : f32 to vector<1x256xf32>
    %17 = arith.divf %15, %16 : vector<1x256xf32>
    %c0_12 = arith.constant 0 : index
    %c0_13 = arith.constant 0 : index
    %18 = vector.load %arg5[%c0_12, %c0_13] : memref<256x1282xf32, #tpu.memory_space<vmem>>, vector<256x256xf32>
    %cst_14 = arith.constant dense<0.000000e+00> : vector<1x256xf32>
    %19 = tpu.matmul %17, %18, %cst_14 {dimension_numbers = #tpu.dot_dimension_numbers<[1], [0], [0], [1], [0, 0, 1, 1], [], []>} : vector<1x256xf32>, vector<256x256xf32>, vector<1x256xf32> -> vector<1x256xf32>
    %20 = arith.addf %19, %5 : vector<1x256xf32>
    %c0_15 = arith.constant 0 : index
    %c256 = arith.constant 256 : index
    %21 = vector.load %arg5[%c0_15, %c256] : memref<256x1282xf32, #tpu.memory_space<vmem>>, vector<256x768xf32>
    %cst_16 = arith.constant dense<0.000000e+00> : vector<1x768xf32>
    %22 = tpu.matmul %20, %21, %cst_16 {dimension_numbers = #tpu.dot_dimension_numbers<[1], [0], [0], [1], [0, 0, 1, 1], [], []>} : vector<1x256xf32>, vector<256x768xf32>, vector<1x768xf32> -> vector<1x768xf32>
    %23 = arith.addf %22, %7 : vector<1x768xf32>
    %24 = vector.extract_strided_slice %23 {offsets = [0, 0], sizes = [1, 256], strides = [1, 1]} : vector<1x768xf32> to vector<1x256xf32>
    %cst_17 = arith.constant 0.000000e+00 : f32
    %25 = vector.broadcast %cst_17 : f32 to vector<1x256xf32>
    %26 = arith.maximumf %24, %25 : vector<1x256xf32>
    %27 = vector.extract_strided_slice %23 {offsets = [0, 256], sizes = [1, 512], strides = [1, 1]} : vector<1x768xf32> to vector<1x512xf32>
    %28 = vector.extract_strided_slice %0 {offsets = [0, 0], sizes = [8, 2], strides = [1, 1]} : vector<8x3xf32> to vector<8x2xf32>
    %29 = tpu.concatenate %28, %1 in 0 : vector<8x2xf32>, vector<4x2xf32> -> vector<12x2xf32>
    %c0_18 = arith.constant 0 : index
    %c0_19 = arith.constant 0 : index
    %30 = vector.load %arg4[%c0_18, %c0_19] : memref<2x512xf32, #tpu.memory_space<vmem>>, vector<2x512xf32>
    %cst_20 = arith.constant dense<0.000000e+00> : vector<12x512xf32>
    %31 = tpu.matmul %29, %30, %cst_20 {dimension_numbers = #tpu.dot_dimension_numbers<[1], [0], [0], [1], [0, 0, 1, 1], [], []>} : vector<12x2xf32>, vector<2x512xf32>, vector<12x512xf32> -> vector<12x512xf32>
    %32 = vector.broadcast %27 : vector<1x512xf32> to vector<12x512xf32>
    %33 = arith.addf %31, %32 : vector<12x512xf32>
    %cst_21 = arith.constant 0.000000e+00 : f32
    %34 = vector.broadcast %cst_21 : f32 to vector<12x512xf32>
    %35 = arith.maximumf %33, %34 : vector<12x512xf32>
    %36 = vector.extract_strided_slice %35 {offsets = [0, 0], sizes = [12, 256], strides = [1, 1]} : vector<12x512xf32> to vector<12x256xf32>
    %37 = vector.extract_strided_slice %35 {offsets = [0, 256], sizes = [12, 256], strides = [1, 1]} : vector<12x512xf32> to vector<12x256xf32>
    %38 = tpu.concatenate %26, %36 in 0 : vector<1x256xf32>, vector<12x256xf32> -> vector<13x256xf32>
    %c0_22 = arith.constant 0 : index
    %c1280 = arith.constant 1280 : index
    %39 = vector.load %arg5[%c0_22, %c1280] : memref<256x1282xf32, #tpu.memory_space<vmem>>, vector<256x2xf32>
    %cst_23 = arith.constant dense<0.000000e+00> : vector<13x2xf32>
    %40 = tpu.matmul %38, %39, %cst_23 {dimension_numbers = #tpu.dot_dimension_numbers<[1], [0], [0], [1], [0, 0, 1, 1], [], []>} : vector<13x256xf32>, vector<256x2xf32>, vector<13x2xf32> -> vector<13x2xf32>
    %41 = vector.extract_strided_slice %40 {offsets = [0, 0], sizes = [1, 1], strides = [1, 1]} : vector<13x2xf32> to vector<1x1xf32>
    %c0_24 = arith.constant 0 : index
    %42 = memref.load %arg7[%c0_24] : memref<2xf32, #tpu.memory_space<smem>>
    %43 = vector.broadcast %42 : f32 to vector<1x1xf32>
    %44 = arith.addf %41, %43 : vector<1x1xf32>
    %45 = vector.extract_strided_slice %40 {offsets = [1, 1], sizes = [12, 1], strides = [1, 1]} : vector<13x2xf32> to vector<12x1xf32>
    %c1 = arith.constant 1 : index
    %46 = memref.load %arg7[%c1] : memref<2xf32, #tpu.memory_space<smem>>
    %47 = vector.broadcast %46 : f32 to vector<12x1xf32>
    %48 = arith.addf %45, %47 : vector<12x1xf32>
    %c0_25 = arith.constant 0 : index
    %c1024 = arith.constant 1024 : index
    %49 = vector.load %arg5[%c0_25, %c1024] : memref<256x1282xf32, #tpu.memory_space<vmem>>, vector<256x256xf32>
    %cst_26 = arith.constant dense<0.000000e+00> : vector<12x256xf32>
    %50 = tpu.matmul %37, %49, %cst_26 {dimension_numbers = #tpu.dot_dimension_numbers<[1], [0], [0], [1], [0, 0, 1, 1], [], []>} : vector<12x256xf32>, vector<256x256xf32>, vector<12x256xf32> -> vector<12x256xf32>
    %51 = vector.broadcast %6 : vector<1x256xf32> to vector<12x256xf32>
    %52 = arith.addf %50, %51 : vector<12x256xf32>
    %53 = vector.extract_strided_slice %52 {offsets = [0, 0], sizes = [8, 256], strides = [1, 1]} : vector<12x256xf32> to vector<8x256xf32>
    %cst_27 = arith.constant dense<0.000000e+00> : vector<12x8xf32>
    %54 = tpu.matmul %52, %53, %cst_27 {dimension_numbers = #tpu.dot_dimension_numbers<[1], [1], [0], [0], [0, 0, 1, 0], [], []>} : vector<12x256xf32>, vector<8x256xf32>, vector<12x8xf32> -> vector<12x8xf32>
    %55 = tpu.iota {dimensions = array<i32: 0>} : vector<12x8xi32>
    %56 = tpu.iota {dimensions = array<i32: 1>} : vector<12x8xi32>
    %57 = arith.cmpi eq, %55, %56 : vector<12x8xi32>
    %cst_28 = arith.constant 1.000000e+00 : f32
    %cst_29 = arith.constant 0.000000e+00 : f32
    %58 = vector.broadcast %cst_28 : f32 to vector<12x8xf32>
    %59 = vector.broadcast %cst_29 : f32 to vector<12x8xf32>
    %60 = arith.select %57, %58, %59 : vector<12x8xi1>, vector<12x8xf32>
    %61 = arith.mulf %54, %60 : vector<12x8xf32>
    %cst_30 = arith.constant dense<0.000000e+00> : vector<8xf32>
    %62 = vector.multi_reduction <add>, %61, %cst_30 [0] : vector<12x8xf32> to vector<8xf32>
    %63 = vector.shape_cast %62 : vector<8xf32> to vector<1x8xf32>
    %64 = arith.mulf %54, %60 : vector<12x8xf32>
    %cst_31 = arith.constant dense<0.000000e+00> : vector<12xf32>
    %65 = vector.multi_reduction <add>, %64, %cst_31 [1] : vector<12x8xf32> to vector<12xf32>
    %66 = vector.shape_cast %65 : vector<12xf32> to vector<12x1xf32>
    %67 = arith.mulf %52, %52 : vector<12x256xf32>
    %cst_32 = arith.constant dense<0.000000e+00> : vector<12xf32>
    %68 = vector.multi_reduction <add>, %67, %cst_32 [1] : vector<12x256xf32> to vector<12xf32>
    %69 = vector.shape_cast %68 : vector<12xf32> to vector<12x1xf32>
    %70 = tpu.iota {dimensions = array<i32: 0>} : vector<12x1xi32>
    %c8_i32 = arith.constant 8 : i32
    %71 = vector.broadcast %c8_i32 : i32 to vector<12x1xi32>
    %72 = arith.cmpi slt, %70, %71 : vector<12x1xi32>
    %73 = arith.select %72, %66, %69 : vector<12x1xi1>, vector<12x1xf32>
    %74 = vector.broadcast %73 : vector<12x1xf32> to vector<12x8xf32>
    %75 = vector.broadcast %63 : vector<1x8xf32> to vector<12x8xf32>
    %76 = arith.addf %74, %75 : vector<12x8xf32>
    %cst_33 = arith.constant 2.000000e+00 : f32
    %77 = vector.broadcast %cst_33 : f32 to vector<12x8xf32>
    %78 = arith.mulf %77, %54 : vector<12x8xf32>
    %79 = arith.subf %76, %78 : vector<12x8xf32>
    %cst_34 = arith.constant 0.000000e+00 : f32
    %80 = vector.broadcast %cst_34 : f32 to vector<12x8xf32>
    %81 = arith.maximumf %79, %80 : vector<12x8xf32>
    %82 = vector.extract_strided_slice %29 {offsets = [0, 0], sizes = [12, 1], strides = [1, 1]} : vector<12x2xf32> to vector<12x1xf32>
    %83 = vector.extract_strided_slice %2 {offsets = [0, 0], sizes = [1, 8], strides = [1, 1]} : vector<2x8xf32> to vector<1x8xf32>
    %84 = vector.broadcast %82 : vector<12x1xf32> to vector<12x8xf32>
    %85 = vector.broadcast %83 : vector<1x8xf32> to vector<12x8xf32>
    %86 = arith.cmpf oeq, %84, %85 : vector<12x8xf32>
    %87 = vector.extract_strided_slice %29 {offsets = [0, 1], sizes = [12, 1], strides = [1, 1]} : vector<12x2xf32> to vector<12x1xf32>
    %88 = vector.extract_strided_slice %2 {offsets = [1, 0], sizes = [1, 8], strides = [1, 1]} : vector<2x8xf32> to vector<1x8xf32>
    %89 = vector.broadcast %87 : vector<12x1xf32> to vector<12x8xf32>
    %90 = vector.broadcast %88 : vector<1x8xf32> to vector<12x8xf32>
    %91 = arith.cmpf oeq, %89, %90 : vector<12x8xf32>
    %92 = arith.andi %86, %91 : vector<12x8xi1>
    %cst_35 = arith.constant 1.000000e+00 : f32
    %cst_36 = arith.constant 0.000000e+00 : f32
    %93 = vector.broadcast %cst_35 : f32 to vector<12x8xf32>
    %94 = vector.broadcast %cst_36 : f32 to vector<12x8xf32>
    %95 = arith.select %92, %93, %94 : vector<12x8xi1>, vector<12x8xf32>
    %cst_37 = arith.constant 5.000000e-01 : f32
    %96 = vector.broadcast %cst_37 : f32 to vector<12x8xf32>
    %97 = arith.cmpf ogt, %95, %96 : vector<12x8xf32>
    %cst_38 = arith.constant 0.000000e+00 : f32
    %98 = vector.broadcast %cst_38 : f32 to vector<12x8xf32>
    %99 = arith.select %97, %98, %81 : vector<12x8xi1>, vector<12x8xf32>
    %100 = math.sqrt %99 : vector<12x8xf32>
    %cst_39 = arith.constant 0.000000e+00 : f32
    %101 = vector.broadcast %cst_39 : f32 to vector<12x8xf32>
    %102 = arith.subf %101, %100 : vector<12x8xf32>
    %103 = math.exp %102 : vector<12x8xf32>
    %104 = vector.broadcast %44 : vector<1x1xf32> to vector<12x8xf32>
    %105 = arith.mulf %104, %95 : vector<12x8xf32>
    %106 = arith.addf %103, %105 : vector<12x8xf32>
    %c0_40 = arith.constant 0 : index
    %c0_41 = arith.constant 0 : index
    %107 = vector.load %arg8[%c0_40, %c0_41] : memref<12x9xf32, #tpu.memory_space<vmem>>, vector<12x8xf32>
    tpu.vector_store %arg8[%c0_40, %c0_41], %106 {strides = array<i32>} : memref<12x9xf32, #tpu.memory_space<vmem>>, vector<12x8xf32>,
    %108 = vector.extract_strided_slice %0 {offsets = [0, 2], sizes = [8, 1], strides = [1, 1]} : vector<8x3xf32> to vector<8x1xf32>
    %109 = vector.extract_strided_slice %48 {offsets = [0, 0], sizes = [8, 1], strides = [1, 1]} : vector<12x1xf32> to vector<8x1xf32>
    %110 = arith.subf %108, %109 : vector<8x1xf32>
    %c0_42 = arith.constant 0 : index
    %c8 = arith.constant 8 : index
    %111 = vector.load %arg8[%c0_42, %c8] : memref<12x9xf32, #tpu.memory_space<vmem>>, vector<8x1xf32>
    tpu.vector_store %arg8[%c0_42, %c8], %110 {strides = array<i32>} : memref<12x9xf32, #tpu.memory_space<vmem>>, vector<8x1xf32>,
    %112 = vector.extract_strided_slice %48 {offsets = [8, 0], sizes = [4, 1], strides = [1, 1]} : vector<12x1xf32> to vector<4x1xf32>
    %c8_43 = arith.constant 8 : index
    %c8_44 = arith.constant 8 : index
    %113 = vector.load %arg8[%c8_43, %c8_44] : memref<12x9xf32, #tpu.memory_space<vmem>>, vector<4x1xf32>
    tpu.vector_store %arg8[%c8_43, %c8_44], %112 {strides = array<i32>} : memref<12x9xf32, #tpu.memory_space<vmem>>, vector<4x1xf32>,
    return
  }
}

</mosaic_0001>

<llo_original>
// kernel: custom-call.61
$region0: #{custom-call.61}
  %s0 = inlined_call_operand.vmem [shape: f32[16,8], index: 0, kind: input, shape index: {}]
  %s1 = inlined_call_operand.vmem [shape: f32[16,8], index: 1, kind: output, shape index: {0}]
  %s2 = inlined_call_operand.vmem [shape: f32[8], index: 2, kind: output, shape index: {1}]
  %3 = xla_tuple %s1, %s2
  $region1: #{custom-call.61} parent=0
    #allocation0 [shape = 'u8[8192]{0}', space=vmem, size = 0x2000, scoped, tag = 'operand span for operand 0']
    #allocation1 [shape = 'u8[8192]{0}', space=vmem, size = 0x2000, scoped, tag = 'operand span for operand 1']
    #allocation2 [shape = 'u8[4096]{0}', space=vmem, size = 0x1000, scoped, tag = 'operand span for operand 2']
    #allocation3 [shape = 'u8[512]{0}', space=vmem, size = 0x400, scoped, tag = 'packed  for operand 2']
    #allocation4 [shape = 'f32[16,128]{1,0}', space=vmem, size = 0x2000, scoped, tag = 'scratch for Householder reflectors']
    // Predicated region
    $region2: #{custom-call.61} parent=1 // pred_check
      _
    $region3: #{custom-call.61} parent=1 // pred_check_branch
      %5 = sbr.rel (0) target = $region5
    $region4: #{custom-call.61} parent=1 // pred_region
      // Predicated region
      $region6: #{custom-call.61} parent=4 // pred_check
        _
      $region7: #{custom-call.61} parent=4 // pred_check_branch
        %7 = sbr.rel (0) target = $region9
      $region8: #{custom-call.61} parent=4 // pred_region
        // Predicated region
        $region21: #{custom-call.61} parent=8 // pred_check
          _
        $region22: #{custom-call.61} parent=8 // pred_check_branch
          %25 = sbr.rel (0) target = $region24
        $region23: #{custom-call.61} parent=8 // pred_region
          loop: start=0, step=1, limit=1
          $region25: #{custom-call.61} parent=23 // loop_pre_header
            _
          $region26: #{custom-call.61} parent=23 // loop_header
            %s27 = sphi 0, %s31
            %p28 = scmp.ge.s32.totalorder %s27, 1
            %s32 = sphi %s0, %s0
            %s33 = sphi [#allocation0], [#allocation0]
          $region27: #{custom-call.61} parent=23 // loop_header_branch
            %30 = sbr.rel (%p28) target = $region31
          $region28: #{custom-call.61} parent=23 // loop_body
            %v34 = vld [vmem:[%s32] sm:$0xff]
            %35 = vst [vmem:[%s33] sm:$0xff] %v34
            %v36 = vld [vmem:[%s32 + $0x8] sm:$0xff]
            %37 = vst [vmem:[%s33 + $0x8] sm:$0xff] %v36
          $region29: #{custom-call.61} parent=23 // loop_footer
            %s31 = sadd.s32 1, %s27
          $region30: #{custom-call.61} parent=23 // loop_footer_branch
            %26 = sbr.rel target = $region26
          $region31: #{custom-call.61} parent=23 // loop_exit
            _
        $region24: #{custom-call.61} parent=8 // pred_fallthru
          _
        // Predicated region
        $region32: #{custom-call.61} parent=8 // pred_check
          _
        $region33: #{custom-call.61} parent=8 // pred_check_branch
          %39 = sbr.rel target = $region35
        $region34: #{custom-call.61} parent=8 // pred_region
          _
        $region35: #{custom-call.61} parent=8 // pred_fallthru
          _
      $region9: #{custom-call.61} parent=4 // pred_fallthru
        _
      // Predicated region
      $region10: #{custom-call.61} parent=4 // pred_check
        _
      $region11: #{custom-call.61} parent=4 // pred_check_branch
        %9 = sbr.rel target = $region13
      $region12: #{custom-call.61} parent=4 // pred_region
        %s11 = ssub.s32 256, 1
        loop: start=0, step=1, limit=1
        $region14: #{custom-call.61} parent=12 // loop_pre_header
          _
        $region15: #{custom-call.61} parent=12 // loop_header
          %s13 = sphi 0, %s17
          %p14 = scmp.ge.s32.totalorder %s13, 1
          %s18 = sphi %s0, %s0
          %s19 = sphi [#allocation0], [#allocation0]
        $region16: #{custom-call.61} parent=12 // loop_header_branch
          %16 = sbr.rel (%p14) target = $region20
        $region17: #{custom-call.61} parent=12 // loop_body
          %v20 = vld [vmem:[%s18] sm:%s11]
          %21 = vst [vmem:[%s19] sm:%s11] %v20
          %v22 = vld [vmem:[%s18 + $0x8] sm:%s11]
          %23 = vst [vmem:[%s19 + $0x8] sm:%s11] %v22
        $region18: #{custom-call.61} parent=12 // loop_footer
          %s17 = sadd.s32 1, %s13
        $region19: #{custom-call.61} parent=12 // loop_footer_branch
          %12 = sbr.rel target = $region15
        $region20: #{custom-call.61} parent=12 // loop_exit
          _
      $region13: #{custom-call.61} parent=4 // pred_fallthru
        _
    $region5: #{custom-call.61} parent=1 // pred_fallthru
      _
    %40 = vnop
    %v41 = vld [vmem:[#allocation0] sm:$0xff]
    %42 = vst [vmem:[#allocation1] sm:$0xff] %v41
    %s43 = scalar_lea.vmem [#allocation1], 8
    %s44 = scalar_lea.vmem [#allocation0], 8
    %v45 = vld [vmem:[%s44] sm:$0xff]
    %46 = vst [vmem:[%s43] sm:$0xff] %v45
    %47 = vst [vmem:[#allocation2] sm:$0x1] 0.0
    loop: start=0, step=1, limit=8
    $region36: #{custom-call.61} parent=1 // loop_pre_header
      _
    $region37: #{custom-call.61} parent=1 // loop_header
      %s49 = sphi 0, %s53
      %p50 = scmp.ge.s32.totalorder %s49, 8
    $region38: #{custom-call.61} parent=1 // loop_header_branch
      %52 = sbr.rel (%p50) target = $region42
    $region39: #{custom-call.61} parent=1 // loop_body
      %v54 = vld [vmem:[#allocation1] sm:$0xff]
      %v55 = vlaneseq
      %v56 = vshrl.u32 %v55, 7
      %v58 = vstv %s49
      %vm59 = vcmp.gt.s32.totalorder %v56, %v58
      %v60 = vsel %vm59, %v54, 0.0
      %v61 = vmul.f32 %v60, %v60
      %s62 = scalar_lea.vmem [#allocation1], 8
      %v63 = vld [vmem:[%s62] sm:$0xff]
      %v64 = vlaneseq
      %v65 = vshrl.u32 %v64, 7
      %v66 = vadd.s32 %v65, 8
      %v67 = vstv %s49
      %vm68 = vcmp.gt.s32.totalorder %v66, %v67
      %vm69 = vcmp.lt.s32.totalorder %v66, 16
      %vm70 = vmand %vm68, %vm69
      %v71 = vsel %vm70, %v63, 0.0
      %v72 = vmul.f32 %v71, %v71
      %v73 = vadd.f32 %v61, %v72
      %v74 = vrot.slane %v73, 4
      %v75 = vadd.f32 %v73, %v74
      %v76 = vrot.slane %v75, 2
      %v77 = vadd.f32 %v75, %v76
      %v78 = vrot.slane %v77, 1
      %v79 = vadd.f32 %v77, %v78
      %v80 = vrsqrt.pop %v79
      %v81 = vmul.f32 %v79, %v80
      %vm82 = vcmp.eq.f32.partialorder %v79, inf
      %v83 = vsel %vm82, %v79, %v81
      %vm84 = vcmp.eq.f32.partialorder %v79, 0.0
      %v85 = vand.u32 %v79, 2147483648
      %v86 = vsel %vm84, %v85, %v83
      %vm87 = vcmp.eq.f32.partialorder %v79, 0.0
      %s88 = sshrl.u32 %s49, 3
      %s89 = sand.u32 %s49, 7
      %s90 = smul.addr %s88, 8
      %s91 = sadd.s32 %s89, %s90
      %s92 = scalar_lea.vmem [#allocation1], %s91
      %v93 = vld [vmem:[%s92] ss:$0 sm:$0xff]
      %v94 = vand.u32 2147483647, %v93
      %v95 = vmax.f32 %v94, 0.0
      %v96 = vand.u32 2147483647, %v86
      %v97 = vmax.f32 %v95, %v96
      %v98 = vrcp.pop %v97
      %v99 = vmul.f32 %v94, %v98
      %v100 = vmul.f32 %v99, %v99
      %v101 = vrcp.pop %v97
      %v102 = vmul.f32 0.0, %v101
      %v103 = vmul.f32 %v102, %v102
      %v104 = vadd.f32 %v100, %v103
      %v105 = vrcp.pop %v97
      %v106 = vmul.f32 %v96, %v105
      %v107 = vmul.f32 %v106, %v106
      %v108 = vadd.f32 %v104, %v107
      %vm109 = vcmp.eq.f32.partialorder %v97, 0.0
      %v110 = vrsqrt.pop %v108
      %v111 = vmul.f32 %v108, %v110
      %vm112 = vcmp.eq.f32.partialorder %v108, inf
      %v113 = vsel %vm112, %v108, %v111
      %vm114 = vcmp.eq.f32.partialorder %v108, 0.0
      %v115 = vand.u32 %v108, 2147483648
      %v116 = vsel %vm114, %v115, %v113
      %v117 = vmul.f32 %v97, %v116
      %v118 = vsel %vm109, 0.0, %v117
      %vm119 = vcmp.lt.f32.partialorder %v93, 0.0
      %v120 = vxor.u32 %v118, 2147483648
      %v121 = vsel %vm119, %v118, %v120
      %v122 = vsub.f32 %v121, %v93
      %v123 = vrcp.pop %v121
      %v124 = vmul.f32 %v122, %v123
      %v125 = vsel %vm87, %v93, %v121
      %v126 = vsel %vm87, 0.0, %v124
      %v127 = vsub.f32 %v93, %v125
      %s128 = smov [#allocation1]
      %v129 = vlaneseq
      %v130 = vshrl.u32 %v129, 7
      %v131 = vmov %v130
      %v132 = vld [vmem:[%s128] sm:$0xff]
      %v134 = vstv %s49
      %vm135 = vcmp.gt.s32.totalorder %v131, %v134
      %v136 = vsel %vm135, %v132, 0.0
      %v137 = vrcp.pop %v127
      %v138 = vmul.f32 %v136, %v137
      %v139 = vsel %vm87, 0.0, %v138
      %v140 = vstv %s49
      %v141 = vlaneseq
      %v142 = vand.u32 %v141, 127
      %vm143 = vcmp.eq.s32.totalorder %v142, %v140
      %v144 = vsel %vm143, %v139, 0.0
      %145 = vadd.xlane.f32.xlu0 %v144
      %v146 = vpop.xlane.xlu0 %145
      %147 = vst [vmem:[#allocation4] sm:$0xff] %v146
      %s148 = scalar_lea.vmem %s128, 8
      %v149 = vld [vmem:[%s148] sm:$0xff]
      %v150 = vadd.s32 %v131, 8
      %v151 = vstv %s49
      %vm152 = vcmp.gt.s32.totalorder %v150, %v151
      %vm153 = vcmp.lt.s32.totalorder %v150, 16
      %vm154 = vmand %vm152, %vm153
      %v155 = vsel %vm154, %v149, 0.0
      %v156 = vrcp.pop %v127
      %v157 = vmul.f32 %v155, %v156
      %v158 = vsel %vm87, 0.0, %v157
      %v159 = vstv %s49
      %v160 = vlaneseq
      %v161 = vand.u32 %v160, 127
      %vm162 = vcmp.eq.s32.totalorder %v161, %v159
      %v163 = vsel %vm162, %v158, 0.0
      %164 = vadd.xlane.f32.xlu0 %v163
      %v165 = vpop.xlane.xlu0 %164
      %s166 = scalar_lea.vmem [#allocation4], 8
      %167 = vst [vmem:[%s166] sm:$0xff] %v165
      %s168 = scalar_lea.vmem [#allocation4], %s49
      %169 = vst [vmem:[%s168] sm:$0x1] 1.0
      %v170 = vstv %s49
      %v171 = vlaneseq
      %v172 = vand.u32 %v171, 127
      %vm173 = vcmp.eq.s32.totalorder %v172, %v170
      %v174 = vsel %vm173, %v126, 0.0
      %175 = vadd.xlane.f32.xlu0 %v174
      %v176 = vpop.xlane.xlu0 %175
      %v177 = vstv %s49
      %v178 = vlaneseq
      %v179 = vand.u32 %v178, 127
      %vm180 = vcmp.eq.s32.totalorder %v179, %v177
      %v181 = vld [vmem:[#allocation2] ss:$0 sm:$0xff]
      %v182 = vsel %vm180, %v176, %v181
      %183 = vst [vmem:[#allocation2] sm:$0x1] %v182
      %s184 = smov [#allocation1]
      %s185 = smov [#allocation4]
      %v186 = vlaneseq
      %v187 = vshrl.u32 %v186, 7
      %v188 = vmov %v187
      %v190 = vld [vmem:[%s185] sm:$0xff]
      %v191 = vld [vmem:[%s184] sm:$0xff]
      %v192 = vmul.f32 %v190, %v191
      %v193 = vadd.s32 %v188, 8
      %s194 = scalar_lea.vmem %s185, 8
      %v195 = vld [vmem:[%s194] sm:$0xff]
      %s196 = scalar_lea.vmem %s184, 8
      %v197 = vld [vmem:[%s196] sm:$0xff]
      %v198 = vmul.f32 %v195, %v197
      %vm199 = vcmp.lt.s32.totalorder %v193, 16
      %v200 = vsel %vm199, %v198, 0.0
      %v201 = vadd.f32 %v192, %v200
      %v202 = vrot.slane %v201, 4
      %v203 = vadd.f32 %v201, %v202
      %v204 = vrot.slane %v203, 2
      %v205 = vadd.f32 %v203, %v204
      %v206 = vrot.slane %v205, 1
      %v207 = vadd.f32 %v205, %v206
      %s208 = smov %s184
      %s209 = smov %s185
      %v210 = vlaneseq
      %v211 = vshrl.u32 %v210, 7
      %v212 = vmov %v211
      %v213 = vmul.f32 %v207, %v176
      %v215 = vlaneseq
      %v216 = vand.u32 %v215, 127
      %v217 = vld [vmem:[%s209] sm:$0xff]
      %v218 = vmul.f32 %v217, %v213
      %v219 = vld [vmem:[%s208] sm:$0xff]
      %v220 = vstv %s49
      %vm221 = vcmp.gt.s32.totalorder %v216, %v220
      %v222 = vsub.f32 %v219, %v218
      %v223 = vsel %vm221, %v222, %v219
      %v224 = vstv %s49
      %v225 = vlaneseq
      %v226 = vand.u32 %v225, 127
      %vm227 = vcmp.eq.s32.totalorder %v226, %v224
      %v228 = vstv %s49
      %vm229 = vcmp.ge.s32.totalorder %v212, %v228
      %vm230 = vmand %vm227, %vm229
      %v231 = vsel %vm230, %v217, %v223
      %232 = vst [vmem:[%s208] sm:$0xff] %v231
      %v233 = vadd.s32 %v212, 8
      %v234 = vlaneseq
      %v235 = vand.u32 %v234, 127
      %s236 = scalar_lea.vmem %s209, 8
      %v237 = vld [vmem:[%s236] sm:$0xff]
      %v238 = vmul.f32 %v237, %v213
      %s239 = scalar_lea.vmem %s208, 8
      %v240 = vld [vmem:[%s239] sm:$0xff]
      %v241 = vstv %s49
      %vm242 = vcmp.gt.s32.totalorder %v235, %v241
      %v243 = vsub.f32 %v240, %v238
      %v244 = vsel %vm242, %v243, %v240
      %v245 = vstv %s49
      %v246 = vlaneseq
      %v247 = vand.u32 %v246, 127
      %vm248 = vcmp.eq.s32.totalorder %v247, %v245
      %v249 = vstv %s49
      %vm250 = vcmp.ge.s32.totalorder %v233, %v249
      %vm251 = vmand %vm248, %vm250
      %v252 = vsel %vm251, %v237, %v244
      %253 = vst [vmem:[%s239] sm:$0xff] %v252
      %s254 = scalar_lea.vmem %s208, %s49
      %v255 = vld [vmem:[%s254] ss:$0 sm:$0xff]
      %v256 = vstv %s49
      %v257 = vlaneseq
      %v258 = vand.u32 %v257, 127
      %vm259 = vcmp.eq.s32.totalorder %v258, %v256
      %v260 = vsel %vm259, %v125, %v255
      %261 = vst [vmem:[%s254] sm:$0x1] %v260
    $region40: #{custom-call.61} parent=1 // loop_footer
      %s53 = sadd.s32 1, %s49
    $region41: #{custom-call.61} parent=1 // loop_footer_branch
      %48 = sbr.rel target = $region37
    $region42: #{custom-call.61} parent=1 // loop_exit
      _
    %s263 = sshll.u32 1, 1
    %s264 = ssub.s32 %s263, 1
    %v266 = vld [vmem:[#allocation2] sm:%s264]
    %s267 = sshll.u32 1, 1
    %s268 = ssub.s32 %s267, 1
    %269 = vst [vmem:[#allocation3] sm:%s268] %v266
    // Predicated region
    $region43: #{custom-call.61} parent=1 // pred_check
      _
    $region44: #{custom-call.61} parent=1 // pred_check_branch
      %271 = sbr.rel (0) target = $region46
    $region45: #{custom-call.61} parent=1 // pred_region
      // Predicated region
      $region47: #{custom-call.61} parent=45 // pred_check
        _
      $region48: #{custom-call.61} parent=45 // pred_check_branch
        %273 = sbr.rel (0) target = $region50
      $region49: #{custom-call.61} parent=45 // pred_region
        // Predicated region
        $region62: #{custom-call.61} parent=49 // pred_check
          _
        $region63: #{custom-call.61} parent=49 // pred_check_branch
          %291 = sbr.rel (0) target = $region65
        $region64: #{custom-call.61} parent=49 // pred_region
          loop: start=0, step=1, limit=1
          $region66: #{custom-call.61} parent=64 // loop_pre_header
            _
          $region67: #{custom-call.61} parent=64 // loop_header
            %s293 = sphi 0, %s297
            %p294 = scmp.ge.s32.totalorder %s293, 1
            %s298 = sphi [#allocation1], [#allocation1]
            %s299 = sphi %s1, %s1
          $region68: #{custom-call.61} parent=64 // loop_header_branch
            %296 = sbr.rel (%p294) target = $region72
          $region69: #{custom-call.61} parent=64 // loop_body
            %v300 = vld [vmem:[%s298] sm:$0xff]
            %301 = vst [vmem:[%s299] sm:$0xff] %v300
            %v302 = vld [vmem:[%s298 + $0x8] sm:$0xff]
            %303 = vst [vmem:[%s299 + $0x8] sm:$0xff] %v302
          $region70: #{custom-call.61} parent=64 // loop_footer
            %s297 = sadd.s32 1, %s293
          $region71: #{custom-call.61} parent=64 // loop_footer_branch
            %292 = sbr.rel target = $region67
          $region72: #{custom-call.61} parent=64 // loop_exit
            _
        $region65: #{custom-call.61} parent=49 // pred_fallthru
          _
        // Predicated region
        $region73: #{custom-call.61} parent=49 // pred_check
          _
        $region74: #{custom-call.61} parent=49 // pred_check_branch
          %305 = sbr.rel target = $region76
        $region75: #{custom-call.61} parent=49 // pred_region
          _
        $region76: #{custom-call.61} parent=49 // pred_fallthru
          _
      $region50: #{custom-call.61} parent=45 // pred_fallthru
        _
      // Predicated region
      $region51: #{custom-call.61} parent=45 // pred_check
        _
      $region52: #{custom-call.61} parent=45 // pred_check_branch
        %275 = sbr.rel target = $region54
      $region53: #{custom-call.61} parent=45 // pred_region
        %s277 = ssub.s32 256, 1
        loop: start=0, step=1, limit=1
        $region55: #{custom-call.61} parent=53 // loop_pre_header
          _
        $region56: #{custom-call.61} parent=53 // loop_header
          %s279 = sphi 0, %s283
          %p280 = scmp.ge.s32.totalorder %s279, 1
          %s284 = sphi [#allocation1], [#allocation1]
          %s285 = sphi %s1, %s1
        $region57: #{custom-call.61} parent=53 // loop_header_branch
          %282 = sbr.rel (%p280) target = $region61
        $region58: #{custom-call.61} parent=53 // loop_body
          %v286 = vld [vmem:[%s284] sm:%s277]
          %287 = vst [vmem:[%s285] sm:%s277] %v286
          %v288 = vld [vmem:[%s284 + $0x8] sm:%s277]
          %289 = vst [vmem:[%s285 + $0x8] sm:%s277] %v288
        $region59: #{custom-call.61} parent=53 // loop_footer
          %s283 = sadd.s32 1, %s279
        $region60: #{custom-call.61} parent=53 // loop_footer_branch
          %278 = sbr.rel target = $region56
        $region61: #{custom-call.61} parent=53 // loop_exit
          _
      $region54: #{custom-call.61} parent=45 // pred_fallthru
        _
    $region46: #{custom-call.61} parent=1 // pred_fallthru
      _
    %306 = vnop
    // Predicated region
    $region77: #{custom-call.61} parent=1 // pred_check
      _
    $region78: #{custom-call.61} parent=1 // pred_check_branch
      %308 = sbr.rel (0) target = $region80
    $region79: #{custom-call.61} parent=1 // pred_region
      // Predicated region
      $region81: #{custom-call.61} parent=79 // pred_check
        _
      $region82: #{custom-call.61} parent=79 // pred_check_branch
        %310 = sbr.rel (0) target = $region84
      $region83: #{custom-call.61} parent=79 // pred_region
        // Predicated region
        $region85: #{custom-call.61} parent=83 // pred_check
          _
        $region86: #{custom-call.61} parent=83 // pred_check_branch
          %312 = sbr.rel target = $region88
        $region87: #{custom-call.61} parent=83 // pred_region
          // Predicated region
          $region100: #{custom-call.61} parent=87 // pred_check
            _
          $region101: #{custom-call.61} parent=87 // pred_check_branch
            %328 = sbr.rel (0) target = $region103
          $region102: #{custom-call.61} parent=87 // pred_region
            %s330 = ssub.s32 2, 1
            loop: start=0, step=1, limit=1
            $region104: #{custom-call.61} parent=102 // loop_pre_header
              _
            $region105: #{custom-call.61} parent=102 // loop_header
              %s332 = sphi 0, %s336
              %p333 = scmp.ge.s32.totalorder %s332, 1
              %s337 = sphi [#allocation3], [#allocation3]
              %s338 = sphi %s2, %s2
            $region106: #{custom-call.61} parent=102 // loop_header_branch
              %335 = sbr.rel (%p333) target = $region110
            $region107: #{custom-call.61} parent=102 // loop_body
              %v339 = vld [vmem:[%s337] sm:%s330]
              %340 = vst [vmem:[%s338] sm:%s330] %v339
            $region108: #{custom-call.61} parent=102 // loop_footer
              %s336 = sadd.s32 1, %s332
            $region109: #{custom-call.61} parent=102 // loop_footer_branch
              %331 = sbr.rel target = $region105
            $region110: #{custom-call.61} parent=102 // loop_exit
              _
          $region103: #{custom-call.61} parent=87 // pred_fallthru
            _
        $region88: #{custom-call.61} parent=83 // pred_fallthru
          _
        // Predicated region
        $region89: #{custom-call.61} parent=83 // pred_check
          _
        $region90: #{custom-call.61} parent=83 // pred_check_branch
          %314 = sbr.rel (0) target = $region92
        $region91: #{custom-call.61} parent=83 // pred_region
          %s316 = ssub.s32 2, 1
          loop: start=0, step=1, limit=1
          $region93: #{custom-call.61} parent=91 // loop_pre_header
            _
          $region94: #{custom-call.61} parent=91 // loop_header
            %s318 = sphi 0, %s322
            %p319 = scmp.ge.s32.totalorder %s318, 1
            %s323 = sphi [#allocation3], [#allocation3]
            %s324 = sphi %s2, %s2
          $region95: #{custom-call.61} parent=91 // loop_header_branch
            %321 = sbr.rel (%p319) target = $region99
          $region96: #{custom-call.61} parent=91 // loop_body
            %v325 = vld [vmem:[%s323] sm:%s316]
            %326 = vst [vmem:[%s324] sm:%s316] %v325
          $region97: #{custom-call.61} parent=91 // loop_footer
            %s322 = sadd.s32 1, %s318
          $region98: #{custom-call.61} parent=91 // loop_footer_branch
            %317 = sbr.rel target = $region94
          $region99: #{custom-call.61} parent=91 // loop_exit
            _
        $region92: #{custom-call.61} parent=83 // pred_fallthru
          _
      $region84: #{custom-call.61} parent=79 // pred_fallthru
        _
      %341 = vnop
    $region80: #{custom-call.61} parent=1 // pred_fallthru
      _
    // Predicated region
    $region111: #{custom-call.61} parent=1 // pred_check
      _
    $region112: #{custom-call.61} parent=1 // pred_check_branch
      %343 = sbr.rel (0) target = $region114
    $region113: #{custom-call.61} parent=1 // pred_region
      _
    $region114: #{custom-call.61} parent=1 // pred_fallthru
      _

// kernel: custom-call.62
$region0: #{custom-call.62}
  %s0 = inlined_call_operand.vmem [shape: f32[8,8], index: 0, kind: input, shape index: {}]
  %s1 = inlined_call_operand.vmem [shape: f32[8,8], index: 1, kind: output, shape index: {}]
  $region1: #{custom-call.62} parent=0
    #allocation0 [shape = 'u8[4096]{0}', space=vmem, size = 0x1000, scoped, tag = 'operand span for operand 0']
    #allocation1 [shape = 'u8[4096]{0}', space=vmem, size = 0x1000, scoped, tag = 'operand span for operand 1']
    %p3 = scmp.gt.s32.totalorder 8, 0
    // Predicated region
    $region2: #{custom-call.62} parent=1 // pred_check
      %p4 = pneg %p3
    $region3: #{custom-call.62} parent=1 // pred_check_branch
      %6 = sbr.rel (%p4) target = $region5
    $region4: #{custom-call.62} parent=1 // pred_region
      %s7 = sshra.s32 8, 3
      %p8 = scmp.gt.s32.totalorder %s7, 0
      // Predicated region
      $region6: #{custom-call.62} parent=4 // pred_check
        %p9 = pneg %p8
      $region7: #{custom-call.62} parent=4 // pred_check_branch
        %11 = sbr.rel (%p9) target = $region9
      $region8: #{custom-call.62} parent=4 // pred_region
        %s12 = ssub.s32 %s7, 1
        %s13 = smul.u32 %s12, 128
        %s14 = sshra.s32 %s13, 4
        %s15 = scalar_lea.vmem %s0, %s14
        %v16 = vld [vmem:[%s0] sm:$0xff]
        // While loop
        $region10: #{custom-call.62} parent=8 // loop_pre_header
          _
        $region11: #{custom-call.62} parent=8 // loop_header
          %s17 = sphi %s0, %s39
          %s18 = sphi [#allocation0], %s40
          %v19 = vphi %v16, %v41
          %s20 = ssub.s32 %s15, 64
          %p21 = scmp.gt.s32.totalorder %s17, %s20
        $region12: #{custom-call.62} parent=8 // loop_header_branch
          %23 = sbr.rel (%p21) target = $region16
        $region13: #{custom-call.62} parent=8 // loop_body
          %24 = vst [vmem:[%s18] sm:$0xff] %v19
          %v25 = vld [vmem:[%s17 + $0x8] sm:$0xff]
          %26 = vst [vmem:[%s18 + $0x8] sm:$0xff] %v25
          %v27 = vld [vmem:[%s17 + $0x10] sm:$0xff]
          %28 = vst [vmem:[%s18 + $0x10] sm:$0xff] %v27
          %v29 = vld [vmem:[%s17 + $0x18] sm:$0xff]
          %30 = vst [vmem:[%s18 + $0x18] sm:$0xff] %v29
          %v31 = vld [vmem:[%s17 + $0x20] sm:$0xff]
          %32 = vst [vmem:[%s18 + $0x20] sm:$0xff] %v31
          %v33 = vld [vmem:[%s17 + $0x28] sm:$0xff]
          %34 = vst [vmem:[%s18 + $0x28] sm:$0xff] %v33
          %v35 = vld [vmem:[%s17 + $0x30] sm:$0xff]
          %36 = vst [vmem:[%s18 + $0x30] sm:$0xff] %v35
          %v37 = vld [vmem:[%s17 + $0x38] sm:$0xff]
          %38 = vst [vmem:[%s18 + $0x38] sm:$0xff] %v37
        $region14: #{custom-call.62} parent=8 // loop_footer
          %s39 = scalar_lea.vmem %s17, 64
          %s40 = scalar_lea.vmem %s18, 64
          %v41 = vld [vmem:[%s17 + $0x40] sm:$0xff]
        $region15: #{custom-call.62} parent=8 // loop_footer_branch
          %42 = sbr.rel target = $region11
        $region16: #{custom-call.62} parent=8 // loop_exit
          _
        // While loop
        $region17: #{custom-call.62} parent=8 // loop_pre_header
          _
        $region18: #{custom-call.62} parent=8 // loop_header
          %s43 = sphi %s17, %s51
          %s44 = sphi %s18, %s52
          %v45 = vphi %v19, %v45
          %p46 = scmp.gt.s32.totalorder %s43, %s15
        $region19: #{custom-call.62} parent=8 // loop_header_branch
          %48 = sbr.rel (%p46) target = $region23
        $region20: #{custom-call.62} parent=8 // loop_body
          %v49 = vld [vmem:[%s43] sm:$0xff]
          %50 = vst [vmem:[%s44] sm:$0xff] %v49
        $region21: #{custom-call.62} parent=8 // loop_footer
          %s51 = scalar_lea.vmem %s43, 8
          %s52 = scalar_lea.vmem %s44, 8
        $region22: #{custom-call.62} parent=8 // loop_footer_branch
          %53 = sbr.rel target = $region18
        $region23: #{custom-call.62} parent=8 // loop_exit
          _
      $region9: #{custom-call.62} parent=4 // pred_fallthru
        _
      %s54 = sand.u32 8, 7
      %s55 = sshll.u32 1, %s54
      %s56 = ssub.s32 %s55, 1
      %s57 = smul.u32 %s7, 128
      %s58 = sshra.s32 %s57, 4
      %s59 = scalar_lea.vmem [#allocation0], %s58
      %s60 = smul.u32 %s7, 128
      %s61 = sshra.s32 %s60, 4
      %s62 = scalar_lea.vmem %s0, %s61
      %v63 = vld [vmem:[%s62] sm:%s56]
      %64 = vst [vmem:[%s59] sm:%s56] %v63
    $region5: #{custom-call.62} parent=1 // pred_fallthru
      _
    %v65 = vlaneseq
    %v66 = vand.u32 %v65, 127
    %v67 = vlaneseq
    %v68 = vshrl.u32 %v67, 7
    %vm70 = vcmp.eq.s32.totalorder %v66, %v68
    %v71 = vld [vmem:[#allocation0] sm:$0xff]
    %v72 = vlaneseq
    %v73 = vand.u32 %v72, 127
    %vm74 = vcmp.eq.s32.totalorder %v73, 0
    %v75 = vsel %vm74, %v71, 1.0
    %v76 = vsel %vm70, %v75, 0.0
    %s77 = scalar_lea.vmem [#allocation0], 1
    %v78 = vld [vmem:[%s77] ss:$0 sm:$0xff]
    %vm79 = vcmask 64512
    %v80 = vsel %vm79, %v78, 0.0
    %v81 = vlaneseq
    %v82 = vand.u32 %v81, 127
    %vm83 = vcmp.eq.s32.totalorder %v82, 1
    %v84 = vmul.f32 %v80, %v76
    %85 = vadd.xlane.f32.xlu0 %v84
    %v86 = vpop.xlane.xlu0 %85
    %v87 = vsel %vm83, %v86, %v76
    %s88 = scalar_lea.vmem [#allocation0], 2
    %v89 = vld [vmem:[%s88] ss:$0 sm:$0xff]
    %vm90 = vcmask 64512
    %v91 = vsel %vm90, %v89, 0.0
    %v92 = vlaneseq
    %v93 = vand.u32 %v92, 127
    %vm94 = vcmp.eq.s32.totalorder %v93, 2
    %v95 = vmul.f32 %v91, %v87
    %96 = vadd.xlane.f32.xlu0 %v95
    %v97 = vpop.xlane.xlu0 %96
    %v98 = vsel %vm94, %v97, %v87
    %s99 = scalar_lea.vmem [#allocation0], 3
    %v100 = vld [vmem:[%s99] ss:$0 sm:$0xff]
    %vm101 = vcmask 64512
    %v102 = vsel %vm101, %v100, 0.0
    %v103 = vlaneseq
    %v104 = vand.u32 %v103, 127
    %vm105 = vcmp.eq.s32.totalorder %v104, 3
    %v106 = vmul.f32 %v102, %v98
    %107 = vadd.xlane.f32.xlu0 %v106
    %v108 = vpop.xlane.xlu0 %107
    %v109 = vsel %vm105, %v108, %v98
    %s110 = scalar_lea.vmem [#allocation0], 4
    %v111 = vld [vmem:[%s110] ss:$0 sm:$0xff]
    %vm112 = vcmask 64512
    %v113 = vsel %vm112, %v111, 0.0
    %v114 = vlaneseq
    %v115 = vand.u32 %v114, 127
    %vm116 = vcmp.eq.s32.totalorder %v115, 4
    %v117 = vmul.f32 %v113, %v109
    %118 = vadd.xlane.f32.xlu0 %v117
    %v119 = vpop.xlane.xlu0 %118
    %v120 = vsel %vm116, %v119, %v109
    %s121 = scalar_lea.vmem [#allocation0], 5
    %v122 = vld [vmem:[%s121] ss:$0 sm:$0xff]
    %vm123 = vcmask 64512
    %v124 = vsel %vm123, %v122, 0.0
    %v125 = vlaneseq
    %v126 = vand.u32 %v125, 127
    %vm127 = vcmp.eq.s32.totalorder %v126, 5
    %v128 = vmul.f32 %v124, %v120
    %129 = vadd.xlane.f32.xlu0 %v128
    %v130 = vpop.xlane.xlu0 %129
    %v131 = vsel %vm127, %v130, %v120
    %s132 = scalar_lea.vmem [#allocation0], 6
    %v133 = vld [vmem:[%s132] ss:$0 sm:$0xff]
    %vm134 = vcmask 64512
    %v135 = vsel %vm134, %v133, 0.0
    %v136 = vlaneseq
    %v137 = vand.u32 %v136, 127
    %vm138 = vcmp.eq.s32.totalorder %v137, 6
    %v139 = vmul.f32 %v135, %v131
    %140 = vadd.xlane.f32.xlu0 %v139
    %v141 = vpop.xlane.xlu0 %140
    %v142 = vsel %vm138, %v141, %v131
    %s143 = scalar_lea.vmem [#allocation0], 7
    %v144 = vld [vmem:[%s143] ss:$0 sm:$0xff]
    %vm145 = vcmask 64512
    %v146 = vsel %vm145, %v144, 0.0
    %v147 = vlaneseq
    %v148 = vand.u32 %v147, 127
    %vm149 = vcmp.eq.s32.totalorder %v148, 7
    %v150 = vmul.f32 %v146, %v142
    %151 = vadd.xlane.f32.xlu0 %v150
    %v152 = vpop.xlane.xlu0 %151
    %v153 = vsel %vm149, %v152, %v142
    %154 = vst [vmem:[#allocation1] sm:$0xff] %v153
    %p156 = scmp.gt.s32.totalorder 8, 0
    // Predicated region
    $region24: #{custom-call.62} parent=1 // pred_check
      %p157 = pneg %p156
    $region25: #{custom-call.62} parent=1 // pred_check_branch
      %159 = sbr.rel (%p157) target = $region27
    $region26: #{custom-call.62} parent=1 // pred_region
      %s160 = sshra.s32 8, 3
      %p161 = scmp.gt.s32.totalorder %s160, 0
      // Predicated region
      $region28: #{custom-call.62} parent=26 // pred_check
        %p162 = pneg %p161
      $region29: #{custom-call.62} parent=26 // pred_check_branch
        %164 = sbr.rel (%p162) target = $region31
      $region30: #{custom-call.62} parent=26 // pred_region
        %s165 = ssub.s32 %s160, 1
        %s166 = smul.u32 %s165, 128
        %s167 = sshra.s32 %s166, 4
        %s168 = scalar_lea.vmem [#allocation1], %s167
        %v169 = vld [vmem:[#allocation1] sm:$0xff]
        // While loop
        $region32: #{custom-call.62} parent=30 // loop_pre_header
          _
        $region33: #{custom-call.62} parent=30 // loop_header
          %s170 = sphi [#allocation1], %s192
          %s171 = sphi %s1, %s193
          %v172 = vphi %v169, %v194
          %s173 = ssub.s32 %s168, 64
          %p174 = scmp.gt.s32.totalorder %s170, %s173
        $region34: #{custom-call.62} parent=30 // loop_header_branch
          %176 = sbr.rel (%p174) target = $region38
        $region35: #{custom-call.62} parent=30 // loop_body
          %177 = vst [vmem:[%s171] sm:$0xff] %v172
          %v178 = vld [vmem:[%s170 + $0x8] sm:$0xff]
          %179 = vst [vmem:[%s171 + $0x8] sm:$0xff] %v178
          %v180 = vld [vmem:[%s170 + $0x10] sm:$0xff]
          %181 = vst [vmem:[%s171 + $0x10] sm:$0xff] %v180
          %v182 = vld [vmem:[%s170 + $0x18] sm:$0xff]
          %183 = vst [vmem:[%s171 + $0x18] sm:$0xff] %v182
          %v184 = vld [vmem:[%s170 + $0x20] sm:$0xff]
          %185 = vst [vmem:[%s171 + $0x20] sm:$0xff] %v184
          %v186 = vld [vmem:[%s170 + $0x28] sm:$0xff]
          %187 = vst [vmem:[%s171 + $0x28] sm:$0xff] %v186
          %v188 = vld [vmem:[%s170 + $0x30] sm:$0xff]
          %189 = vst [vmem:[%s171 + $0x30] sm:$0xff] %v188
          %v190 = vld [vmem:[%s170 + $0x38] sm:$0xff]
          %191 = vst [vmem:[%s171 + $0x38] sm:$0xff] %v190
        $region36: #{custom-call.62} parent=30 // loop_footer
          %s192 = scalar_lea.vmem %s170, 64
          %s193 = scalar_lea.vmem %s171, 64
          %v194 = vld [vmem:[%s170 + $0x40] sm:$0xff]
        $region37: #{custom-call.62} parent=30 // loop_footer_branch
          %195 = sbr.rel target = $region33
        $region38: #{custom-call.62} parent=30 // loop_exit
          _
        // While loop
        $region39: #{custom-call.62} parent=30 // loop_pre_header
          _
        $region40: #{custom-call.62} parent=30 // loop_header
          %s196 = sphi %s170, %s204
          %s197 = sphi %s171, %s205
          %v198 = vphi %v172, %v198
          %p199 = scmp.gt.s32.totalorder %s196, %s168
        $region41: #{custom-call.62} parent=30 // loop_header_branch
          %201 = sbr.rel (%p199) target = $region45
        $region42: #{custom-call.62} parent=30 // loop_body
          %v202 = vld [vmem:[%s196] sm:$0xff]
          %203 = vst [vmem:[%s197] sm:$0xff] %v202
        $region43: #{custom-call.62} parent=30 // loop_footer
          %s204 = scalar_lea.vmem %s196, 8
          %s205 = scalar_lea.vmem %s197, 8
        $region44: #{custom-call.62} parent=30 // loop_footer_branch
          %206 = sbr.rel target = $region40
        $region45: #{custom-call.62} parent=30 // loop_exit
          _
      $region31: #{custom-call.62} parent=26 // pred_fallthru
        _
      %s207 = sand.u32 8, 7
      %s208 = sshll.u32 1, %s207
      %s209 = ssub.s32 %s208, 1
      %s210 = smul.u32 %s160, 128
      %s211 = sshra.s32 %s210, 4
      %s212 = scalar_lea.vmem %s1, %s211
      %s213 = smul.u32 %s160, 128
      %s214 = sshra.s32 %s213, 4
      %s215 = scalar_lea.vmem [#allocation1], %s214
      %v216 = vld [vmem:[%s215] sm:%s209]
      %217 = vst [vmem:[%s212] sm:%s209] %v216
    $region27: #{custom-call.62} parent=1 // pred_fallthru
      _

// kernel: custom-call.59
$region0: #{custom-call.59}
  %s0 = inlined_call_operand.vmem [shape: f32[8,8], index: 0, kind: input, shape index: {}]
  %s1 = inlined_call_operand.vmem [shape: f32[8,8], index: 1, kind: output, shape index: {}]
  $region1: #{custom-call.59} parent=0
    #allocation0 [shape = 'u8[4096]{0}', space=vmem, size = 0x1000, scoped, tag = 'operand span for operand 0']
    #allocation1 [shape = 'u8[4096]{0}', space=vmem, size = 0x1000, scoped, tag = 'operand span for operand 1']
    // Predicated region
    $region2: #{custom-call.59} parent=1 // pred_check
      _
    $region3: #{custom-call.59} parent=1 // pred_check_branch
      %3 = sbr.rel (0) target = $region5
    $region4: #{custom-call.59} parent=1 // pred_region
      // Predicated region
      $region6: #{custom-call.59} parent=4 // pred_check
        _
      $region7: #{custom-call.59} parent=4 // pred_check_branch
        %5 = sbr.rel (0) target = $region9
      $region8: #{custom-call.59} parent=4 // pred_region
        // Predicated region
        $region21: #{custom-call.59} parent=8 // pred_check
          _
        $region22: #{custom-call.59} parent=8 // pred_check_branch
          %21 = sbr.rel (0) target = $region24
        $region23: #{custom-call.59} parent=8 // pred_region
          loop: start=0, step=1, limit=1
          $region25: #{custom-call.59} parent=23 // loop_pre_header
            _
          $region26: #{custom-call.59} parent=23 // loop_header
            %s23 = sphi 0, %s27
            %p24 = scmp.ge.s32.totalorder %s23, 1
            %s28 = sphi %s0, %s0
            %s29 = sphi [#allocation0], [#allocation0]
          $region27: #{custom-call.59} parent=23 // loop_header_branch
            %26 = sbr.rel (%p24) target = $region31
          $region28: #{custom-call.59} parent=23 // loop_body
            %v30 = vld [vmem:[%s28] sm:$0xff]
            %31 = vst [vmem:[%s29] sm:$0xff] %v30
          $region29: #{custom-call.59} parent=23 // loop_footer
            %s27 = sadd.s32 1, %s23
          $region30: #{custom-call.59} parent=23 // loop_footer_branch
            %22 = sbr.rel target = $region26
          $region31: #{custom-call.59} parent=23 // loop_exit
            _
        $region24: #{custom-call.59} parent=8 // pred_fallthru
          _
        // Predicated region
        $region32: #{custom-call.59} parent=8 // pred_check
          _
        $region33: #{custom-call.59} parent=8 // pred_check_branch
          %33 = sbr.rel target = $region35
        $region34: #{custom-call.59} parent=8 // pred_region
          _
        $region35: #{custom-call.59} parent=8 // pred_fallthru
          _
      $region9: #{custom-call.59} parent=4 // pred_fallthru
        _
      // Predicated region
      $region10: #{custom-call.59} parent=4 // pred_check
        _
      $region11: #{custom-call.59} parent=4 // pred_check_branch
        %7 = sbr.rel target = $region13
      $region12: #{custom-call.59} parent=4 // pred_region
        %s9 = ssub.s32 256, 1
        loop: start=0, step=1, limit=1
        $region14: #{custom-call.59} parent=12 // loop_pre_header
          _
        $region15: #{custom-call.59} parent=12 // loop_header
          %s11 = sphi 0, %s15
          %p12 = scmp.ge.s32.totalorder %s11, 1
          %s16 = sphi %s0, %s0
          %s17 = sphi [#allocation0], [#allocation0]
        $region16: #{custom-call.59} parent=12 // loop_header_branch
          %14 = sbr.rel (%p12) target = $region20
        $region17: #{custom-call.59} parent=12 // loop_body
          %v18 = vld [vmem:[%s16] sm:%s9]
          %19 = vst [vmem:[%s17] sm:%s9] %v18
        $region18: #{custom-call.59} parent=12 // loop_footer
          %s15 = sadd.s32 1, %s11
        $region19: #{custom-call.59} parent=12 // loop_footer_branch
          %10 = sbr.rel target = $region15
        $region20: #{custom-call.59} parent=12 // loop_exit
          _
      $region13: #{custom-call.59} parent=4 // pred_fallthru
        _
    $region5: #{custom-call.59} parent=1 // pred_fallthru
      _
    %34 = vnop
    %35 = vst [vmem:[#allocation1] sm:$0xff] 0.0
    %vm36 = vcmask 7168
    %v37 = vld [vmem:[#allocation1] ss:$0 sm:$0xff]
    %v38 = vld [vmem:[#allocation0] ss:$0 sm:$0xff]
    %v39 = vmul.f32 %v37, %v37
    %40 = vadd.xlane.f32.xlu0 %v39
    %v41 = vpop.xlane.xlu0 %40
    %v42 = vsub.f32 %v38, %v41
    %v43 = vrsqrt.pop %v42
    %v44 = vld [vmem:[#allocation0] sm:$0xff]
    %v45 = vld [vmem:[#allocation1] sm:$0xff]
    %v46 = vmul.f32 %v45, %v37
    %47 = vadd.xlane.f32.xlu0 %v46
    %v48 = vpop.xlane.xlu0 %47
    %v49 = vsub.f32 %v44, %v48
    %v50 = vmul.f32 %v49, %v43
    %v51 = vsel %vm36, %v50, 0.0
    %v52 = vadd.f32 %v45, %v51
    %53 = vst [vmem:[#allocation1] sm:$0xff] %v52
    %vm54 = vcmask 15368
    %s55 = scalar_lea.vmem [#allocation1], 1
    %v56 = vld [vmem:[%s55] ss:$0 sm:$0xff]
    %s57 = scalar_lea.vmem [#allocation0], 1
    %v58 = vld [vmem:[%s57] ss:$0 sm:$0xff]
    %v59 = vmul.f32 %v56, %v56
    %60 = vadd.xlane.f32.xlu0 %v59
    %v61 = vpop.xlane.xlu0 %60
    %v62 = vsub.f32 %v58, %v61
    %v63 = vrsqrt.pop %v62
    %v64 = vld [vmem:[#allocation0] sm:$0xff]
    %v65 = vld [vmem:[#allocation1] sm:$0xff]
    %v66 = vmul.f32 %v65, %v56
    %67 = vadd.xlane.f32.xlu0 %v66
    %v68 = vpop.xlane.xlu0 %67
    %v69 = vsub.f32 %v64, %v68
    %v70 = vmul.f32 %v69, %v63
    %vm71 = vcmask 1047553
    %vm72 = vmand %vm54, %vm71
    %v73 = vsel %vm72, %v70, 0.0
    %v74 = vadd.f32 %v65, %v73
    %75 = vst [vmem:[#allocation1] sm:$0xff] %v74
    %vm76 = vcmask 23568
    %s77 = scalar_lea.vmem [#allocation1], 2
    %v78 = vld [vmem:[%s77] ss:$0 sm:$0xff]
    %s79 = scalar_lea.vmem [#allocation0], 2
    %v80 = vld [vmem:[%s79] ss:$0 sm:$0xff]
    %v81 = vmul.f32 %v78, %v78
    %82 = vadd.xlane.f32.xlu0 %v81
    %v83 = vpop.xlane.xlu0 %82
    %v84 = vsub.f32 %v80, %v83
    %v85 = vrsqrt.pop %v84
    %v86 = vld [vmem:[#allocation0] sm:$0xff]
    %v87 = vld [vmem:[#allocation1] sm:$0xff]
    %v88 = vmul.f32 %v87, %v78
    %89 = vadd.xlane.f32.xlu0 %v88
    %v90 = vpop.xlane.xlu0 %89
    %v91 = vsub.f32 %v86, %v90
    %v92 = vmul.f32 %v91, %v85
    %vm93 = vcmask 1047554
    %vm94 = vmand %vm76, %vm93
    %v95 = vsel %vm94, %v92, 0.0
    %v96 = vadd.f32 %v87, %v95
    %97 = vst [vmem:[#allocation1] sm:$0xff] %v96
    %vm98 = vcmask 31768
    %s99 = scalar_lea.vmem [#allocation1], 3
    %v100 = vld [vmem:[%s99] ss:$0 sm:$0xff]
    %s101 = scalar_lea.vmem [#allocation0], 3
    %v102 = vld [vmem:[%s101] ss:$0 sm:$0xff]
    %v103 = vmul.f32 %v100, %v100
    %104 = vadd.xlane.f32.xlu0 %v103
    %v105 = vpop.xlane.xlu0 %104
    %v106 = vsub.f32 %v102, %v105
    %v107 = vrsqrt.pop %v106
    %v108 = vld [vmem:[#allocation0] sm:$0xff]
    %v109 = vld [vmem:[#allocation1] sm:$0xff]
    %v110 = vmul.f32 %v109, %v100
    %111 = vadd.xlane.f32.xlu0 %v110
    %v112 = vpop.xlane.xlu0 %111
    %v113 = vsub.f32 %v108, %v112
    %v114 = vmul.f32 %v113, %v107
    %vm115 = vcmask 1047555
    %vm116 = vmand %vm98, %vm115
    %v117 = vsel %vm116, %v114, 0.0
    %v118 = vadd.f32 %v109, %v117
    %119 = vst [vmem:[#allocation1] sm:$0xff] %v118
    %vm120 = vcmask 39968
    %s121 = scalar_lea.vmem [#allocation1], 4
    %v122 = vld [vmem:[%s121] ss:$0 sm:$0xff]
    %s123 = scalar_lea.vmem [#allocation0], 4
    %v124 = vld [vmem:[%s123] ss:$0 sm:$0xff]
    %v125 = vmul.f32 %v122, %v122
    %126 = vadd.xlane.f32.xlu0 %v125
    %v127 = vpop.xlane.xlu0 %126
    %v128 = vsub.f32 %v124, %v127
    %v129 = vrsqrt.pop %v128
    %v130 = vld [vmem:[#allocation0] sm:$0xff]
    %v131 = vld [vmem:[#allocation1] sm:$0xff]
    %v132 = vmul.f32 %v131, %v122
    %133 = vadd.xlane.f32.xlu0 %v132
    %v134 = vpop.xlane.xlu0 %133
    %v135 = vsub.f32 %v130, %v134
    %v136 = vmul.f32 %v135, %v129
    %vm137 = vcmask 1047556
    %vm138 = vmand %vm120, %vm137
    %v139 = vsel %vm138, %v136, 0.0
    %v140 = vadd.f32 %v131, %v139
    %141 = vst [vmem:[#allocation1] sm:$0xff] %v140
    %vm142 = vcmask 48168
    %s143 = scalar_lea.vmem [#allocation1], 5
    %v144 = vld [vmem:[%s143] ss:$0 sm:$0xff]
    %s145 = scalar_lea.vmem [#allocation0], 5
    %v146 = vld [vmem:[%s145] ss:$0 sm:$0xff]
    %v147 = vmul.f32 %v144, %v144
    %148 = vadd.xlane.f32.xlu0 %v147
    %v149 = vpop.xlane.xlu0 %148
    %v150 = vsub.f32 %v146, %v149
    %v151 = vrsqrt.pop %v150
    %v152 = vld [vmem:[#allocation0] sm:$0xff]
    %v153 = vld [vmem:[#allocation1] sm:$0xff]
    %v154 = vmul.f32 %v153, %v144
    %155 = vadd.xlane.f32.xlu0 %v154
    %v156 = vpop.xlane.xlu0 %155
    %v157 = vsub.f32 %v152, %v156
    %v158 = vmul.f32 %v157, %v151
    %vm159 = vcmask 1047557
    %vm160 = vmand %vm142, %vm159
    %v161 = vsel %vm160, %v158, 0.0
    %v162 = vadd.f32 %v153, %v161
    %163 = vst [vmem:[#allocation1] sm:$0xff] %v162
    %vm164 = vcmask 56368
    %s165 = scalar_lea.vmem [#allocation1], 6
    %v166 = vld [vmem:[%s165] ss:$0 sm:$0xff]
    %s167 = scalar_lea.vmem [#allocation0], 6
    %v168 = vld [vmem:[%s167] ss:$0 sm:$0xff]
    %v169 = vmul.f32 %v166, %v166
    %170 = vadd.xlane.f32.xlu0 %v169
    %v171 = vpop.xlane.xlu0 %170
    %v172 = vsub.f32 %v168, %v171
    %v173 = vrsqrt.pop %v172
    %v174 = vld [vmem:[#allocation0] sm:$0xff]
    %v175 = vld [vmem:[#allocation1] sm:$0xff]
    %v176 = vmul.f32 %v175, %v166
    %177 = vadd.xlane.f32.xlu0 %v176
    %v178 = vpop.xlane.xlu0 %177
    %v179 = vsub.f32 %v174, %v178
    %v180 = vmul.f32 %v179, %v173
    %vm181 = vcmask 1047558
    %vm182 = vmand %vm164, %vm181
    %v183 = vsel %vm182, %v180, 0.0
    %v184 = vadd.f32 %v175, %v183
    %185 = vst [vmem:[#allocation1] sm:$0xff] %v184
    %vm186 = vcmask 64568
    %s187 = scalar_lea.vmem [#allocation1], 7
    %v188 = vld [vmem:[%s187] ss:$0 sm:$0xff]
    %s189 = scalar_lea.vmem [#allocation0], 7
    %v190 = vld [vmem:[%s189] ss:$0 sm:$0xff]
    %v191 = vmul.f32 %v188, %v188
    %192 = vadd.xlane.f32.xlu0 %v191
    %v193 = vpop.xlane.xlu0 %192
    %v194 = vsub.f32 %v190, %v193
    %v195 = vrsqrt.pop %v194
    %v196 = vld [vmem:[#allocation0] sm:$0xff]
    %v197 = vld [vmem:[#allocation1] sm:$0xff]
    %v198 = vmul.f32 %v197, %v188
    %199 = vadd.xlane.f32.xlu0 %v198
    %v200 = vpop.xlane.xlu0 %199
    %v201 = vsub.f32 %v196, %v200
    %v202 = vmul.f32 %v201, %v195
    %vm203 = vcmask 1047559
    %vm204 = vmand %vm186, %vm203
    %v205 = vsel %vm204, %v202, 0.0
    %v206 = vadd.f32 %v197, %v205
    %207 = vst [vmem:[#allocation1] sm:$0xff] %v206
    // Predicated region
    $region36: #{custom-call.59} parent=1 // pred_check
      _
    $region37: #{custom-call.59} parent=1 // pred_check_branch
      %209 = sbr.rel (0) target = $region39
    $region38: #{custom-call.59} parent=1 // pred_region
      // Predicated region
      $region40: #{custom-call.59} parent=38 // pred_check
        _
      $region41: #{custom-call.59} parent=38 // pred_check_branch
        %211 = sbr.rel (0) target = $region43
      $region42: #{custom-call.59} parent=38 // pred_region
        // Predicated region
        $region55: #{custom-call.59} parent=42 // pred_check
          _
        $region56: #{custom-call.59} parent=42 // pred_check_branch
          %227 = sbr.rel (0) target = $region58
        $region57: #{custom-call.59} parent=42 // pred_region
          loop: start=0, step=1, limit=1
          $region59: #{custom-call.59} parent=57 // loop_pre_header
            _
          $region60: #{custom-call.59} parent=57 // loop_header
            %s229 = sphi 0, %s233
            %p230 = scmp.ge.s32.totalorder %s229, 1
            %s234 = sphi [#allocation1], [#allocation1]
            %s235 = sphi %s1, %s1
          $region61: #{custom-call.59} parent=57 // loop_header_branch
            %232 = sbr.rel (%p230) target = $region65
          $region62: #{custom-call.59} parent=57 // loop_body
            %v236 = vld [vmem:[%s234] sm:$0xff]
            %237 = vst [vmem:[%s235] sm:$0xff] %v236
          $region63: #{custom-call.59} parent=57 // loop_footer
            %s233 = sadd.s32 1, %s229
          $region64: #{custom-call.59} parent=57 // loop_footer_branch
            %228 = sbr.rel target = $region60
          $region65: #{custom-call.59} parent=57 // loop_exit
            _
        $region58: #{custom-call.59} parent=42 // pred_fallthru
          _
        // Predicated region
        $region66: #{custom-call.59} parent=42 // pred_check
          _
        $region67: #{custom-call.59} parent=42 // pred_check_branch
          %239 = sbr.rel target = $region69
        $region68: #{custom-call.59} parent=42 // pred_region
          _
        $region69: #{custom-call.59} parent=42 // pred_fallthru
          _
      $region43: #{custom-call.59} parent=38 // pred_fallthru
        _
      // Predicated region
      $region44: #{custom-call.59} parent=38 // pred_check
        _
      $region45: #{custom-call.59} parent=38 // pred_check_branch
        %213 = sbr.rel target = $region47
      $region46: #{custom-call.59} parent=38 // pred_region
        %s215 = ssub.s32 256, 1
        loop: start=0, step=1, limit=1
        $region48: #{custom-call.59} parent=46 // loop_pre_header
          _
        $region49: #{custom-call.59} parent=46 // loop_header
          %s217 = sphi 0, %s221
          %p218 = scmp.ge.s32.totalorder %s217, 1
          %s222 = sphi [#allocation1], [#allocation1]
          %s223 = sphi %s1, %s1
        $region50: #{custom-call.59} parent=46 // loop_header_branch
          %220 = sbr.rel (%p218) target = $region54
        $region51: #{custom-call.59} parent=46 // loop_body
          %v224 = vld [vmem:[%s222] sm:%s215]
          %225 = vst [vmem:[%s223] sm:%s215] %v224
        $region52: #{custom-call.59} parent=46 // loop_footer
          %s221 = sadd.s32 1, %s217
        $region53: #{custom-call.59} parent=46 // loop_footer_branch
          %216 = sbr.rel target = $region49
        $region54: #{custom-call.59} parent=46 // loop_exit
          _
      $region47: #{custom-call.59} parent=38 // pred_fallthru
        _
    $region39: #{custom-call.59} parent=1 // pred_fallthru
      _
    %240 = vnop

// kernel: custom-call.60
$region0: #{custom-call.60}
  %s0 = inlined_call_operand.vmem [shape: f32[1,8,8], index: 0, kind: input, shape index: {}]
  %s1 = inlined_call_operand.vmem [shape: f32[1,8,8], index: 1, kind: output, shape index: {}]
  $region1: #{custom-call.60} parent=0
    #allocation0 [shape = 'u8[4096]{0}', space=vmem, size = 0x1000, scoped, tag = 'operand span for operand 0']
    #allocation1 [shape = 'u8[4096]{0}', space=vmem, size = 0x1000, scoped, tag = 'operand span for operand 1']
    #allocation2 [shape = 'f32[8,8]{1,0}', space=vmem, size = 0x1000, scoped, tag = 'rescaled input a']
    // Predicated region
    $region2: #{custom-call.60} parent=1 // pred_check
      _
    $region3: #{custom-call.60} parent=1 // pred_check_branch
      %3 = sbr.rel (0) target = $region5
    $region4: #{custom-call.60} parent=1 // pred_region
      // Predicated region
      $region6: #{custom-call.60} parent=4 // pred_check
        _
      $region7: #{custom-call.60} parent=4 // pred_check_branch
        %5 = sbr.rel (0) target = $region9
      $region8: #{custom-call.60} parent=4 // pred_region
        // Predicated region
        $region21: #{custom-call.60} parent=8 // pred_check
          _
        $region22: #{custom-call.60} parent=8 // pred_check_branch
          %21 = sbr.rel (0) target = $region24
        $region23: #{custom-call.60} parent=8 // pred_region
          loop: start=0, step=1, limit=1
          $region25: #{custom-call.60} parent=23 // loop_pre_header
            _
          $region26: #{custom-call.60} parent=23 // loop_header
            %s23 = sphi 0, %s27
            %p24 = scmp.ge.s32.totalorder %s23, 1
            %s28 = sphi %s0, %s0
            %s29 = sphi [#allocation0], [#allocation0]
          $region27: #{custom-call.60} parent=23 // loop_header_branch
            %26 = sbr.rel (%p24) target = $region31
          $region28: #{custom-call.60} parent=23 // loop_body
            %v30 = vld [vmem:[%s28] sm:$0xff]
            %31 = vst [vmem:[%s29] sm:$0xff] %v30
          $region29: #{custom-call.60} parent=23 // loop_footer
            %s27 = sadd.s32 1, %s23
          $region30: #{custom-call.60} parent=23 // loop_footer_branch
            %22 = sbr.rel target = $region26
          $region31: #{custom-call.60} parent=23 // loop_exit
            _
        $region24: #{custom-call.60} parent=8 // pred_fallthru
          _
        // Predicated region
        $region32: #{custom-call.60} parent=8 // pred_check
          _
        $region33: #{custom-call.60} parent=8 // pred_check_branch
          %33 = sbr.rel target = $region35
        $region34: #{custom-call.60} parent=8 // pred_region
          _
        $region35: #{custom-call.60} parent=8 // pred_fallthru
          _
      $region9: #{custom-call.60} parent=4 // pred_fallthru
        _
      // Predicated region
      $region10: #{custom-call.60} parent=4 // pred_check
        _
      $region11: #{custom-call.60} parent=4 // pred_check_branch
        %7 = sbr.rel target = $region13
      $region12: #{custom-call.60} parent=4 // pred_region
        %s9 = ssub.s32 256, 1
        loop: start=0, step=1, limit=1
        $region14: #{custom-call.60} parent=12 // loop_pre_header
          _
        $region15: #{custom-call.60} parent=12 // loop_header
          %s11 = sphi 0, %s15
          %p12 = scmp.ge.s32.totalorder %s11, 1
          %s16 = sphi %s0, %s0
          %s17 = sphi [#allocation0], [#allocation0]
        $region16: #{custom-call.60} parent=12 // loop_header_branch
          %14 = sbr.rel (%p12) target = $region20
        $region17: #{custom-call.60} parent=12 // loop_body
          %v18 = vld [vmem:[%s16] sm:%s9]
          %19 = vst [vmem:[%s17] sm:%s9] %v18
        $region18: #{custom-call.60} parent=12 // loop_footer
          %s15 = sadd.s32 1, %s11
        $region19: #{custom-call.60} parent=12 // loop_footer_branch
          %10 = sbr.rel target = $region15
        $region20: #{custom-call.60} parent=12 // loop_exit
          _
      $region13: #{custom-call.60} parent=4 // pred_fallthru
        _
    $region5: #{custom-call.60} parent=1 // pred_fallthru
      _
    %34 = vnop
    %v35 = vlaneseq
    %v36 = vand.u32 %v35, 127
    %vm37 = vcmp.lt.s32.totalorder %v36, 8
    %v38 = vlaneseq
    %v39 = vshrl.u32 %v38, 7
    %vm41 = vcmp.eq.s32.totalorder %v39, %v36
    %v42 = vld [vmem:[#allocation0] sm:$0xff]
    %v43 = vsel %vm41, %v42, 0.0
    %44 = vadd.xlane.f32.xlu0 %v43
    %v45 = vpop.xlane.xlu0 %44
    %vm46 = vcmp.ge.s32.totalorder %v39, %v36
    %vm47 = vmand %vm46, %vm37
    %v48 = vsel %vm47, %v42, 0.0
    %v49 = vrcp.pop %v45
    %v50 = vmul.f32 %v48, %v49
    %51 = vst [vmem:[#allocation2] sm:$0xff] %v50
    %v52 = vlaneseq
    %v53 = vand.u32 %v52, 127
    %v54 = vlaneseq
    %v55 = vshrl.u32 %v54, 7
    %vm57 = vcmp.eq.s32.totalorder %v53, %v55
    %v58 = vlaneseq
    %v59 = vand.u32 %v58, 127
    %vm60 = vcmp.eq.s32.totalorder %v59, 0
    %v61 = vsel %vm60, 1.0, -1.0
    %v62 = vsel %vm57, %v61, 0.0
    %s63 = scalar_lea.vmem [#allocation2], 1
    %v64 = vld [vmem:[%s63] ss:$0 sm:$0xff]
    %v65 = vxor.u32 %v64, 2147483648
    %v66 = vlaneseq
    %v67 = vand.u32 %v66, 127
    %vm68 = vcmp.eq.s32.totalorder %v67, 1
    %v69 = vmul.f32 %v65, %v62
    %70 = vadd.xlane.f32.xlu0 %v69
    %v71 = vpop.xlane.xlu0 %70
    %v72 = vsel %vm68, %v71, %v62
    %s73 = scalar_lea.vmem [#allocation2], 2
    %v74 = vld [vmem:[%s73] ss:$0 sm:$0xff]
    %v75 = vxor.u32 %v74, 2147483648
    %v76 = vlaneseq
    %v77 = vand.u32 %v76, 127
    %vm78 = vcmp.eq.s32.totalorder %v77, 2
    %v79 = vmul.f32 %v75, %v72
    %80 = vadd.xlane.f32.xlu0 %v79
    %v81 = vpop.xlane.xlu0 %80
    %v82 = vsel %vm78, %v81, %v72
    %s83 = scalar_lea.vmem [#allocation2], 3
    %v84 = vld [vmem:[%s83] ss:$0 sm:$0xff]
    %v85 = vxor.u32 %v84, 2147483648
    %v86 = vlaneseq
    %v87 = vand.u32 %v86, 127
    %vm88 = vcmp.eq.s32.totalorder %v87, 3
    %v89 = vmul.f32 %v85, %v82
    %90 = vadd.xlane.f32.xlu0 %v89
    %v91 = vpop.xlane.xlu0 %90
    %v92 = vsel %vm88, %v91, %v82
    %s93 = scalar_lea.vmem [#allocation2], 4
    %v94 = vld [vmem:[%s93] ss:$0 sm:$0xff]
    %v95 = vxor.u32 %v94, 2147483648
    %v96 = vlaneseq
    %v97 = vand.u32 %v96, 127
    %vm98 = vcmp.eq.s32.totalorder %v97, 4
    %v99 = vmul.f32 %v95, %v92
    %100 = vadd.xlane.f32.xlu0 %v99
    %v101 = vpop.xlane.xlu0 %100
    %v102 = vsel %vm98, %v101, %v92
    %s103 = scalar_lea.vmem [#allocation2], 5
    %v104 = vld [vmem:[%s103] ss:$0 sm:$0xff]
    %v105 = vxor.u32 %v104, 2147483648
    %v106 = vlaneseq
    %v107 = vand.u32 %v106, 127
    %vm108 = vcmp.eq.s32.totalorder %v107, 5
    %v109 = vmul.f32 %v105, %v102
    %110 = vadd.xlane.f32.xlu0 %v109
    %v111 = vpop.xlane.xlu0 %110
    %v112 = vsel %vm108, %v111, %v102
    %s113 = scalar_lea.vmem [#allocation2], 6
    %v114 = vld [vmem:[%s113] ss:$0 sm:$0xff]
    %v115 = vxor.u32 %v114, 2147483648
    %v116 = vlaneseq
    %v117 = vand.u32 %v116, 127
    %vm118 = vcmp.eq.s32.totalorder %v117, 6
    %v119 = vmul.f32 %v115, %v112
    %120 = vadd.xlane.f32.xlu0 %v119
    %v121 = vpop.xlane.xlu0 %120
    %v122 = vsel %vm118, %v121, %v112
    %s123 = scalar_lea.vmem [#allocation2], 7
    %v124 = vld [vmem:[%s123] ss:$0 sm:$0xff]
    %v125 = vxor.u32 %v124, 2147483648
    %v126 = vlaneseq
    %v127 = vand.u32 %v126, 127
    %vm128 = vcmp.eq.s32.totalorder %v127, 7
    %v129 = vmul.f32 %v125, %v122
    %130 = vadd.xlane.f32.xlu0 %v129
    %v131 = vpop.xlane.xlu0 %130
    %v132 = vsel %vm128, %v131, %v122
    %v133 = vrcp.pop %v45
    %v134 = vmul.f32 %v132, %v133
    %vm135 = vweird.f32 %v45
    %v136 = vsel %vm135, %v132, %v134
    %137 = vst [vmem:[#allocation1] sm:$0xff] %v136
    // Predicated region
    $region36: #{custom-call.60} parent=1 // pred_check
      _
    $region37: #{custom-call.60} parent=1 // pred_check_branch
      %139 = sbr.rel (0) target = $region39
    $region38: #{custom-call.60} parent=1 // pred_region
      // Predicated region
      $region40: #{custom-call.60} parent=38 // pred_check
        _
      $region41: #{custom-call.60} parent=38 // pred_check_branch
        %141 = sbr.rel (0) target = $region43
      $region42: #{custom-call.60} parent=38 // pred_region
        // Predicated region
        $region55: #{custom-call.60} parent=42 // pred_check
          _
        $region56: #{custom-call.60} parent=42 // pred_check_branch
          %157 = sbr.rel (0) target = $region58
        $region57: #{custom-call.60} parent=42 // pred_region
          loop: start=0, step=1, limit=1
          $region59: #{custom-call.60} parent=57 // loop_pre_header
            _
          $region60: #{custom-call.60} parent=57 // loop_header
            %s159 = sphi 0, %s163
            %p160 = scmp.ge.s32.totalorder %s159, 1
            %s164 = sphi [#allocation1], [#allocation1]
            %s165 = sphi %s1, %s1
          $region61: #{custom-call.60} parent=57 // loop_header_branch
            %162 = sbr.rel (%p160) target = $region65
          $region62: #{custom-call.60} parent=57 // loop_body
            %v166 = vld [vmem:[%s164] sm:$0xff]
            %167 = vst [vmem:[%s165] sm:$0xff] %v166
          $region63: #{custom-call.60} parent=57 // loop_footer
            %s163 = sadd.s32 1, %s159
          $region64: #{custom-call.60} parent=57 // loop_footer_branch
            %158 = sbr.rel target = $region60
          $region65: #{custom-call.60} parent=57 // loop_exit
            _
        $region58: #{custom-call.60} parent=42 // pred_fallthru
          _
        // Predicated region
        $region66: #{custom-call.60} parent=42 // pred_check
          _
        $region67: #{custom-call.60} parent=42 // pred_check_branch
          %169 = sbr.rel target = $region69
        $region68: #{custom-call.60} parent=42 // pred_region
          _
        $region69: #{custom-call.60} parent=42 // pred_fallthru
          _
      $region43: #{custom-call.60} parent=38 // pred_fallthru
        _
      // Predicated region
      $region44: #{custom-call.60} parent=38 // pred_check
        _
      $region45: #{custom-call.60} parent=38 // pred_check_branch
        %143 = sbr.rel target = $region47
      $region46: #{custom-call.60} parent=38 // pred_region
        %s145 = ssub.s32 256, 1
        loop: start=0, step=1, limit=1
        $region48: #{custom-call.60} parent=46 // loop_pre_header
          _
        $region49: #{custom-call.60} parent=46 // loop_header
          %s147 = sphi 0, %s151
          %p148 = scmp.ge.s32.totalorder %s147, 1
          %s152 = sphi [#allocation1], [#allocation1]
          %s153 = sphi %s1, %s1
        $region50: #{custom-call.60} parent=46 // loop_header_branch
          %150 = sbr.rel (%p148) target = $region54
        $region51: #{custom-call.60} parent=46 // loop_body
          %v154 = vld [vmem:[%s152] sm:%s145]
          %155 = vst [vmem:[%s153] sm:%s145] %v154
        $region52: #{custom-call.60} parent=46 // loop_footer
          %s151 = sadd.s32 1, %s147
        $region53: #{custom-call.60} parent=46 // loop_footer_branch
          %146 = sbr.rel target = $region49
        $region54: #{custom-call.60} parent=46 // loop_exit
          _
      $region47: #{custom-call.60} parent=38 // pred_fallthru
        _
    $region39: #{custom-call.60} parent=1 // pred_fallthru
      _
    %170 = vnop

// kernel: custom-call.23
$region0: #{custom-call.23}
  %s0 = inlined_call_operand.vmem [shape: f32[4,4], index: 0, kind: input, shape index: {}]
  %s1 = inlined_call_operand.vmem [shape: f32[4,4], index: 1, kind: input, shape index: {}]
  %s2 = inlined_call_operand.vmem [shape: f32[4,4], index: 2, kind: input, shape index: {}]
  %s3 = inlined_call_operand.vmem [shape: f32[4,4], index: 3, kind: input, shape index: {}]
  %s4 = inlined_call_operand.vmem [shape: f32[4], index: 4, kind: output, shape index: {0}]
  %s5 = inlined_call_operand.vmem [shape: f32[4], index: 5, kind: output, shape index: {1}]
  %s6 = inlined_call_operand.vmem [shape: f32[4,4], index: 6, kind: output, shape index: {2}]
  %s7 = inlined_call_operand.vmem [shape: f32[4,4], index: 7, kind: output, shape index: {3}]
  %s8 = inlined_call_operand.vmem [shape: f32[4,4], index: 8, kind: output, shape index: {4}]
  %s9 = inlined_call_operand.vmem [shape: f32[4,4], index: 9, kind: output, shape index: {5}]
  %10 = xla_tuple %s4, %s5, %s6, %s7, %s8, %s9
  $region1: #{custom-call.23} parent=0
    #allocation0 [shape = 'u8[4096]{0}', space=vmem, size = 0x1000, scoped, tag = 'operand span for operand 0']
    #allocation1 [shape = 'u8[2048]{0}', space=vmem, size = 0x800, scoped, tag = 'packed  for operand 0']
    #allocation2 [shape = 'u8[4096]{0}', space=vmem, size = 0x1000, scoped, tag = 'operand span for operand 1']
    #allocation3 [shape = 'u8[2048]{0}', space=vmem, size = 0x800, scoped, tag = 'packed  for operand 1']
    #allocation4 [shape = 'u8[4096]{0}', space=vmem, size = 0x1000, scoped, tag = 'operand span for operand 2']
    #allocation5 [shape = 'u8[2048]{0}', space=vmem, size = 0x800, scoped, tag = 'packed  for operand 2']
    #allocation6 [shape = 'u8[4096]{0}', space=vmem, size = 0x1000, scoped, tag = 'operand span for operand 3']
    #allocation7 [shape = 'u8[2048]{0}', space=vmem, size = 0x800, scoped, tag = 'packed  for operand 3']
    #allocation8 [shape = 'u8[4096]{0}', space=vmem, size = 0x1000, scoped, tag = 'operand span for operand 4']
    #allocation9 [shape = 'u8[512]{0}', space=vmem, size = 0x400, scoped, tag = 'packed  for operand 4']
    #allocation10 [shape = 'u8[4096]{0}', space=vmem, size = 0x1000, scoped, tag = 'operand span for operand 5']
    #allocation11 [shape = 'u8[512]{0}', space=vmem, size = 0x400, scoped, tag = 'packed  for operand 5']
    #allocation12 [shape = 'u8[4096]{0}', space=vmem, size = 0x1000, scoped, tag = 'operand span for operand 6']
    #allocation13 [shape = 'u8[2048]{0}', space=vmem, size = 0x800, scoped, tag = 'packed  for operand 6']
    #allocation14 [shape = 'u8[4096]{0}', space=vmem, size = 0x1000, scoped, tag = 'operand span for operand 7']
    #allocation15 [shape = 'u8[2048]{0}', space=vmem, size = 0x800, scoped, tag = 'packed  for operand 7']
    #allocation16 [shape = 'u8[4096]{0}', space=vmem, size = 0x1000, scoped, tag = 'operand span for operand 8']
    #allocation17 [shape = 'u8[2048]{0}', space=vmem, size = 0x800, scoped, tag = 'packed  for operand 8']
    #allocation18 [shape = 'u8[4096]{0}', space=vmem, size = 0x1000, scoped, tag = 'operand span for operand 9']
    #allocation19 [shape = 'u8[2048]{0}', space=vmem, size = 0x800, scoped, tag = 'packed  for operand 9']
    #allocation20 [shape = 'f32[4,4]{1,0}', space=vmem, size = 0x1000, scoped, tag = 'a top-left matrix']
    #allocation21 [shape = 'f32[4,4]{1,0}', space=vmem, size = 0x1000, scoped, tag = 'a top-right matrix']
    #allocation22 [shape = 'f32[4,4]{1,0}', space=vmem, size = 0x1000, scoped, tag = 'a bottom-left matrix']
    #allocation23 [shape = 'f32[4,4]{1,0}', space=vmem, size = 0x1000, scoped, tag = 'a bottom-right matrix']
    %p12 = scmp.gt.s32.totalorder 4, 0
    // Predicated region
    $region2: #{custom-call.23} parent=1 // pred_check
      %p13 = pneg %p12
    $region3: #{custom-call.23} parent=1 // pred_check_branch
      %15 = sbr.rel (%p13) target = $region5
    $region4: #{custom-call.23} parent=1 // pred_region
      %s16 = sshra.s32 4, 3
      %p17 = scmp.gt.s32.totalorder %s16, 0
      // Predicated region
      $region6: #{custom-call.23} parent=4 // pred_check
        %p18 = pneg %p17
      $region7: #{custom-call.23} parent=4 // pred_check_branch
        %20 = sbr.rel (%p18) target = $region9
      $region8: #{custom-call.23} parent=4 // pred_region
        %s21 = ssub.s32 %s16, 1
        %s22 = smul.u32 %s21, 128
        %s23 = sshra.s32 %s22, 4
        %s24 = scalar_lea.vmem %s0, %s23
        %v25 = vld [vmem:[%s0] sm:$0xff]
        // While loop
        $region10: #{custom-call.23} parent=8 // loop_pre_header
          _
        $region11: #{custom-call.23} parent=8 // loop_header
          %s26 = sphi %s0, %s48
          %s27 = sphi [#allocation1], %s49
          %v28 = vphi %v25, %v50
          %s29 = ssub.s32 %s24, 64
          %p30 = scmp.gt.s32.totalorder %s26, %s29
        $region12: #{custom-call.23} parent=8 // loop_header_branch
          %32 = sbr.rel (%p30) target = $region16
        $region13: #{custom-call.23} parent=8 // loop_body
          %33 = vst [vmem:[%s27] sm:$0xff] %v28
          %v34 = vld [vmem:[%s26 + $0x8] sm:$0xff]
          %35 = vst [vmem:[%s27 + $0x8] sm:$0xff] %v34
          %v36 = vld [vmem:[%s26 + $0x10] sm:$0xff]
          %37 = vst [vmem:[%s27 + $0x10] sm:$0xff] %v36
          %v38 = vld [vmem:[%s26 + $0x18] sm:$0xff]
          %39 = vst [vmem:[%s27 + $0x18] sm:$0xff] %v38
          %v40 = vld [vmem:[%s26 + $0x20] sm:$0xff]
          %41 = vst [vmem:[%s27 + $0x20] sm:$0xff] %v40
          %v42 = vld [vmem:[%s26 + $0x28] sm:$0xff]
          %43 = vst [vmem:[%s27 + $0x28] sm:$0xff] %v42
          %v44 = vld [vmem:[%s26 + $0x30] sm:$0xff]
          %45 = vst [vmem:[%s27 + $0x30] sm:$0xff] %v44
          %v46 = vld [vmem:[%s26 + $0x38] sm:$0xff]
          %47 = vst [vmem:[%s27 + $0x38] sm:$0xff] %v46
        $region14: #{custom-call.23} parent=8 // loop_footer
          %s48 = scalar_lea.vmem %s26, 64
          %s49 = scalar_lea.vmem %s27, 64
          %v50 = vld [vmem:[%s26 + $0x40] sm:$0xff]
        $region15: #{custom-call.23} parent=8 // loop_footer_branch
          %51 = sbr.rel target = $region11
        $region16: #{custom-call.23} parent=8 // loop_exit
          _
        // While loop
        $region17: #{custom-call.23} parent=8 // loop_pre_header
          _
        $region18: #{custom-call.23} parent=8 // loop_header
          %s52 = sphi %s26, %s60
          %s53 = sphi %s27, %s61
          %v54 = vphi %v28, %v54
          %p55 = scmp.gt.s32.totalorder %s52, %s24
        $region19: #{custom-call.23} parent=8 // loop_header_branch
          %57 = sbr.rel (%p55) target = $region23
        $region20: #{custom-call.23} parent=8 // loop_body
          %v58 = vld [vmem:[%s52] sm:$0xff]
          %59 = vst [vmem:[%s53] sm:$0xff] %v58
        $region21: #{custom-call.23} parent=8 // loop_footer
          %s60 = scalar_lea.vmem %s52, 8
          %s61 = scalar_lea.vmem %s53, 8
        $region22: #{custom-call.23} parent=8 // loop_footer_branch
          %62 = sbr.rel target = $region18
        $region23: #{custom-call.23} parent=8 // loop_exit
          _
      $region9: #{custom-call.23} parent=4 // pred_fallthru
        _
      %s63 = sand.u32 4, 7
      %s64 = sshll.u32 1, %s63
      %s65 = ssub.s32 %s64, 1
      %s66 = smul.u32 %s16, 128
      %s67 = sshra.s32 %s66, 4
      %s68 = scalar_lea.vmem [#allocation1], %s67
      %s69 = smul.u32 %s16, 128
      %s70 = sshra.s32 %s69, 4
      %s71 = scalar_lea.vmem %s0, %s70
      %v72 = vld [vmem:[%s71] sm:%s65]
      %73 = vst [vmem:[%s68] sm:%s65] %v72
    $region5: #{custom-call.23} parent=1 // pred_fallthru
      _
    %p75 = scmp.gt.s32.totalorder 4, 0
    // Predicated region
    $region24: #{custom-call.23} parent=1 // pred_check
      %p76 = pneg %p75
    $region25: #{custom-call.23} parent=1 // pred_check_branch
      %78 = sbr.rel (%p76) target = $region27
    $region26: #{custom-call.23} parent=1 // pred_region
      %s79 = sshra.s32 4, 3
      %p80 = scmp.gt.s32.totalorder %s79, 0
      // Predicated region
      $region28: #{custom-call.23} parent=26 // pred_check
        %p81 = pneg %p80
      $region29: #{custom-call.23} parent=26 // pred_check_branch
        %83 = sbr.rel (%p81) target = $region31
      $region30: #{custom-call.23} parent=26 // pred_region
        %s84 = ssub.s32 %s79, 1
        %s85 = smul.u32 %s84, 128
        %s86 = sshra.s32 %s85, 4
        %s87 = scalar_lea.vmem %s1, %s86
        %v88 = vld [vmem:[%s1] sm:$0xff]
        // While loop
        $region32: #{custom-call.23} parent=30 // loop_pre_header
          _
        $region33: #{custom-call.23} parent=30 // loop_header
          %s89 = sphi %s1, %s111
          %s90 = sphi [#allocation3], %s112
          %v91 = vphi %v88, %v113
          %s92 = ssub.s32 %s87, 64
          %p93 = scmp.gt.s32.totalorder %s89, %s92
        $region34: #{custom-call.23} parent=30 // loop_header_branch
          %95 = sbr.rel (%p93) target = $region38
        $region35: #{custom-call.23} parent=30 // loop_body
          %96 = vst [vmem:[%s90] sm:$0xff] %v91
          %v97 = vld [vmem:[%s89 + $0x8] sm:$0xff]
          %98 = vst [vmem:[%s90 + $0x8] sm:$0xff] %v97
          %v99 = vld [vmem:[%s89 + $0x10] sm:$0xff]
          %100 = vst [vmem:[%s90 + $0x10] sm:$0xff] %v99
          %v101 = vld [vmem:[%s89 + $0x18] sm:$0xff]
          %102 = vst [vmem:[%s90 + $0x18] sm:$0xff] %v101
          %v103 = vld [vmem:[%s89 + $0x20] sm:$0xff]
          %104 = vst [vmem:[%s90 + $0x20] sm:$0xff] %v103
          %v105 = vld [vmem:[%s89 + $0x28] sm:$0xff]
          %106 = vst [vmem:[%s90 + $0x28] sm:$0xff] %v105
          %v107 = vld [vmem:[%s89 + $0x30] sm:$0xff]
          %108 = vst [vmem:[%s90 + $0x30] sm:$0xff] %v107
          %v109 = vld [vmem:[%s89 + $0x38] sm:$0xff]
          %110 = vst [vmem:[%s90 + $0x38] sm:$0xff] %v109
        $region36: #{custom-call.23} parent=30 // loop_footer
          %s111 = scalar_lea.vmem %s89, 64
          %s112 = scalar_lea.vmem %s90, 64
          %v113 = vld [vmem:[%s89 + $0x40] sm:$0xff]
        $region37: #{custom-call.23} parent=30 // loop_footer_branch
          %114 = sbr.rel target = $region33
        $region38: #{custom-call.23} parent=30 // loop_exit
          _
        // While loop
        $region39: #{custom-call.23} parent=30 // loop_pre_header
          _
        $region40: #{custom-call.23} parent=30 // loop_header
          %s115 = sphi %s89, %s123
          %s116 = sphi %s90, %s124
          %v117 = vphi %v91, %v117
          %p118 = scmp.gt.s32.totalorder %s115, %s87
        $region41: #{custom-call.23} parent=30 // loop_header_branch
          %120 = sbr.rel (%p118) target = $region45
        $region42: #{custom-call.23} parent=30 // loop_body
          %v121 = vld [vmem:[%s115] sm:$0xff]
          %122 = vst [vmem:[%s116] sm:$0xff] %v121
        $region43: #{custom-call.23} parent=30 // loop_footer
          %s123 = scalar_lea.vmem %s115, 8
          %s124 = scalar_lea.vmem %s116, 8
        $region44: #{custom-call.23} parent=30 // loop_footer_branch
          %125 = sbr.rel target = $region40
        $region45: #{custom-call.23} parent=30 // loop_exit
          _
      $region31: #{custom-call.23} parent=26 // pred_fallthru
        _
      %s126 = sand.u32 4, 7
      %s127 = sshll.u32 1, %s126
      %s128 = ssub.s32 %s127, 1
      %s129 = smul.u32 %s79, 128
      %s130 = sshra.s32 %s129, 4
      %s131 = scalar_lea.vmem [#allocation3], %s130
      %s132 = smul.u32 %s79, 128
      %s133 = sshra.s32 %s132, 4
      %s134 = scalar_lea.vmem %s1, %s133
      %v135 = vld [vmem:[%s134] sm:%s128]
      %136 = vst [vmem:[%s131] sm:%s128] %v135
    $region27: #{custom-call.23} parent=1 // pred_fallthru
      _
    %p138 = scmp.gt.s32.totalorder 4, 0
    // Predicated region
    $region46: #{custom-call.23} parent=1 // pred_check
      %p139 = pneg %p138
    $region47: #{custom-call.23} parent=1 // pred_check_branch
      %141 = sbr.rel (%p139) target = $region49
    $region48: #{custom-call.23} parent=1 // pred_region
      %s142 = sshra.s32 4, 3
      %p143 = scmp.gt.s32.totalorder %s142, 0
      // Predicated region
      $region50: #{custom-call.23} parent=48 // pred_check
        %p144 = pneg %p143
      $region51: #{custom-call.23} parent=48 // pred_check_branch
        %146 = sbr.rel (%p144) target = $region53
      $region52: #{custom-call.23} parent=48 // pred_region
        %s147 = ssub.s32 %s142, 1
        %s148 = smul.u32 %s147, 128
        %s149 = sshra.s32 %s148, 4
        %s150 = scalar_lea.vmem %s2, %s149
        %v151 = vld [vmem:[%s2] sm:$0xff]
        // While loop
        $region54: #{custom-call.23} parent=52 // loop_pre_header
          _
        $region55: #{custom-call.23} parent=52 // loop_header
          %s152 = sphi %s2, %s174
          %s153 = sphi [#allocation5], %s175
          %v154 = vphi %v151, %v176
          %s155 = ssub.s32 %s150, 64
          %p156 = scmp.gt.s32.totalorder %s152, %s155
        $region56: #{custom-call.23} parent=52 // loop_header_branch
          %158 = sbr.rel (%p156) target = $region60
        $region57: #{custom-call.23} parent=52 // loop_body
          %159 = vst [vmem:[%s153] sm:$0xff] %v154
          %v160 = vld [vmem:[%s152 + $0x8] sm:$0xff]
          %161 = vst [vmem:[%s153 + $0x8] sm:$0xff] %v160
          %v162 = vld [vmem:[%s152 + $0x10] sm:$0xff]
          %163 = vst [vmem:[%s153 + $0x10] sm:$0xff] %v162
          %v164 = vld [vmem:[%s152 + $0x18] sm:$0xff]
          %165 = vst [vmem:[%s153 + $0x18] sm:$0xff] %v164
          %v166 = vld [vmem:[%s152 + $0x20] sm:$0xff]
          %167 = vst [vmem:[%s153 + $0x20] sm:$0xff] %v166
          %v168 = vld [vmem:[%s152 + $0x28] sm:$0xff]
          %169 = vst [vmem:[%s153 + $0x28] sm:$0xff] %v168
          %v170 = vld [vmem:[%s152 + $0x30] sm:$0xff]
          %171 = vst [vmem:[%s153 + $0x30] sm:$0xff] %v170
          %v172 = vld [vmem:[%s152 + $0x38] sm:$0xff]
          %173 = vst [vmem:[%s153 + $0x38] sm:$0xff] %v172
        $region58: #{custom-call.23} parent=52 // loop_footer
          %s174 = scalar_lea.vmem %s152, 64
          %s175 = scalar_lea.vmem %s153, 64
          %v176 = vld [vmem:[%s152 + $0x40] sm:$0xff]
        $region59: #{custom-call.23} parent=52 // loop_footer_branch
          %177 = sbr.rel target = $region55
        $region60: #{custom-call.23} parent=52 // loop_exit
          _
        // While loop
        $region61: #{custom-call.23} parent=52 // loop_pre_header
          _
        $region62: #{custom-call.23} parent=52 // loop_header
          %s178 = sphi %s152, %s186
          %s179 = sphi %s153, %s187
          %v180 = vphi %v154, %v180
          %p181 = scmp.gt.s32.totalorder %s178, %s150
        $region63: #{custom-call.23} parent=52 // loop_header_branch
          %183 = sbr.rel (%p181) target = $region67
        $region64: #{custom-call.23} parent=52 // loop_body
          %v184 = vld [vmem:[%s178] sm:$0xff]
          %185 = vst [vmem:[%s179] sm:$0xff] %v184
        $region65: #{custom-call.23} parent=52 // loop_footer
          %s186 = scalar_lea.vmem %s178, 8
          %s187 = scalar_lea.vmem %s179, 8
        $region66: #{custom-call.23} parent=52 // loop_footer_branch
          %188 = sbr.rel target = $region62
        $region67: #{custom-call.23} parent=52 // loop_exit
          _
      $region53: #{custom-call.23} parent=48 // pred_fallthru
        _
      %s189 = sand.u32 4, 7
      %s190 = sshll.u32 1, %s189
      %s191 = ssub.s32 %s190, 1
      %s192 = smul.u32 %s142, 128
      %s193 = sshra.s32 %s192, 4
      %s194 = scalar_lea.vmem [#allocation5], %s193
      %s195 = smul.u32 %s142, 128
      %s196 = sshra.s32 %s195, 4
      %s197 = scalar_lea.vmem %s2, %s196
      %v198 = vld [vmem:[%s197] sm:%s191]
      %199 = vst [vmem:[%s194] sm:%s191] %v198
    $region49: #{custom-call.23} parent=1 // pred_fallthru
      _
    %p201 = scmp.gt.s32.totalorder 4, 0
    // Predicated region
    $region68: #{custom-call.23} parent=1 // pred_check
      %p202 = pneg %p201
    $region69: #{custom-call.23} parent=1 // pred_check_branch
      %204 = sbr.rel (%p202) target = $region71
    $region70: #{custom-call.23} parent=1 // pred_region
      %s205 = sshra.s32 4, 3
      %p206 = scmp.gt.s32.totalorder %s205, 0
      // Predicated region
      $region72: #{custom-call.23} parent=70 // pred_check
        %p207 = pneg %p206
      $region73: #{custom-call.23} parent=70 // pred_check_branch
        %209 = sbr.rel (%p207) target = $region75
      $region74: #{custom-call.23} parent=70 // pred_region
        %s210 = ssub.s32 %s205, 1
        %s211 = smul.u32 %s210, 128
        %s212 = sshra.s32 %s211, 4
        %s213 = scalar_lea.vmem %s3, %s212
        %v214 = vld [vmem:[%s3] sm:$0xff]
        // While loop
        $region76: #{custom-call.23} parent=74 // loop_pre_header
          _
        $region77: #{custom-call.23} parent=74 // loop_header
          %s215 = sphi %s3, %s237
          %s216 = sphi [#allocation7], %s238
          %v217 = vphi %v214, %v239
          %s218 = ssub.s32 %s213, 64
          %p219 = scmp.gt.s32.totalorder %s215, %s218
        $region78: #{custom-call.23} parent=74 // loop_header_branch
          %221 = sbr.rel (%p219) target = $region82
        $region79: #{custom-call.23} parent=74 // loop_body
          %222 = vst [vmem:[%s216] sm:$0xff] %v217
          %v223 = vld [vmem:[%s215 + $0x8] sm:$0xff]
          %224 = vst [vmem:[%s216 + $0x8] sm:$0xff] %v223
          %v225 = vld [vmem:[%s215 + $0x10] sm:$0xff]
          %226 = vst [vmem:[%s216 + $0x10] sm:$0xff] %v225
          %v227 = vld [vmem:[%s215 + $0x18] sm:$0xff]
          %228 = vst [vmem:[%s216 + $0x18] sm:$0xff] %v227
          %v229 = vld [vmem:[%s215 + $0x20] sm:$0xff]
          %230 = vst [vmem:[%s216 + $0x20] sm:$0xff] %v229
          %v231 = vld [vmem:[%s215 + $0x28] sm:$0xff]
          %232 = vst [vmem:[%s216 + $0x28] sm:$0xff] %v231
          %v233 = vld [vmem:[%s215 + $0x30] sm:$0xff]
          %234 = vst [vmem:[%s216 + $0x30] sm:$0xff] %v233
          %v235 = vld [vmem:[%s215 + $0x38] sm:$0xff]
          %236 = vst [vmem:[%s216 + $0x38] sm:$0xff] %v235
        $region80: #{custom-call.23} parent=74 // loop_footer
          %s237 = scalar_lea.vmem %s215, 64
          %s238 = scalar_lea.vmem %s216, 64
          %v239 = vld [vmem:[%s215 + $0x40] sm:$0xff]
        $region81: #{custom-call.23} parent=74 // loop_footer_branch
          %240 = sbr.rel target = $region77
        $region82: #{custom-call.23} parent=74 // loop_exit
          _
        // While loop
        $region83: #{custom-call.23} parent=74 // loop_pre_header
          _
        $region84: #{custom-call.23} parent=74 // loop_header
          %s241 = sphi %s215, %s249
          %s242 = sphi %s216, %s250
          %v243 = vphi %v217, %v243
          %p244 = scmp.gt.s32.totalorder %s241, %s213
        $region85: #{custom-call.23} parent=74 // loop_header_branch
          %246 = sbr.rel (%p244) target = $region89
        $region86: #{custom-call.23} parent=74 // loop_body
          %v247 = vld [vmem:[%s241] sm:$0xff]
          %248 = vst [vmem:[%s242] sm:$0xff] %v247
        $region87: #{custom-call.23} parent=74 // loop_footer
          %s249 = scalar_lea.vmem %s241, 8
          %s250 = scalar_lea.vmem %s242, 8
        $region88: #{custom-call.23} parent=74 // loop_footer_branch
          %251 = sbr.rel target = $region84
        $region89: #{custom-call.23} parent=74 // loop_exit
          _
      $region75: #{custom-call.23} parent=70 // pred_fallthru
        _
      %s252 = sand.u32 4, 7
      %s253 = sshll.u32 1, %s252
      %s254 = ssub.s32 %s253, 1
      %s255 = smul.u32 %s205, 128
      %s256 = sshra.s32 %s255, 4
      %s257 = scalar_lea.vmem [#allocation7], %s256
      %s258 = smul.u32 %s205, 128
      %s259 = sshra.s32 %s258, 4
      %s260 = scalar_lea.vmem %s3, %s259
      %v261 = vld [vmem:[%s260] sm:%s254]
      %262 = vst [vmem:[%s257] sm:%s254] %v261
    $region71: #{custom-call.23} parent=1 // pred_fallthru
      _
    %s264 = sshll.u32 1, 4
    %s265 = ssub.s32 %s264, 1
    %v266 = vld [vmem:[#allocation1] sm:%s265]
    %267 = vst [vmem:[#allocation0] sm:%s265] %v266
    %s269 = sshll.u32 1, 4
    %s270 = ssub.s32 %s269, 1
    %v271 = vld [vmem:[#allocation3] sm:%s270]
    %272 = vst [vmem:[#allocation2] sm:%s270] %v271
    %s274 = sshll.u32 1, 4
    %s275 = ssub.s32 %s274, 1
    %v276 = vld [vmem:[#allocation5] sm:%s275]
    %277 = vst [vmem:[#allocation4] sm:%s275] %v276
    %s279 = sshll.u32 1, 4
    %s280 = ssub.s32 %s279, 1
    %v281 = vld [vmem:[#allocation7] sm:%s280]
    %282 = vst [vmem:[#allocation6] sm:%s280] %v281
    %s283 = smov [#allocation20]
    %v284 = vld [vmem:[#allocation0] sm:$0xff]
    %285 = vst [vmem:[%s283] sm:$0xff] %v284
    %s286 = smov [#allocation21]
    %v287 = vld [vmem:[#allocation2] sm:$0xff]
    %288 = vst [vmem:[%s286] sm:$0xff] %v287
    %s289 = smov [#allocation22]
    %v290 = vld [vmem:[#allocation4] sm:$0xff]
    %291 = vst [vmem:[%s289] sm:$0xff] %v290
    %s292 = smov [#allocation23]
    %v293 = vld [vmem:[#allocation6] sm:$0xff]
    %294 = vst [vmem:[%s292] sm:$0xff] %v293
    %295 = vst [vmem:[#allocation12] sm:$0xff] 0.0
    %296 = vst [vmem:[#allocation14] sm:$0xff] 0.0
    %297 = vst [vmem:[#allocation16] sm:$0xff] 0.0
    %298 = vst [vmem:[#allocation18] sm:$0xff] 0.0
    %s299 = smov [#allocation12]
    %v300 = vlaneseq
    %v301 = vand.u32 %v300, 127
    %v302 = vmov %v301
    %v303 = vlaneseq
    %v304 = vshrl.u32 %v303, 7
    %v305 = vmov %v304
    %v306 = vld [vmem:[%s299] sm:$0xf]
    %vm309 = vcmp.eq.s32.totalorder %v305, %v302
    %v310 = vsel %vm309, 1.0, %v306
    %311 = vst [vmem:[%s299] sm:$0xf] %v310
    %s312 = smov [#allocation18]
    %v313 = vlaneseq
    %v314 = vand.u32 %v313, 127
    %v315 = vmov %v314
    %v316 = vlaneseq
    %v317 = vshrl.u32 %v316, 7
    %v318 = vmov %v317
    %v319 = vld [vmem:[%s312] sm:$0xf]
    %vm322 = vcmp.eq.s32.totalorder %v318, %v315
    %v323 = vsel %vm322, 1.0, %v319
    %324 = vst [vmem:[%s312] sm:$0xf] %v323
    // While loop
    $region90: #{custom-call.23} parent=1 // loop_pre_header
      _
    $region91: #{custom-call.23} parent=1 // loop_header
      %s326 = sphi 0, %s868
      %v327 = vlaneseq
      %v328 = vand.u32 %v327, 127
      %v329 = vmov %v328
      %v330 = vlaneseq
      %v331 = vshrl.u32 %v330, 7
      %v332 = vmov %v331
      %s333 = smov [#allocation20]
      %v334 = vlaneseq
      %v335 = vand.u32 %v334, 127
      %vm336 = vcmp.ge.s32.totalorder %v335, 0
      %vm337 = vcmp.lt.s32.totalorder %v335, 4
      %vm338 = vmand %vm336, %vm337
      %v339 = vld [vmem:[%s333] sm:$0xf]
      %v340 = vsel %vm338, %v339, 0.0
      %v341 = vmul.f32 %v340, %v340
      %vm344 = vcmp.eq.s32.totalorder %v332, %v329
      %v345 = vsel %vm344, 0.0, %v341
      %v346 = vlaneseq
      %v347 = vand.u32 %v346, 127
      %v348 = vmov %v347
      %v349 = vlaneseq
      %v350 = vshrl.u32 %v349, 7
      %v351 = vmov %v350
      %s352 = smov [#allocation21]
      %v353 = vlaneseq
      %v354 = vand.u32 %v353, 127
      %vm355 = vcmp.ge.s32.totalorder %v354, 0
      %vm356 = vcmp.lt.s32.totalorder %v354, 4
      %vm357 = vmand %vm355, %vm356
      %v358 = vld [vmem:[%s352] sm:$0xf]
      %v359 = vsel %vm357, %v358, 0.0
      %v360 = vmul.f32 %v359, %v359
      %v361 = vadd.f32 %v345, %v360
      %v362 = vadd.f32 %v341, %v360
      %v363 = vlaneseq
      %v364 = vand.u32 %v363, 127
      %v365 = vmov %v364
      %v366 = vlaneseq
      %v367 = vshrl.u32 %v366, 7
      %v368 = vmov %v367
      %s369 = smov [#allocation22]
      %v370 = vlaneseq
      %v371 = vand.u32 %v370, 127
      %vm372 = vcmp.ge.s32.totalorder %v371, 0
      %vm373 = vcmp.lt.s32.totalorder %v371, 4
      %vm374 = vmand %vm372, %vm373
      %v375 = vld [vmem:[%s369] sm:$0xf]
      %v376 = vsel %vm374, %v375, 0.0
      %v377 = vmul.f32 %v376, %v376
      %v378 = vadd.f32 %v361, %v377
      %v379 = vadd.f32 %v362, %v377
      %v380 = vlaneseq
      %v381 = vand.u32 %v380, 127
      %v382 = vmov %v381
      %v383 = vlaneseq
      %v384 = vshrl.u32 %v383, 7
      %v385 = vmov %v384
      %s386 = smov [#allocation23]
      %v387 = vlaneseq
      %v388 = vand.u32 %v387, 127
      %vm389 = vcmp.ge.s32.totalorder %v388, 0
      %vm390 = vcmp.lt.s32.totalorder %v388, 4
      %vm391 = vmand %vm389, %vm390
      %v392 = vld [vmem:[%s386] sm:$0xf]
      %v393 = vsel %vm391, %v392, 0.0
      %v394 = vmul.f32 %v393, %v393
      %vm397 = vcmp.eq.s32.totalorder %v385, %v382
      %v398 = vsel %vm397, 0.0, %v394
      %v399 = vadd.f32 %v378, %v398
      %v400 = vadd.f32 %v379, %v394
      %401 = vadd.xlane.f32.xlu0 %v400
      %v402 = vpop.xlane.xlu0 %401
      %v403 = vrot.slane %v402, 4
      %v404 = vadd.f32 %v402, %v403
      %v405 = vrot.slane %v404, 2
      %v406 = vadd.f32 %v404, %v405
      %v407 = vrot.slane %v406, 1
      %v408 = vadd.f32 %v406, %v407
      %409 = vadd.xlane.f32.xlu0 %v399
      %v410 = vpop.xlane.xlu0 %409
      %v411 = vrot.slane %v410, 4
      %v412 = vadd.f32 %v410, %v411
      %v413 = vrot.slane %v412, 2
      %v414 = vadd.f32 %v412, %v413
      %v415 = vrot.slane %v414, 1
      %v416 = vadd.f32 %v414, %v415
      %s417 = vtos %v416
      %s418 = vtos %v408
      %s419 = smul.f32 1e-10, %s418
      %p420 = scmp.le.f32.partialorder %s417, %s419
      %p421 = scmp.ge.s32.totalorder %s326, 15
      %p422 = por %p420, %p421
    $region92: #{custom-call.23} parent=1 // loop_header_branch
      %870 = sbr.rel (%p422) target = $region96
    $region93: #{custom-call.23} parent=1 // loop_body
      loop: start=0, step=1, limit=7
      $region97: #{custom-call.23} parent=93 // loop_pre_header
        _
      $region98: #{custom-call.23} parent=93 // loop_header
        %s424 = sphi 0, %s428
        %p425 = scmp.ge.s32.totalorder %s424, 7
      $region99: #{custom-call.23} parent=93 // loop_header_branch
        %427 = sbr.rel (%p425) target = $region103
      $region100: #{custom-call.23} parent=93 // loop_body
        #allocation24 [shape = 'f32[1024]{0}', space=vmem, size = 0x1000, scoped, tag = 'a_tl_diag vmem']
        #allocation25 [shape = 'f32[1024]{0}', space=vmem, size = 0x1000, scoped, tag = 'a_tr_diag vmem']
        #allocation26 [shape = 'f32[1024]{0}', space=vmem, size = 0x1000, scoped, tag = 'a_br_diag vmem']
        #allocation27 [shape = 'f32[1024]{0}', space=vmem, size = 0x1000, scoped, tag = 'rt1 vmem']
        #allocation28 [shape = 'f32[1024]{0}', space=vmem, size = 0x1000, scoped, tag = 'rt2 vmem']
        #allocation29 [shape = 'f32[1024]{0}', space=vmem, size = 0x1000, scoped, tag = 'c vmem']
        #allocation30 [shape = 'f32[1024]{0}', space=vmem, size = 0x1000, scoped, tag = 's vmem']
        #allocation31 [shape = 'f32[4096]{0}', space=vmem, size = 0x4000, scoped, tag = 'c broadcast']
        #allocation32 [shape = 'f32[4096]{0}', space=vmem, size = 0x4000, scoped, tag = 's broadcast']
        %s429 = smov [#allocation20]
        %s430 = smov [#allocation24]
        %v431 = vlaneseq
        %v432 = vand.u32 %v431, 127
        %v433 = vmov %v432
        %v434 = vlaneseq
        %v435 = vshrl.u32 %v434, 7
        %v436 = vmov %v435
        %v437 = vld [vmem:[%s429] sm:$0xf]
        %vm440 = vcmp.eq.s32.totalorder %v436, %v433
        %v441 = vsel %vm440, %v437, 0.0
        %v442 = vrot.slane %v441, 4
        %v443 = vadd.f32 %v441, %v442
        %v444 = vrot.slane %v443, 2
        %v445 = vadd.f32 %v443, %v444
        %v446 = vrot.slane %v445, 1
        %v447 = vadd.f32 %v445, %v446
        %448 = vst [vmem:[%s430] sm:$0x1] %v447
        %s449 = smov [#allocation21]
        %s450 = smov [#allocation25]
        %v451 = vlaneseq
        %v452 = vand.u32 %v451, 127
        %v453 = vmov %v452
        %v454 = vlaneseq
        %v455 = vshrl.u32 %v454, 7
        %v456 = vmov %v455
        %v457 = vld [vmem:[%s449] sm:$0xf]
        %vm460 = vcmp.eq.s32.totalorder %v456, %v453
        %v461 = vsel %vm460, %v457, 0.0
        %v462 = vrot.slane %v461, 4
        %v463 = vadd.f32 %v461, %v462
        %v464 = vrot.slane %v463, 2
        %v465 = vadd.f32 %v463, %v464
        %v466 = vrot.slane %v465, 1
        %v467 = vadd.f32 %v465, %v466
        %468 = vst [vmem:[%s450] sm:$0x1] %v467
        %s469 = smov [#allocation23]
        %s470 = smov [#allocation26]
        %v471 = vlaneseq
        %v472 = vand.u32 %v471, 127
        %v473 = vmov %v472
        %v474 = vlaneseq
        %v475 = vshrl.u32 %v474, 7
        %v476 = vmov %v475
        %v477 = vld [vmem:[%s469] sm:$0xf]
        %vm480 = vcmp.eq.s32.totalorder %v476, %v473
        %v481 = vsel %vm480, %v477, 0.0
        %v482 = vrot.slane %v481, 4
        %v483 = vadd.f32 %v481, %v482
        %v484 = vrot.slane %v483, 2
        %v485 = vadd.f32 %v483, %v484
        %v486 = vrot.slane %v485, 1
        %v487 = vadd.f32 %v485, %v486
        %488 = vst [vmem:[%s470] sm:$0x1] %v487
        %s489 = smov [#allocation29]
        %s490 = smov [#allocation30]
        %s491 = smov [#allocation24]
        %v492 = vld [vmem:[%s491] sm:$0xff]
        %s493 = smov [#allocation25]
        %v494 = vld [vmem:[%s493] sm:$0xff]
        %s495 = smov [#allocation26]
        %v496 = vld [vmem:[%s495] sm:$0xff]
        %v497 = vsub.f32 %v496, %v492
        %v498 = vmul.f32 2.0, %v494
        %v499 = vrcp.pop %v498
        %v500 = vmul.f32 %v497, %v499
        %vm501 = vcmp.ge.f32.partialorder %v500, 0.0
        %v502 = vmul.f32 %v500, %v500
        %v503 = vadd.f32 1.0, %v502
        %v504 = vrsqrt.pop %v503
        %v505 = vmul.f32 %v503, %v504
        %vm506 = vcmp.eq.f32.partialorder %v503, inf
        %v507 = vsel %vm506, %v503, %v505
        %vm508 = vcmp.eq.f32.partialorder %v503, 0.0
        %v509 = vand.u32 %v503, 2147483648
        %v510 = vsel %vm508, %v509, %v507
        %v511 = vxor.u32 %v510, 2147483648
        %v512 = vsel %vm501, %v510, %v511
        %v513 = vadd.f32 %v500, %v512
        %v514 = vrcp.pop %v513
        %v515 = vand.u32 2147483647, %v492
        %v516 = vand.u32 2147483647, %v494
        %v517 = vand.u32 2147483647, %v496
        %v518 = vmin.f32 %v515, %v517
        %v519 = vmul.f32 1.1920929e-08, %v518
        %vm520 = vcmp.le.f32.partialorder %v516, %v519
        %v521 = vsel %vm520, 0.0, %v514
        %v522 = vmul.f32 %v521, %v521
        %v523 = vadd.f32 1.0, %v522
        %v524 = vrsqrt.pop %v523
        %v525 = vmul.f32 %v521, %v524
        %v526 = vmul.f32 %v521, %v494
        %v527 = vsub.f32 %v492, %v526
        %v528 = vmul.f32 %v521, %v494
        %v529 = vadd.f32 %v496, %v528
        %s530 = smov [#allocation27]
        %531 = vst [vmem:[%s530] sm:$0xff] %v527
        %s532 = smov [#allocation28]
        %533 = vst [vmem:[%s532] sm:$0xff] %v529
        %s534 = smov %s489
        %535 = vst [vmem:[%s534] sm:$0xff] %v524
        %s536 = smov %s490
        %537 = vst [vmem:[%s536] sm:$0xff] %v525
        %s538 = smov [#allocation29]
        %v539 = vld [vmem:[%s538] ss:$0 sm:$0xff]
        %v540 = vlaneseq
        %v541 = vand.u32 %v540, 127
        %v542 = vmov %v541
        %v543 = vlaneseq
        %v544 = vshrl.u32 %v543, 7
        %v545 = vmov %v544
        %vm547 = vcmp.eq.s32.totalorder %v545, %v542
        %v548 = vsel %vm547, %v539, 0.0
        %549 = vadd.xlane.f32.xlu0 %v548
        %v550 = vpop.xlane.xlu0 %549
        %s551 = smov [#allocation31]
        %552 = vst [vmem:[%s551] sm:$0xff] %v550
        %s553 = smov [#allocation30]
        %v554 = vld [vmem:[%s553] ss:$0 sm:$0xff]
        %v555 = vlaneseq
        %v556 = vand.u32 %v555, 127
        %v557 = vmov %v556
        %v558 = vlaneseq
        %v559 = vshrl.u32 %v558, 7
        %v560 = vmov %v559
        %vm562 = vcmp.eq.s32.totalorder %v560, %v557
        %v563 = vsel %vm562, %v554, 0.0
        %564 = vadd.xlane.f32.xlu0 %v563
        %v565 = vpop.xlane.xlu0 %564
        %s566 = smov [#allocation32]
        %567 = vst [vmem:[%s566] sm:$0xff] %v565
        %s568 = smov [#allocation31]
        %v569 = vld [vmem:[%s568] sm:$0xff]
        %s570 = smov [#allocation32]
        %v571 = vld [vmem:[%s570] sm:$0xff]
        %s572 = smov [#allocation20]
        %s573 = smov [#allocation21]
        %s574 = smov [#allocation22]
        %s575 = smov [#allocation23]
        %v576 = vld [vmem:[%s572] sm:$0xf]
        %v577 = vld [vmem:[%s573] sm:$0xf]
        %v578 = vld [vmem:[%s574] sm:$0xf]
        %v579 = vld [vmem:[%s575] sm:$0xf]
        %v580 = vmul.f32 %v569, %v576
        %v581 = vmul.f32 %v571, %v578
        %v582 = vsub.f32 %v580, %v581
        %v583 = vmul.f32 %v569, %v577
        %v584 = vmul.f32 %v571, %v579
        %v585 = vsub.f32 %v583, %v584
        %v586 = vmul.f32 %v571, %v576
        %v587 = vmul.f32 %v569, %v578
        %v588 = vadd.f32 %v586, %v587
        %v589 = vmul.f32 %v571, %v577
        %v590 = vmul.f32 %v569, %v579
        %v591 = vadd.f32 %v589, %v590
        %592 = vst [vmem:[%s572] sm:$0xf] %v582
        %593 = vst [vmem:[%s573] sm:$0xf] %v585
        %594 = vst [vmem:[%s574] sm:$0xf] %v588
        %595 = vst [vmem:[%s575] sm:$0xf] %v591
        %s596 = smov [#allocation29]
        %v597 = vld [vmem:[%s596] ss:$0 sm:$0xff]
        %s598 = smov [#allocation30]
        %v599 = vld [vmem:[%s598] ss:$0 sm:$0xff]
        %s600 = smov [#allocation20]
        %s601 = smov [#allocation21]
        %s602 = smov [#allocation22]
        %s603 = smov [#allocation23]
        %v604 = vld [vmem:[%s600] sm:$0xf]
        %v605 = vld [vmem:[%s601] sm:$0xf]
        %v606 = vld [vmem:[%s602] sm:$0xf]
        %v607 = vld [vmem:[%s603] sm:$0xf]
        %v608 = vmul.f32 %v597, %v604
        %v609 = vmul.f32 %v599, %v605
        %v610 = vsub.f32 %v608, %v609
        %v611 = vmul.f32 %v599, %v604
        %v612 = vmul.f32 %v597, %v605
        %v613 = vadd.f32 %v611, %v612
        %v614 = vmul.f32 %v597, %v606
        %v615 = vmul.f32 %v599, %v607
        %v616 = vsub.f32 %v614, %v615
        %v617 = vmul.f32 %v599, %v606
        %v618 = vmul.f32 %v597, %v607
        %v619 = vadd.f32 %v617, %v618
        %620 = vst [vmem:[%s600] sm:$0xf] %v610
        %621 = vst [vmem:[%s601] sm:$0xf] %v613
        %622 = vst [vmem:[%s602] sm:$0xf] %v616
        %623 = vst [vmem:[%s603] sm:$0xf] %v619
        %s624 = smov [#allocation20]
        %s625 = smov [#allocation27]
        %v626 = vlaneseq
        %v627 = vand.u32 %v626, 127
        %v628 = vmov %v627
        %v629 = vlaneseq
        %v630 = vshrl.u32 %v629, 7
        %v631 = vmov %v630
        %v632 = vld [vmem:[%s625] ss:$0 sm:$0xff]
        %v633 = vld [vmem:[%s624] sm:$0xf]
        %vm636 = vcmp.eq.s32.totalorder %v631, %v628
        %v637 = vsel %vm636, %v632, %v633
        %638 = vst [vmem:[%s624] sm:$0xf] %v637
        %s639 = smov [#allocation21]
        %v640 = vlaneseq
        %v641 = vand.u32 %v640, 127
        %v642 = vmov %v641
        %v643 = vlaneseq
        %v644 = vshrl.u32 %v643, 7
        %v645 = vmov %v644
        %v646 = vld [vmem:[%s639] sm:$0xf]
        %vm649 = vcmp.eq.s32.totalorder %v645, %v642
        %v650 = vsel %vm649, 0.0, %v646
        %651 = vst [vmem:[%s639] sm:$0xf] %v650
        %s652 = smov [#allocation22]
        %v653 = vlaneseq
        %v654 = vand.u32 %v653, 127
        %v655 = vmov %v654
        %v656 = vlaneseq
        %v657 = vshrl.u32 %v656, 7
        %v658 = vmov %v657
        %v659 = vld [vmem:[%s652] sm:$0xf]
        %vm662 = vcmp.eq.s32.totalorder %v658, %v655
        %v663 = vsel %vm662, 0.0, %v659
        %664 = vst [vmem:[%s652] sm:$0xf] %v663
        %s665 = smov [#allocation23]
        %s666 = smov [#allocation28]
        %v667 = vlaneseq
        %v668 = vand.u32 %v667, 127
        %v669 = vmov %v668
        %v670 = vlaneseq
        %v671 = vshrl.u32 %v670, 7
        %v672 = vmov %v671
        %v673 = vld [vmem:[%s666] ss:$0 sm:$0xff]
        %v674 = vld [vmem:[%s665] sm:$0xf]
        %vm677 = vcmp.eq.s32.totalorder %v672, %v669
        %v678 = vsel %vm677, %v673, %v674
        %679 = vst [vmem:[%s665] sm:$0xf] %v678
        %s680 = smov [#allocation20]
        %s681 = smov [#allocation21]
        %v682 = vld [vmem:[%s681] sm:$0xf]
        %683 = vrot.lane.b32.xlu0 %v682, 1
        %v684 = vpop.permute.xlu0 %683
        %v685 = vld [vmem:[%s680] sm:$0xf]
        %v686 = vld [vmem:[%s680] sm:$0xf]
        %687 = vrot.lane.b32.xlu0 %v686, 1
        %v688 = vpop.permute.xlu0 %687
        %v689 = vlaneseq
        %v690 = vand.u32 %v689, 127
        %vm691 = vcmp.eq.s32.totalorder %v690, 0
        %v692 = vsel %vm691, %v686, %v688
        %v693 = vlaneseq
        %v694 = vand.u32 %v693, 127
        %vm695 = vcmp.eq.s32.totalorder %v694, 1
        %v696 = vsel %vm695, %v684, %v692
        %v697 = vlaneseq
        %v698 = vand.u32 %v697, 127
        %vm699 = vcmp.ge.s32.totalorder %v698, 0
        %vm700 = vcmp.lt.s32.totalorder %v698, 4
        %vm701 = vmand %vm699, %vm700
        %v702 = vsel %vm701, %v696, 0.0
        %v703 = vld [vmem:[%s681] sm:$0xf]
        %704 = vrot.lane.b32.xlu0 %v703, 127
        %v705 = vpop.permute.xlu0 %704
        %v706 = vlaneseq
        %v707 = vand.u32 %v706, 127
        %vm708 = vcmp.eq.s32.totalorder %v707, 3
        %v709 = vsel %vm708, %v685, %v705
        %710 = vst [vmem:[%s680] sm:$0xf] %v702
        %711 = vst [vmem:[%s681] sm:$0xf] %v709
        %s712 = smov [#allocation22]
        %s713 = smov [#allocation23]
        %v714 = vld [vmem:[%s713] sm:$0xf]
        %715 = vrot.lane.b32.xlu0 %v714, 1
        %v716 = vpop.permute.xlu0 %715
        %v717 = vld [vmem:[%s712] sm:$0xf]
        %v718 = vld [vmem:[%s712] sm:$0xf]
        %719 = vrot.lane.b32.xlu0 %v718, 1
        %v720 = vpop.permute.xlu0 %719
        %v721 = vlaneseq
        %v722 = vand.u32 %v721, 127
        %vm723 = vcmp.eq.s32.totalorder %v722, 0
        %v724 = vsel %vm723, %v718, %v720
        %v725 = vlaneseq
        %v726 = vand.u32 %v725, 127
        %vm727 = vcmp.eq.s32.totalorder %v726, 1
        %v728 = vsel %vm727, %v716, %v724
        %v729 = vlaneseq
        %v730 = vand.u32 %v729, 127
        %vm731 = vcmp.ge.s32.totalorder %v730, 0
        %vm732 = vcmp.lt.s32.totalorder %v730, 4
        %vm733 = vmand %vm731, %vm732
        %v734 = vsel %vm733, %v728, 0.0
        %v735 = vld [vmem:[%s713] sm:$0xf]
        %736 = vrot.lane.b32.xlu0 %v735, 127
        %v737 = vpop.permute.xlu0 %736
        %v738 = vlaneseq
        %v739 = vand.u32 %v738, 127
        %vm740 = vcmp.eq.s32.totalorder %v739, 3
        %v741 = vsel %vm740, %v717, %v737
        %742 = vst [vmem:[%s712] sm:$0xf] %v734
        %743 = vst [vmem:[%s713] sm:$0xf] %v741
        %s744 = smov [#allocation20]
        %s745 = smov [#allocation22]
        %v746 = vld [vmem:[%s744] ss:$0 sm:$0xff]
        %s748 = scalar_lea.vmem %s744, 4294967295
        %v749 = vld [vmem:[%s748] sm:$0xe]
        %v750 = vlaneseq
        %v751 = vshrl.u32 %v750, 7
        %vm752 = vcmp.eq.s32.totalorder %v751, 0
        %v753 = vsel %vm752, %v746, %v749
        %s754 = scalar_lea.vmem %s744, 3
        %v755 = vld [vmem:[%s754] ss:$0 sm:$0xff]
        %756 = vst [vmem:[%s744] sm:$0xf] %v753
        %v757 = vld [vmem:[%s745] ss:$0 sm:$0xff]
        %s758 = scalar_lea.vmem %s744, 1
        %759 = vst [vmem:[%s758] sm:$0x1] %v757
        %s760 = scalar_lea.vmem %s745, 1
        %v761 = vld [vmem:[%s760] sm:$0x7]
        %v762 = vlaneseq
        %v763 = vshrl.u32 %v762, 7
        %vm764 = vcmp.eq.s32.totalorder %v763, 3
        %v765 = vsel %vm764, %v755, %v761
        %v766 = vld [vmem:[%s745] ss:$0 sm:$0xff]
        %767 = vst [vmem:[%s745] sm:$0xf] %v765
        %s768 = smov [#allocation21]
        %s769 = smov [#allocation23]
        %v770 = vld [vmem:[%s768] ss:$0 sm:$0xff]
        %s772 = scalar_lea.vmem %s768, 4294967295
        %v773 = vld [vmem:[%s772] sm:$0xe]
        %v774 = vlaneseq
        %v775 = vshrl.u32 %v774, 7
        %vm776 = vcmp.eq.s32.totalorder %v775, 0
        %v777 = vsel %vm776, %v770, %v773
        %s778 = scalar_lea.vmem %s768, 3
        %v779 = vld [vmem:[%s778] ss:$0 sm:$0xff]
        %780 = vst [vmem:[%s768] sm:$0xf] %v777
        %v781 = vld [vmem:[%s769] ss:$0 sm:$0xff]
        %s782 = scalar_lea.vmem %s768, 1
        %783 = vst [vmem:[%s782] sm:$0x1] %v781
        %s784 = scalar_lea.vmem %s769, 1
        %v785 = vld [vmem:[%s784] sm:$0x7]
        %v786 = vlaneseq
        %v787 = vshrl.u32 %v786, 7
        %vm788 = vcmp.eq.s32.totalorder %v787, 3
        %v789 = vsel %vm788, %v779, %v785
        %v790 = vld [vmem:[%s769] ss:$0 sm:$0xff]
        %791 = vst [vmem:[%s769] sm:$0xf] %v789
        %s792 = smov [#allocation31]
        %v793 = vld [vmem:[%s792] sm:$0xff]
        %s794 = smov [#allocation32]
        %v795 = vld [vmem:[%s794] sm:$0xff]
        %s796 = smov [#allocation12]
        %s797 = smov [#allocation14]
        %s798 = smov [#allocation16]
        %s799 = smov [#allocation18]
        %v800 = vld [vmem:[%s796] sm:$0xf]
        %v801 = vld [vmem:[%s797] sm:$0xf]
        %v802 = vld [vmem:[%s798] sm:$0xf]
        %v803 = vld [vmem:[%s799] sm:$0xf]
        %v804 = vmul.f32 %v793, %v800
        %v805 = vmul.f32 %v795, %v802
        %v806 = vsub.f32 %v804, %v805
        %v807 = vmul.f32 %v793, %v801
        %v808 = vmul.f32 %v795, %v803
        %v809 = vsub.f32 %v807, %v808
        %v810 = vmul.f32 %v795, %v800
        %v811 = vmul.f32 %v793, %v802
        %v812 = vadd.f32 %v810, %v811
        %v813 = vmul.f32 %v795, %v801
        %v814 = vmul.f32 %v793, %v803
        %v815 = vadd.f32 %v813, %v814
        %816 = vst [vmem:[%s796] sm:$0xf] %v806
        %817 = vst [vmem:[%s797] sm:$0xf] %v809
        %818 = vst [vmem:[%s798] sm:$0xf] %v812
        %819 = vst [vmem:[%s799] sm:$0xf] %v815
        %s820 = smov [#allocation12]
        %s821 = smov [#allocation16]
        %v822 = vld [vmem:[%s820] ss:$0 sm:$0xff]
        %s824 = scalar_lea.vmem %s820, 4294967295
        %v825 = vld [vmem:[%s824] sm:$0xe]
        %v826 = vlaneseq
        %v827 = vshrl.u32 %v826, 7
        %vm828 = vcmp.eq.s32.totalorder %v827, 0
        %v829 = vsel %vm828, %v822, %v825
        %s830 = scalar_lea.vmem %s820, 3
        %v831 = vld [vmem:[%s830] ss:$0 sm:$0xff]
        %832 = vst [vmem:[%s820] sm:$0xf] %v829
        %v833 = vld [vmem:[%s821] ss:$0 sm:$0xff]
        %s834 = scalar_lea.vmem %s820, 1
        %835 = vst [vmem:[%s834] sm:$0x1] %v833
        %s836 = scalar_lea.vmem %s821, 1
        %v837 = vld [vmem:[%s836] sm:$0x7]
        %v838 = vlaneseq
        %v839 = vshrl.u32 %v838, 7
        %vm840 = vcmp.eq.s32.totalorder %v839, 3
        %v841 = vsel %vm840, %v831, %v837
        %v842 = vld [vmem:[%s821] ss:$0 sm:$0xff]
        %843 = vst [vmem:[%s821] sm:$0xf] %v841
        %s844 = smov [#allocation14]
        %s845 = smov [#allocation18]
        %v846 = vld [vmem:[%s844] ss:$0 sm:$0xff]
        %s848 = scalar_lea.vmem %s844, 4294967295
        %v849 = vld [vmem:[%s848] sm:$0xe]
        %v850 = vlaneseq
        %v851 = vshrl.u32 %v850, 7
        %vm852 = vcmp.eq.s32.totalorder %v851, 0
        %v853 = vsel %vm852, %v846, %v849
        %s854 = scalar_lea.vmem %s844, 3
        %v855 = vld [vmem:[%s854] ss:$0 sm:$0xff]
        %856 = vst [vmem:[%s844] sm:$0xf] %v853
        %v857 = vld [vmem:[%s845] ss:$0 sm:$0xff]
        %s858 = scalar_lea.vmem %s844, 1
        %859 = vst [vmem:[%s858] sm:$0x1] %v857
        %s860 = scalar_lea.vmem %s845, 1
        %v861 = vld [vmem:[%s860] sm:$0x7]
        %v862 = vlaneseq
        %v863 = vshrl.u32 %v862, 7
        %vm864 = vcmp.eq.s32.totalorder %v863, 3
        %v865 = vsel %vm864, %v855, %v861
        %v866 = vld [vmem:[%s845] ss:$0 sm:$0xff]
        %867 = vst [vmem:[%s845] sm:$0xf] %v865
      $region101: #{custom-call.23} parent=93 // loop_footer
        %s428 = sadd.s32 1, %s424
      $region102: #{custom-call.23} parent=93 // loop_footer_branch
        %423 = sbr.rel target = $region98
      $region103: #{custom-call.23} parent=93 // loop_exit
        _
      %s868 = sadd.s32 %s326, 1
    $region94: #{custom-call.23} parent=1 // loop_footer
      _
    $region95: #{custom-call.23} parent=1 // loop_footer_branch
      %325 = sbr.rel target = $region91
    $region96: #{custom-call.23} parent=1 // loop_exit
      _
    %s871 = smov [#allocation20]
    %s872 = smov [#allocation8]
    %v873 = vlaneseq
    %v874 = vand.u32 %v873, 127
    %v875 = vmov %v874
    %v876 = vlaneseq
    %v877 = vshrl.u32 %v876, 7
    %v878 = vmov %v877
    %v879 = vld [vmem:[%s871] sm:$0xf]
    %vm882 = vcmp.eq.s32.totalorder %v878, %v875
    %v883 = vsel %vm882, %v879, 0.0
    %v884 = vrot.slane %v883, 4
    %v885 = vadd.f32 %v883, %v884
    %v886 = vrot.slane %v885, 2
    %v887 = vadd.f32 %v885, %v886
    %v888 = vrot.slane %v887, 1
    %v889 = vadd.f32 %v887, %v888
    %890 = vst [vmem:[%s872] sm:$0x1] %v889
    %s891 = smov [#allocation23]
    %s892 = smov [#allocation10]
    %v893 = vlaneseq
    %v894 = vand.u32 %v893, 127
    %v895 = vmov %v894
    %v896 = vlaneseq
    %v897 = vshrl.u32 %v896, 7
    %v898 = vmov %v897
    %v899 = vld [vmem:[%s891] sm:$0xf]
    %vm902 = vcmp.eq.s32.totalorder %v898, %v895
    %v903 = vsel %vm902, %v899, 0.0
    %v904 = vrot.slane %v903, 4
    %v905 = vadd.f32 %v903, %v904
    %v906 = vrot.slane %v905, 2
    %v907 = vadd.f32 %v905, %v906
    %v908 = vrot.slane %v907, 1
    %v909 = vadd.f32 %v907, %v908
    %910 = vst [vmem:[%s892] sm:$0x1] %v909
    %s912 = sshll.u32 1, 1
    %s913 = ssub.s32 %s912, 1
    %v915 = vld [vmem:[#allocation8] sm:%s913]
    %s916 = sshll.u32 1, 1
    %s917 = ssub.s32 %s916, 1
    %918 = vst [vmem:[#allocation9] sm:%s917] %v915
    %s920 = sshll.u32 1, 1
    %s921 = ssub.s32 %s920, 1
    %v923 = vld [vmem:[#allocation10] sm:%s921]
    %s924 = sshll.u32 1, 1
    %s925 = ssub.s32 %s924, 1
    %926 = vst [vmem:[#allocation11] sm:%s925] %v923
    %s928 = sshll.u32 1, 4
    %s929 = ssub.s32 %s928, 1
    %v931 = vld [vmem:[#allocation12] sm:%s929]
    %s932 = sshll.u32 1, 4
    %s933 = ssub.s32 %s932, 1
    %934 = vst [vmem:[#allocation13] sm:%s933] %v931
    %s936 = sshll.u32 1, 4
    %s937 = ssub.s32 %s936, 1
    %v939 = vld [vmem:[#allocation14] sm:%s937]
    %s940 = sshll.u32 1, 4
    %s941 = ssub.s32 %s940, 1
    %942 = vst [vmem:[#allocation15] sm:%s941] %v939
    %s944 = sshll.u32 1, 4
    %s945 = ssub.s32 %s944, 1
    %v947 = vld [vmem:[#allocation16] sm:%s945]
    %s948 = sshll.u32 1, 4
    %s949 = ssub.s32 %s948, 1
    %950 = vst [vmem:[#allocation17] sm:%s949] %v947
    %s952 = sshll.u32 1, 4
    %s953 = ssub.s32 %s952, 1
    %v955 = vld [vmem:[#allocation18] sm:%s953]
    %s956 = sshll.u32 1, 4
    %s957 = ssub.s32 %s956, 1
    %958 = vst [vmem:[#allocation19] sm:%s957] %v955
    // Predicated region
    $region104: #{custom-call.23} parent=1 // pred_check
      _
    $region105: #{custom-call.23} parent=1 // pred_check_branch
      %960 = sbr.rel (0) target = $region107
    $region106: #{custom-call.23} parent=1 // pred_region
      %p962 = scmp.gt.s32.totalorder 1, 0
      // Predicated region
      $region108: #{custom-call.23} parent=106 // pred_check
        %p963 = pneg %p962
      $region109: #{custom-call.23} parent=106 // pred_check_branch
        %965 = sbr.rel (%p963) target = $region111
      $region110: #{custom-call.23} parent=106 // pred_region
        %s966 = sshra.s32 1, 3
        %p967 = scmp.gt.s32.totalorder %s966, 0
        // Predicated region
        $region112: #{custom-call.23} parent=110 // pred_check
          %p968 = pneg %p967
        $region113: #{custom-call.23} parent=110 // pred_check_branch
          %970 = sbr.rel (%p968) target = $region115
        $region114: #{custom-call.23} parent=110 // pred_region
          %s971 = ssub.s32 %s966, 1
          %s972 = smul.u32 %s971, 128
          %s973 = sshra.s32 %s972, 4
          %s974 = scalar_lea.vmem [#allocation9], %s973
          %v975 = vld [vmem:[#allocation9] sm:$0xff]
          // While loop
          $region116: #{custom-call.23} parent=114 // loop_pre_header
            _
          $region117: #{custom-call.23} parent=114 // loop_header
            %s976 = sphi [#allocation9], %s998
            %s977 = sphi %s4, %s999
            %v978 = vphi %v975, %v1000
            %s979 = ssub.s32 %s974, 64
            %p980 = scmp.gt.s32.totalorder %s976, %s979
          $region118: #{custom-call.23} parent=114 // loop_header_branch
            %982 = sbr.rel (%p980) target = $region122
          $region119: #{custom-call.23} parent=114 // loop_body
            %983 = vst [vmem:[%s977] sm:$0xff] %v978
            %v984 = vld [vmem:[%s976 + $0x8] sm:$0xff]
            %985 = vst [vmem:[%s977 + $0x8] sm:$0xff] %v984
            %v986 = vld [vmem:[%s976 + $0x10] sm:$0xff]
            %987 = vst [vmem:[%s977 + $0x10] sm:$0xff] %v986
            %v988 = vld [vmem:[%s976 + $0x18] sm:$0xff]
            %989 = vst [vmem:[%s977 + $0x18] sm:$0xff] %v988
            %v990 = vld [vmem:[%s976 + $0x20] sm:$0xff]
            %991 = vst [vmem:[%s977 + $0x20] sm:$0xff] %v990
            %v992 = vld [vmem:[%s976 + $0x28] sm:$0xff]
            %993 = vst [vmem:[%s977 + $0x28] sm:$0xff] %v992
            %v994 = vld [vmem:[%s976 + $0x30] sm:$0xff]
            %995 = vst [vmem:[%s977 + $0x30] sm:$0xff] %v994
            %v996 = vld [vmem:[%s976 + $0x38] sm:$0xff]
            %997 = vst [vmem:[%s977 + $0x38] sm:$0xff] %v996
          $region120: #{custom-call.23} parent=114 // loop_footer
            %s998 = scalar_lea.vmem %s976, 64
            %s999 = scalar_lea.vmem %s977, 64
            %v1000 = vld [vmem:[%s976 + $0x40] sm:$0xff]
          $region121: #{custom-call.23} parent=114 // loop_footer_branch
            %1001 = sbr.rel target = $region117
          $region122: #{custom-call.23} parent=114 // loop_exit
            _
          // While loop
          $region123: #{custom-call.23} parent=114 // loop_pre_header
            _
          $region124: #{custom-call.23} parent=114 // loop_header
            %s1002 = sphi %s976, %s1010
            %s1003 = sphi %s977, %s1011
            %v1004 = vphi %v978, %v1004
            %p1005 = scmp.gt.s32.totalorder %s1002, %s974
          $region125: #{custom-call.23} parent=114 // loop_header_branch
            %1007 = sbr.rel (%p1005) target = $region129
          $region126: #{custom-call.23} parent=114 // loop_body
            %v1008 = vld [vmem:[%s1002] sm:$0xff]
            %1009 = vst [vmem:[%s1003] sm:$0xff] %v1008
          $region127: #{custom-call.23} parent=114 // loop_footer
            %s1010 = scalar_lea.vmem %s1002, 8
            %s1011 = scalar_lea.vmem %s1003, 8
          $region128: #{custom-call.23} parent=114 // loop_footer_branch
            %1012 = sbr.rel target = $region124
          $region129: #{custom-call.23} parent=114 // loop_exit
            _
        $region115: #{custom-call.23} parent=110 // pred_fallthru
          _
        %s1013 = sand.u32 1, 7
        %s1014 = sshll.u32 1, %s1013
        %s1015 = ssub.s32 %s1014, 1
        %s1016 = smul.u32 %s966, 128
        %s1017 = sshra.s32 %s1016, 4
        %s1018 = scalar_lea.vmem %s4, %s1017
        %s1019 = smul.u32 %s966, 128
        %s1020 = sshra.s32 %s1019, 4
        %s1021 = scalar_lea.vmem [#allocation9], %s1020
        %v1022 = vld [vmem:[%s1021] sm:%s1015]
        %1023 = vst [vmem:[%s1018] sm:%s1015] %v1022
      $region111: #{custom-call.23} parent=106 // pred_fallthru
        _
    $region107: #{custom-call.23} parent=1 // pred_fallthru
      _
    // Predicated region
    $region130: #{custom-call.23} parent=1 // pred_check
      _
    $region131: #{custom-call.23} parent=1 // pred_check_branch
      %1025 = sbr.rel (0) target = $region133
    $region132: #{custom-call.23} parent=1 // pred_region
      %p1027 = scmp.gt.s32.totalorder 1, 0
      // Predicated region
      $region134: #{custom-call.23} parent=132 // pred_check
        %p1028 = pneg %p1027
      $region135: #{custom-call.23} parent=132 // pred_check_branch
        %1030 = sbr.rel (%p1028) target = $region137
      $region136: #{custom-call.23} parent=132 // pred_region
        %s1031 = sshra.s32 1, 3
        %p1032 = scmp.gt.s32.totalorder %s1031, 0
        // Predicated region
        $region138: #{custom-call.23} parent=136 // pred_check
          %p1033 = pneg %p1032
        $region139: #{custom-call.23} parent=136 // pred_check_branch
          %1035 = sbr.rel (%p1033) target = $region141
        $region140: #{custom-call.23} parent=136 // pred_region
          %s1036 = ssub.s32 %s1031, 1
          %s1037 = smul.u32 %s1036, 128
          %s1038 = sshra.s32 %s1037, 4
          %s1039 = scalar_lea.vmem [#allocation11], %s1038
          %v1040 = vld [vmem:[#allocation11] sm:$0xff]
          // While loop
          $region142: #{custom-call.23} parent=140 // loop_pre_header
            _
          $region143: #{custom-call.23} parent=140 // loop_header
            %s1041 = sphi [#allocation11], %s1063
            %s1042 = sphi %s5, %s1064
            %v1043 = vphi %v1040, %v1065
            %s1044 = ssub.s32 %s1039, 64
            %p1045 = scmp.gt.s32.totalorder %s1041, %s1044
          $region144: #{custom-call.23} parent=140 // loop_header_branch
            %1047 = sbr.rel (%p1045) target = $region148
          $region145: #{custom-call.23} parent=140 // loop_body
            %1048 = vst [vmem:[%s1042] sm:$0xff] %v1043
            %v1049 = vld [vmem:[%s1041 + $0x8] sm:$0xff]
            %1050 = vst [vmem:[%s1042 + $0x8] sm:$0xff] %v1049
            %v1051 = vld [vmem:[%s1041 + $0x10] sm:$0xff]
            %1052 = vst [vmem:[%s1042 + $0x10] sm:$0xff] %v1051
            %v1053 = vld [vmem:[%s1041 + $0x18] sm:$0xff]
            %1054 = vst [vmem:[%s1042 + $0x18] sm:$0xff] %v1053
            %v1055 = vld [vmem:[%s1041 + $0x20] sm:$0xff]
            %1056 = vst [vmem:[%s1042 + $0x20] sm:$0xff] %v1055
            %v1057 = vld [vmem:[%s1041 + $0x28] sm:$0xff]
            %1058 = vst [vmem:[%s1042 + $0x28] sm:$0xff] %v1057
            %v1059 = vld [vmem:[%s1041 + $0x30] sm:$0xff]
            %1060 = vst [vmem:[%s1042 + $0x30] sm:$0xff] %v1059
            %v1061 = vld [vmem:[%s1041 + $0x38] sm:$0xff]
            %1062 = vst [vmem:[%s1042 + $0x38] sm:$0xff] %v1061
          $region146: #{custom-call.23} parent=140 // loop_footer
            %s1063 = scalar_lea.vmem %s1041, 64
            %s1064 = scalar_lea.vmem %s1042, 64
            %v1065 = vld [vmem:[%s1041 + $0x40] sm:$0xff]
          $region147: #{custom-call.23} parent=140 // loop_footer_branch
            %1066 = sbr.rel target = $region143
          $region148: #{custom-call.23} parent=140 // loop_exit
            _
          // While loop
          $region149: #{custom-call.23} parent=140 // loop_pre_header
            _
          $region150: #{custom-call.23} parent=140 // loop_header
            %s1067 = sphi %s1041, %s1075
            %s1068 = sphi %s1042, %s1076
            %v1069 = vphi %v1043, %v1069
            %p1070 = scmp.gt.s32.totalorder %s1067, %s1039
          $region151: #{custom-call.23} parent=140 // loop_header_branch
            %1072 = sbr.rel (%p1070) target = $region155
          $region152: #{custom-call.23} parent=140 // loop_body
            %v1073 = vld [vmem:[%s1067] sm:$0xff]
            %1074 = vst [vmem:[%s1068] sm:$0xff] %v1073
          $region153: #{custom-call.23} parent=140 // loop_footer
            %s1075 = scalar_lea.vmem %s1067, 8
            %s1076 = scalar_lea.vmem %s1068, 8
          $region154: #{custom-call.23} parent=140 // loop_footer_branch
            %1077 = sbr.rel target = $region150
          $region155: #{custom-call.23} parent=140 // loop_exit
            _
        $region141: #{custom-call.23} parent=136 // pred_fallthru
          _
        %s1078 = sand.u32 1, 7
        %s1079 = sshll.u32 1, %s1078
        %s1080 = ssub.s32 %s1079, 1
        %s1081 = smul.u32 %s1031, 128
        %s1082 = sshra.s32 %s1081, 4
        %s1083 = scalar_lea.vmem %s5, %s1082
        %s1084 = smul.u32 %s1031, 128
        %s1085 = sshra.s32 %s1084, 4
        %s1086 = scalar_lea.vmem [#allocation11], %s1085
        %v1087 = vld [vmem:[%s1086] sm:%s1080]
        %1088 = vst [vmem:[%s1083] sm:%s1080] %v1087
      $region137: #{custom-call.23} parent=132 // pred_fallthru
        _
    $region133: #{custom-call.23} parent=1 // pred_fallthru
      _
    %p1090 = scmp.gt.s32.totalorder 4, 0
    // Predicated region
    $region156: #{custom-call.23} parent=1 // pred_check
      %p1091 = pneg %p1090
    $region157: #{custom-call.23} parent=1 // pred_check_branch
      %1093 = sbr.rel (%p1091) target = $region159
    $region158: #{custom-call.23} parent=1 // pred_region
      %s1094 = sshra.s32 4, 3
      %p1095 = scmp.gt.s32.totalorder %s1094, 0
      // Predicated region
      $region160: #{custom-call.23} parent=158 // pred_check
        %p1096 = pneg %p1095
      $region161: #{custom-call.23} parent=158 // pred_check_branch
        %1098 = sbr.rel (%p1096) target = $region163
      $region162: #{custom-call.23} parent=158 // pred_region
        %s1099 = ssub.s32 %s1094, 1
        %s1100 = smul.u32 %s1099, 128
        %s1101 = sshra.s32 %s1100, 4
        %s1102 = scalar_lea.vmem [#allocation13], %s1101
        %v1103 = vld [vmem:[#allocation13] sm:$0xff]
        // While loop
        $region164: #{custom-call.23} parent=162 // loop_pre_header
          _
        $region165: #{custom-call.23} parent=162 // loop_header
          %s1104 = sphi [#allocation13], %s1126
          %s1105 = sphi %s6, %s1127
          %v1106 = vphi %v1103, %v1128
          %s1107 = ssub.s32 %s1102, 64
          %p1108 = scmp.gt.s32.totalorder %s1104, %s1107
        $region166: #{custom-call.23} parent=162 // loop_header_branch
          %1110 = sbr.rel (%p1108) target = $region170
        $region167: #{custom-call.23} parent=162 // loop_body
          %1111 = vst [vmem:[%s1105] sm:$0xff] %v1106
          %v1112 = vld [vmem:[%s1104 + $0x8] sm:$0xff]
          %1113 = vst [vmem:[%s1105 + $0x8] sm:$0xff] %v1112
          %v1114 = vld [vmem:[%s1104 + $0x10] sm:$0xff]
          %1115 = vst [vmem:[%s1105 + $0x10] sm:$0xff] %v1114
          %v1116 = vld [vmem:[%s1104 + $0x18] sm:$0xff]
          %1117 = vst [vmem:[%s1105 + $0x18] sm:$0xff] %v1116
          %v1118 = vld [vmem:[%s1104 + $0x20] sm:$0xff]
          %1119 = vst [vmem:[%s1105 + $0x20] sm:$0xff] %v1118
          %v1120 = vld [vmem:[%s1104 + $0x28] sm:$0xff]
          %1121 = vst [vmem:[%s1105 + $0x28] sm:$0xff] %v1120
          %v1122 = vld [vmem:[%s1104 + $0x30] sm:$0xff]
          %1123 = vst [vmem:[%s1105 + $0x30] sm:$0xff] %v1122
          %v1124 = vld [vmem:[%s1104 + $0x38] sm:$0xff]
          %1125 = vst [vmem:[%s1105 + $0x38] sm:$0xff] %v1124
        $region168: #{custom-call.23} parent=162 // loop_footer
          %s1126 = scalar_lea.vmem %s1104, 64
          %s1127 = scalar_lea.vmem %s1105, 64
          %v1128 = vld [vmem:[%s1104 + $0x40] sm:$0xff]
        $region169: #{custom-call.23} parent=162 // loop_footer_branch
          %1129 = sbr.rel target = $region165
        $region170: #{custom-call.23} parent=162 // loop_exit
          _
        // While loop
        $region171: #{custom-call.23} parent=162 // loop_pre_header
          _
        $region172: #{custom-call.23} parent=162 // loop_header
          %s1130 = sphi %s1104, %s1138
          %s1131 = sphi %s1105, %s1139
          %v1132 = vphi %v1106, %v1132
          %p1133 = scmp.gt.s32.totalorder %s1130, %s1102
        $region173: #{custom-call.23} parent=162 // loop_header_branch
          %1135 = sbr.rel (%p1133) target = $region177
        $region174: #{custom-call.23} parent=162 // loop_body
          %v1136 = vld [vmem:[%s1130] sm:$0xff]
          %1137 = vst [vmem:[%s1131] sm:$0xff] %v1136
        $region175: #{custom-call.23} parent=162 // loop_footer
          %s1138 = scalar_lea.vmem %s1130, 8
          %s1139 = scalar_lea.vmem %s1131, 8
        $region176: #{custom-call.23} parent=162 // loop_footer_branch
          %1140 = sbr.rel target = $region172
        $region177: #{custom-call.23} parent=162 // loop_exit
          _
      $region163: #{custom-call.23} parent=158 // pred_fallthru
        _
      %s1141 = sand.u32 4, 7
      %s1142 = sshll.u32 1, %s1141
      %s1143 = ssub.s32 %s1142, 1
      %s1144 = smul.u32 %s1094, 128
      %s1145 = sshra.s32 %s1144, 4
      %s1146 = scalar_lea.vmem %s6, %s1145
      %s1147 = smul.u32 %s1094, 128
      %s1148 = sshra.s32 %s1147, 4
      %s1149 = scalar_lea.vmem [#allocation13], %s1148
      %v1150 = vld [vmem:[%s1149] sm:%s1143]
      %1151 = vst [vmem:[%s1146] sm:%s1143] %v1150
    $region159: #{custom-call.23} parent=1 // pred_fallthru
      _
    %p1153 = scmp.gt.s32.totalorder 4, 0
    // Predicated region
    $region178: #{custom-call.23} parent=1 // pred_check
      %p1154 = pneg %p1153
    $region179: #{custom-call.23} parent=1 // pred_check_branch
      %1156 = sbr.rel (%p1154) target = $region181
    $region180: #{custom-call.23} parent=1 // pred_region
      %s1157 = sshra.s32 4, 3
      %p1158 = scmp.gt.s32.totalorder %s1157, 0
      // Predicated region
      $region182: #{custom-call.23} parent=180 // pred_check
        %p1159 = pneg %p1158
      $region183: #{custom-call.23} parent=180 // pred_check_branch
        %1161 = sbr.rel (%p1159) target = $region185
      $region184: #{custom-call.23} parent=180 // pred_region
        %s1162 = ssub.s32 %s1157, 1
        %s1163 = smul.u32 %s1162, 128
        %s1164 = sshra.s32 %s1163, 4
        %s1165 = scalar_lea.vmem [#allocation15], %s1164
        %v1166 = vld [vmem:[#allocation15] sm:$0xff]
        // While loop
        $region186: #{custom-call.23} parent=184 // loop_pre_header
          _
        $region187: #{custom-call.23} parent=184 // loop_header
          %s1167 = sphi [#allocation15], %s1189
          %s1168 = sphi %s7, %s1190
          %v1169 = vphi %v1166, %v1191
          %s1170 = ssub.s32 %s1165, 64
          %p1171 = scmp.gt.s32.totalorder %s1167, %s1170
        $region188: #{custom-call.23} parent=184 // loop_header_branch
          %1173 = sbr.rel (%p1171) target = $region192
        $region189: #{custom-call.23} parent=184 // loop_body
          %1174 = vst [vmem:[%s1168] sm:$0xff] %v1169
          %v1175 = vld [vmem:[%s1167 + $0x8] sm:$0xff]
          %1176 = vst [vmem:[%s1168 + $0x8] sm:$0xff] %v1175
          %v1177 = vld [vmem:[%s1167 + $0x10] sm:$0xff]
          %1178 = vst [vmem:[%s1168 + $0x10] sm:$0xff] %v1177
          %v1179 = vld [vmem:[%s1167 + $0x18] sm:$0xff]
          %1180 = vst [vmem:[%s1168 + $0x18] sm:$0xff] %v1179
          %v1181 = vld [vmem:[%s1167 + $0x20] sm:$0xff]
          %1182 = vst [vmem:[%s1168 + $0x20] sm:$0xff] %v1181
          %v1183 = vld [vmem:[%s1167 + $0x28] sm:$0xff]
          %1184 = vst [vmem:[%s1168 + $0x28] sm:$0xff] %v1183
          %v1185 = vld [vmem:[%s1167 + $0x30] sm:$0xff]
          %1186 = vst [vmem:[%s1168 + $0x30] sm:$0xff] %v1185
          %v1187 = vld [vmem:[%s1167 + $0x38] sm:$0xff]
          %1188 = vst [vmem:[%s1168 + $0x38] sm:$0xff] %v1187
        $region190: #{custom-call.23} parent=184 // loop_footer
          %s1189 = scalar_lea.vmem %s1167, 64
          %s1190 = scalar_lea.vmem %s1168, 64
          %v1191 = vld [vmem:[%s1167 + $0x40] sm:$0xff]
        $region191: #{custom-call.23} parent=184 // loop_footer_branch
          %1192 = sbr.rel target = $region187
        $region192: #{custom-call.23} parent=184 // loop_exit
          _
        // While loop
        $region193: #{custom-call.23} parent=184 // loop_pre_header
          _
        $region194: #{custom-call.23} parent=184 // loop_header
          %s1193 = sphi %s1167, %s1201
          %s1194 = sphi %s1168, %s1202
          %v1195 = vphi %v1169, %v1195
          %p1196 = scmp.gt.s32.totalorder %s1193, %s1165
        $region195: #{custom-call.23} parent=184 // loop_header_branch
          %1198 = sbr.rel (%p1196) target = $region199
        $region196: #{custom-call.23} parent=184 // loop_body
          %v1199 = vld [vmem:[%s1193] sm:$0xff]
          %1200 = vst [vmem:[%s1194] sm:$0xff] %v1199
        $region197: #{custom-call.23} parent=184 // loop_footer
          %s1201 = scalar_lea.vmem %s1193, 8
          %s1202 = scalar_lea.vmem %s1194, 8
        $region198: #{custom-call.23} parent=184 // loop_footer_branch
          %1203 = sbr.rel target = $region194
        $region199: #{custom-call.23} parent=184 // loop_exit
          _
      $region185: #{custom-call.23} parent=180 // pred_fallthru
        _
      %s1204 = sand.u32 4, 7
      %s1205 = sshll.u32 1, %s1204
      %s1206 = ssub.s32 %s1205, 1
      %s1207 = smul.u32 %s1157, 128
      %s1208 = sshra.s32 %s1207, 4
      %s1209 = scalar_lea.vmem %s7, %s1208
      %s1210 = smul.u32 %s1157, 128
      %s1211 = sshra.s32 %s1210, 4
      %s1212 = scalar_lea.vmem [#allocation15], %s1211
      %v1213 = vld [vmem:[%s1212] sm:%s1206]
      %1214 = vst [vmem:[%s1209] sm:%s1206] %v1213
    $region181: #{custom-call.23} parent=1 // pred_fallthru
      _
    %p1216 = scmp.gt.s32.totalorder 4, 0
    // Predicated region
    $region200: #{custom-call.23} parent=1 // pred_check
      %p1217 = pneg %p1216
    $region201: #{custom-call.23} parent=1 // pred_check_branch
      %1219 = sbr.rel (%p1217) target = $region203
    $region202: #{custom-call.23} parent=1 // pred_region
      %s1220 = sshra.s32 4, 3
      %p1221 = scmp.gt.s32.totalorder %s1220, 0
      // Predicated region
      $region204: #{custom-call.23} parent=202 // pred_check
        %p1222 = pneg %p1221
      $region205: #{custom-call.23} parent=202 // pred_check_branch
        %1224 = sbr.rel (%p1222) target = $region207
      $region206: #{custom-call.23} parent=202 // pred_region
        %s1225 = ssub.s32 %s1220, 1
        %s1226 = smul.u32 %s1225, 128
        %s1227 = sshra.s32 %s1226, 4
        %s1228 = scalar_lea.vmem [#allocation17], %s1227
        %v1229 = vld [vmem:[#allocation17] sm:$0xff]
        // While loop
        $region208: #{custom-call.23} parent=206 // loop_pre_header
          _
        $region209: #{custom-call.23} parent=206 // loop_header
          %s1230 = sphi [#allocation17], %s1252
          %s1231 = sphi %s8, %s1253
          %v1232 = vphi %v1229, %v1254
          %s1233 = ssub.s32 %s1228, 64
          %p1234 = scmp.gt.s32.totalorder %s1230, %s1233
        $region210: #{custom-call.23} parent=206 // loop_header_branch
          %1236 = sbr.rel (%p1234) target = $region214
        $region211: #{custom-call.23} parent=206 // loop_body
          %1237 = vst [vmem:[%s1231] sm:$0xff] %v1232
          %v1238 = vld [vmem:[%s1230 + $0x8] sm:$0xff]
          %1239 = vst [vmem:[%s1231 + $0x8] sm:$0xff] %v1238
          %v1240 = vld [vmem:[%s1230 + $0x10] sm:$0xff]
          %1241 = vst [vmem:[%s1231 + $0x10] sm:$0xff] %v1240
          %v1242 = vld [vmem:[%s1230 + $0x18] sm:$0xff]
          %1243 = vst [vmem:[%s1231 + $0x18] sm:$0xff] %v1242
          %v1244 = vld [vmem:[%s1230 + $0x20] sm:$0xff]
          %1245 = vst [vmem:[%s1231 + $0x20] sm:$0xff] %v1244
          %v1246 = vld [vmem:[%s1230 + $0x28] sm:$0xff]
          %1247 = vst [vmem:[%s1231 + $0x28] sm:$0xff] %v1246
          %v1248 = vld [vmem:[%s1230 + $0x30] sm:$0xff]
          %1249 = vst [vmem:[%s1231 + $0x30] sm:$0xff] %v1248
          %v1250 = vld [vmem:[%s1230 + $0x38] sm:$0xff]
          %1251 = vst [vmem:[%s1231 + $0x38] sm:$0xff] %v1250
        $region212: #{custom-call.23} parent=206 // loop_footer
          %s1252 = scalar_lea.vmem %s1230, 64
          %s1253 = scalar_lea.vmem %s1231, 64
          %v1254 = vld [vmem:[%s1230 + $0x40] sm:$0xff]
        $region213: #{custom-call.23} parent=206 // loop_footer_branch
          %1255 = sbr.rel target = $region209
        $region214: #{custom-call.23} parent=206 // loop_exit
          _
        // While loop
        $region215: #{custom-call.23} parent=206 // loop_pre_header
          _
        $region216: #{custom-call.23} parent=206 // loop_header
          %s1256 = sphi %s1230, %s1264
          %s1257 = sphi %s1231, %s1265
          %v1258 = vphi %v1232, %v1258
          %p1259 = scmp.gt.s32.totalorder %s1256, %s1228
        $region217: #{custom-call.23} parent=206 // loop_header_branch
          %1261 = sbr.rel (%p1259) target = $region221
        $region218: #{custom-call.23} parent=206 // loop_body
          %v1262 = vld [vmem:[%s1256] sm:$0xff]
          %1263 = vst [vmem:[%s1257] sm:$0xff] %v1262
        $region219: #{custom-call.23} parent=206 // loop_footer
          %s1264 = scalar_lea.vmem %s1256, 8
          %s1265 = scalar_lea.vmem %s1257, 8
        $region220: #{custom-call.23} parent=206 // loop_footer_branch
          %1266 = sbr.rel target = $region216
        $region221: #{custom-call.23} parent=206 // loop_exit
          _
      $region207: #{custom-call.23} parent=202 // pred_fallthru
        _
      %s1267 = sand.u32 4, 7
      %s1268 = sshll.u32 1, %s1267
      %s1269 = ssub.s32 %s1268, 1
      %s1270 = smul.u32 %s1220, 128
      %s1271 = sshra.s32 %s1270, 4
      %s1272 = scalar_lea.vmem %s8, %s1271
      %s1273 = smul.u32 %s1220, 128
      %s1274 = sshra.s32 %s1273, 4
      %s1275 = scalar_lea.vmem [#allocation17], %s1274
      %v1276 = vld [vmem:[%s1275] sm:%s1269]
      %1277 = vst [vmem:[%s1272] sm:%s1269] %v1276
    $region203: #{custom-call.23} parent=1 // pred_fallthru
      _
    %p1279 = scmp.gt.s32.totalorder 4, 0
    // Predicated region
    $region222: #{custom-call.23} parent=1 // pred_check
      %p1280 = pneg %p1279
    $region223: #{custom-call.23} parent=1 // pred_check_branch
      %1282 = sbr.rel (%p1280) target = $region225
    $region224: #{custom-call.23} parent=1 // pred_region
      %s1283 = sshra.s32 4, 3
      %p1284 = scmp.gt.s32.totalorder %s1283, 0
      // Predicated region
      $region226: #{custom-call.23} parent=224 // pred_check
        %p1285 = pneg %p1284
      $region227: #{custom-call.23} parent=224 // pred_check_branch
        %1287 = sbr.rel (%p1285) target = $region229
      $region228: #{custom-call.23} parent=224 // pred_region
        %s1288 = ssub.s32 %s1283, 1
        %s1289 = smul.u32 %s1288, 128
        %s1290 = sshra.s32 %s1289, 4
        %s1291 = scalar_lea.vmem [#allocation19], %s1290
        %v1292 = vld [vmem:[#allocation19] sm:$0xff]
        // While loop
        $region230: #{custom-call.23} parent=228 // loop_pre_header
          _
        $region231: #{custom-call.23} parent=228 // loop_header
          %s1293 = sphi [#allocation19], %s1315
          %s1294 = sphi %s9, %s1316
          %v1295 = vphi %v1292, %v1317
          %s1296 = ssub.s32 %s1291, 64
          %p1297 = scmp.gt.s32.totalorder %s1293, %s1296
        $region232: #{custom-call.23} parent=228 // loop_header_branch
          %1299 = sbr.rel (%p1297) target = $region236
        $region233: #{custom-call.23} parent=228 // loop_body
          %1300 = vst [vmem:[%s1294] sm:$0xff] %v1295
          %v1301 = vld [vmem:[%s1293 + $0x8] sm:$0xff]
          %1302 = vst [vmem:[%s1294 + $0x8] sm:$0xff] %v1301
          %v1303 = vld [vmem:[%s1293 + $0x10] sm:$0xff]
          %1304 = vst [vmem:[%s1294 + $0x10] sm:$0xff] %v1303
          %v1305 = vld [vmem:[%s1293 + $0x18] sm:$0xff]
          %1306 = vst [vmem:[%s1294 + $0x18] sm:$0xff] %v1305
          %v1307 = vld [vmem:[%s1293 + $0x20] sm:$0xff]
          %1308 = vst [vmem:[%s1294 + $0x20] sm:$0xff] %v1307
          %v1309 = vld [vmem:[%s1293 + $0x28] sm:$0xff]
          %1310 = vst [vmem:[%s1294 + $0x28] sm:$0xff] %v1309
          %v1311 = vld [vmem:[%s1293 + $0x30] sm:$0xff]
          %1312 = vst [vmem:[%s1294 + $0x30] sm:$0xff] %v1311
          %v1313 = vld [vmem:[%s1293 + $0x38] sm:$0xff]
          %1314 = vst [vmem:[%s1294 + $0x38] sm:$0xff] %v1313
        $region234: #{custom-call.23} parent=228 // loop_footer
          %s1315 = scalar_lea.vmem %s1293, 64
          %s1316 = scalar_lea.vmem %s1294, 64
          %v1317 = vld [vmem:[%s1293 + $0x40] sm:$0xff]
        $region235: #{custom-call.23} parent=228 // loop_footer_branch
          %1318 = sbr.rel target = $region231
        $region236: #{custom-call.23} parent=228 // loop_exit
          _
        // While loop
        $region237: #{custom-call.23} parent=228 // loop_pre_header
          _
        $region238: #{custom-call.23} parent=228 // loop_header
          %s1319 = sphi %s1293, %s1327
          %s1320 = sphi %s1294, %s1328
          %v1321 = vphi %v1295, %v1321
          %p1322 = scmp.gt.s32.totalorder %s1319, %s1291
        $region239: #{custom-call.23} parent=228 // loop_header_branch
          %1324 = sbr.rel (%p1322) target = $region243
        $region240: #{custom-call.23} parent=228 // loop_body
          %v1325 = vld [vmem:[%s1319] sm:$0xff]
          %1326 = vst [vmem:[%s1320] sm:$0xff] %v1325
        $region241: #{custom-call.23} parent=228 // loop_footer
          %s1327 = scalar_lea.vmem %s1319, 8
          %s1328 = scalar_lea.vmem %s1320, 8
        $region242: #{custom-call.23} parent=228 // loop_footer_branch
          %1329 = sbr.rel target = $region238
        $region243: #{custom-call.23} parent=228 // loop_exit
          _
      $region229: #{custom-call.23} parent=224 // pred_fallthru
        _
      %s1330 = sand.u32 4, 7
      %s1331 = sshll.u32 1, %s1330
      %s1332 = ssub.s32 %s1331, 1
      %s1333 = smul.u32 %s1283, 128
      %s1334 = sshra.s32 %s1333, 4
      %s1335 = scalar_lea.vmem %s9, %s1334
      %s1336 = smul.u32 %s1283, 128
      %s1337 = sshra.s32 %s1336, 4
      %s1338 = scalar_lea.vmem [#allocation19], %s1337
      %v1339 = vld [vmem:[%s1338] sm:%s1332]
      %1340 = vst [vmem:[%s1335] sm:%s1332] %v1339
    $region225: #{custom-call.23} parent=1 // pred_fallthru
      _
    // Predicated region
    $region244: #{custom-call.23} parent=1 // pred_check
      _
    $region245: #{custom-call.23} parent=1 // pred_check_branch
      %1342 = sbr.rel (0) target = $region247
    $region246: #{custom-call.23} parent=1 // pred_region
      _
    $region247: #{custom-call.23} parent=1 // pred_fallthru
      _
    // Predicated region
    $region248: #{custom-call.23} parent=1 // pred_check
      _
    $region249: #{custom-call.23} parent=1 // pred_check_branch
      %1344 = sbr.rel (0) target = $region251
    $region250: #{custom-call.23} parent=1 // pred_region
      _
    $region251: #{custom-call.23} parent=1 // pred_fallthru
      _

// kernel: reverse
$region0: #{reverse}
  %s0 = inlined_call_operand.vmem [shape: f32[8], index: 0, kind: input, shape index: {}]
  %s1 = inlined_call_operand.vmem [shape: f32[8], index: 1, kind: output, shape index: {}]
  %v2 = vlaneseq
  %v3 = vsub.s32 7, %v2
  %4 = vset.pattern.permute.xlu0 %v3
  $region1: #{reverse} parent=0
    #allocation0 [shape = 'u8[8192]{0}', space=vmem, size = 0x2000, scoped, tag = 'operand span for operand 0']
    #allocation1 [shape = 'u8[1024]{0}', space=vmem, size = 0x400, scoped, tag = 'packed  for operand 0']
    #allocation2 [shape = 'u8[4096]{0}', space=vmem, size = 0x1000, scoped, tag = 'operand span for operand 1']
    #allocation3 [shape = 'u8[512]{0}', space=vmem, size = 0x400, scoped, tag = 'packed  for operand 1']
    %s5 = scalar_lea.vmem [#allocation1], 1
    // Predicated region
    $region2: #{reverse} parent=1 // pred_check
      _
    $region3: #{reverse} parent=1 // pred_check_branch
      %7 = sbr.rel (0) target = $region5
    $region4: #{reverse} parent=1 // pred_region
      // Predicated region
      $region6: #{reverse} parent=4 // pred_check
        _
      $region7: #{reverse} parent=4 // pred_check_branch
        %9 = sbr.rel target = $region9
      $region8: #{reverse} parent=4 // pred_region
        // Predicated region
        $region21: #{reverse} parent=8 // pred_check
          _
        $region22: #{reverse} parent=8 // pred_check_branch
          %25 = sbr.rel (0) target = $region24
        $region23: #{reverse} parent=8 // pred_region
          %s27 = ssub.s32 2, 1
          loop: start=0, step=1, limit=1
          $region25: #{reverse} parent=23 // loop_pre_header
            _
          $region26: #{reverse} parent=23 // loop_header
            %s29 = sphi 0, %s33
            %p30 = scmp.ge.s32.totalorder %s29, 1
            %s34 = sphi %s0, %s0
            %s35 = sphi %s5, %s5
          $region27: #{reverse} parent=23 // loop_header_branch
            %32 = sbr.rel (%p30) target = $region31
          $region28: #{reverse} parent=23 // loop_body
            %v36 = vld [vmem:[%s34] sm:%s27]
            %37 = vst [vmem:[%s35] sm:%s27] %v36
          $region29: #{reverse} parent=23 // loop_footer
            %s33 = sadd.s32 1, %s29
          $region30: #{reverse} parent=23 // loop_footer_branch
            %28 = sbr.rel target = $region26
          $region31: #{reverse} parent=23 // loop_exit
            _
        $region24: #{reverse} parent=8 // pred_fallthru
          _
      $region9: #{reverse} parent=4 // pred_fallthru
        _
      // Predicated region
      $region10: #{reverse} parent=4 // pred_check
        _
      $region11: #{reverse} parent=4 // pred_check_branch
        %11 = sbr.rel (0) target = $region13
      $region12: #{reverse} parent=4 // pred_region
        %s13 = ssub.s32 2, 1
        loop: start=0, step=1, limit=1
        $region14: #{reverse} parent=12 // loop_pre_header
          _
        $region15: #{reverse} parent=12 // loop_header
          %s15 = sphi 0, %s19
          %p16 = scmp.ge.s32.totalorder %s15, 1
          %s20 = sphi %s0, %s0
          %s21 = sphi %s5, %s5
        $region16: #{reverse} parent=12 // loop_header_branch
          %18 = sbr.rel (%p16) target = $region20
        $region17: #{reverse} parent=12 // loop_body
          %v22 = vld [vmem:[%s20] sm:%s13]
          %23 = vst [vmem:[%s21] sm:%s13] %v22
        $region18: #{reverse} parent=12 // loop_footer
          %s19 = sadd.s32 1, %s15
        $region19: #{reverse} parent=12 // loop_footer_branch
          %14 = sbr.rel target = $region15
        $region20: #{reverse} parent=12 // loop_exit
          _
      $region13: #{reverse} parent=4 // pred_fallthru
        _
    $region5: #{reverse} parent=1 // pred_fallthru
      _
    %38 = vnop
    %s40 = sshll.u32 1, 1
    %s41 = ssub.s32 %s40, 1
    %s42 = scalar_lea.vmem [#allocation1], 1
    %v43 = vld [vmem:[%s42] sm:%s41]
    %s44 = scalar_lea.vmem [#allocation0], 8
    %45 = vst [vmem:[%s44] sm:%s41] %v43
    %v46 = vld [vmem:[#allocation1] sm:%s41]
    %47 = vst [vmem:[#allocation0] sm:%s41] %v46
    %s48 = scalar_lea.vmem [#allocation0], 7
    %v49 = vld [vmem:[%s48] ss:$-1 sm:$0xff]
    %v50 = vrot.slane %v49, 7
    %51 = vperm.xlu0 %4, %v50
    %v52 = vpop.permute.xlu0 %51
    %53 = vst [vmem:[#allocation2] sm:$0xff] %v52
    %s54 = scalar_lea.vmem [#allocation0], 8
    %s55 = scalar_lea.vmem %s54, 7 [#allocation0]
    %v56 = vld [vmem:[%s55] ss:$-1 sm:$0xff]
    %v57 = vrot.slane %v56, 7
    %58 = vperm.xlu0 %4, %v57
    %v59 = vpop.permute.xlu0 %58
    %v60 = vlaneseq
    %v61 = vshrl.u32 %v60, 7
    %vm62 = vcmp.lt.s32.totalorder %v61, 1
    %63 = vst.msk [vmem:[#allocation2] sm:$0xff] %vm62, %v59
    %s65 = sshll.u32 1, 1
    %s66 = ssub.s32 %s65, 1
    %v68 = vld [vmem:[#allocation2] sm:%s66]
    %s69 = sshll.u32 1, 1
    %s70 = ssub.s32 %s69, 1
    %71 = vst [vmem:[#allocation3] sm:%s70] %v68
    // Predicated region
    $region32: #{reverse} parent=1 // pred_check
      _
    $region33: #{reverse} parent=1 // pred_check_branch
      %73 = sbr.rel (0) target = $region35
    $region34: #{reverse} parent=1 // pred_region
      // Predicated region
      $region36: #{reverse} parent=34 // pred_check
        _
      $region37: #{reverse} parent=34 // pred_check_branch
        %75 = sbr.rel target = $region39
      $region38: #{reverse} parent=34 // pred_region
        // Predicated region
        $region51: #{reverse} parent=38 // pred_check
          _
        $region52: #{reverse} parent=38 // pred_check_branch
          %91 = sbr.rel (0) target = $region54
        $region53: #{reverse} parent=38 // pred_region
          %s93 = ssub.s32 2, 1
          loop: start=0, step=1, limit=1
          $region55: #{reverse} parent=53 // loop_pre_header
            _
          $region56: #{reverse} parent=53 // loop_header
            %s95 = sphi 0, %s99
            %p96 = scmp.ge.s32.totalorder %s95, 1
            %s100 = sphi [#allocation3], [#allocation3]
            %s101 = sphi %s1, %s1
          $region57: #{reverse} parent=53 // loop_header_branch
            %98 = sbr.rel (%p96) target = $region61
          $region58: #{reverse} parent=53 // loop_body
            %v102 = vld [vmem:[%s100] sm:%s93]
            %103 = vst [vmem:[%s101] sm:%s93] %v102
          $region59: #{reverse} parent=53 // loop_footer
            %s99 = sadd.s32 1, %s95
          $region60: #{reverse} parent=53 // loop_footer_branch
            %94 = sbr.rel target = $region56
          $region61: #{reverse} parent=53 // loop_exit
            _
        $region54: #{reverse} parent=38 // pred_fallthru
          _
      $region39: #{reverse} parent=34 // pred_fallthru
        _
      // Predicated region
      $region40: #{reverse} parent=34 // pred_check
        _
      $region41: #{reverse} parent=34 // pred_check_branch
        %77 = sbr.rel (0) target = $region43
      $region42: #{reverse} parent=34 // pred_region
        %s79 = ssub.s32 2, 1
        loop: start=0, step=1, limit=1
        $region44: #{reverse} parent=42 // loop_pre_header
          _
        $region45: #{reverse} parent=42 // loop_header
          %s81 = sphi 0, %s85
          %p82 = scmp.ge.s32.totalorder %s81, 1
          %s86 = sphi [#allocation3], [#allocation3]
          %s87 = sphi %s1, %s1
        $region46: #{reverse} parent=42 // loop_header_branch
          %84 = sbr.rel (%p82) target = $region50
        $region47: #{reverse} parent=42 // loop_body
          %v88 = vld [vmem:[%s86] sm:%s79]
          %89 = vst [vmem:[%s87] sm:%s79] %v88
        $region48: #{reverse} parent=42 // loop_footer
          %s85 = sadd.s32 1, %s81
        $region49: #{reverse} parent=42 // loop_footer_branch
          %80 = sbr.rel target = $region45
        $region50: #{reverse} parent=42 // loop_exit
          _
      $region43: #{reverse} parent=34 // pred_fallthru
        _
    $region35: #{reverse} parent=1 // pred_fallthru
      _
    %104 = vnop

// kernel: custom-call.16
$region0: #{custom-call.16}
  %s0 = inlined_call_operand.vmem [shape: f32[8,8], index: 0, kind: input, shape index: {}]
  %s1 = inlined_call_operand.vmem [shape: f32[8,8], index: 1, kind: output, shape index: {0}]
  %s2 = inlined_call_operand.vmem [shape: f32[8], index: 2, kind: output, shape index: {1}]
  %3 = xla_tuple %s1, %s2
  $region1: #{custom-call.16} parent=0
    #allocation0 [shape = 'u8[4096]{0}', space=vmem, size = 0x1000, scoped, tag = 'operand span for operand 0']
    #allocation1 [shape = 'u8[4096]{0}', space=vmem, size = 0x1000, scoped, tag = 'operand span for operand 1']
    #allocation2 [shape = 'u8[4096]{0}', space=vmem, size = 0x1000, scoped, tag = 'operand span for operand 2']
    #allocation3 [shape = 'u8[512]{0}', space=vmem, size = 0x400, scoped, tag = 'packed  for operand 2']
    #allocation4 [shape = 'f32[8,128]{1,0}', space=vmem, size = 0x1000, scoped, tag = 'scratch for Householder reflectors']
    // Predicated region
    $region2: #{custom-call.16} parent=1 // pred_check
      _
    $region3: #{custom-call.16} parent=1 // pred_check_branch
      %5 = sbr.rel (0) target = $region5
    $region4: #{custom-call.16} parent=1 // pred_region
      // Predicated region
      $region6: #{custom-call.16} parent=4 // pred_check
        _
      $region7: #{custom-call.16} parent=4 // pred_check_branch
        %7 = sbr.rel (0) target = $region9
      $region8: #{custom-call.16} parent=4 // pred_region
        // Predicated region
        $region21: #{custom-call.16} parent=8 // pred_check
          _
        $region22: #{custom-call.16} parent=8 // pred_check_branch
          %23 = sbr.rel (0) target = $region24
        $region23: #{custom-call.16} parent=8 // pred_region
          loop: start=0, step=1, limit=1
          $region25: #{custom-call.16} parent=23 // loop_pre_header
            _
          $region26: #{custom-call.16} parent=23 // loop_header
            %s25 = sphi 0, %s29
            %p26 = scmp.ge.s32.totalorder %s25, 1
            %s30 = sphi %s0, %s0
            %s31 = sphi [#allocation0], [#allocation0]
          $region27: #{custom-call.16} parent=23 // loop_header_branch
            %28 = sbr.rel (%p26) target = $region31
          $region28: #{custom-call.16} parent=23 // loop_body
            %v32 = vld [vmem:[%s30] sm:$0xff]
            %33 = vst [vmem:[%s31] sm:$0xff] %v32
          $region29: #{custom-call.16} parent=23 // loop_footer
            %s29 = sadd.s32 1, %s25
          $region30: #{custom-call.16} parent=23 // loop_footer_branch
            %24 = sbr.rel target = $region26
          $region31: #{custom-call.16} parent=23 // loop_exit
            _
        $region24: #{custom-call.16} parent=8 // pred_fallthru
          _
        // Predicated region
        $region32: #{custom-call.16} parent=8 // pred_check
          _
        $region33: #{custom-call.16} parent=8 // pred_check_branch
          %35 = sbr.rel target = $region35
        $region34: #{custom-call.16} parent=8 // pred_region
          _
        $region35: #{custom-call.16} parent=8 // pred_fallthru
          _
      $region9: #{custom-call.16} parent=4 // pred_fallthru
        _
      // Predicated region
      $region10: #{custom-call.16} parent=4 // pred_check
        _
      $region11: #{custom-call.16} parent=4 // pred_check_branch
        %9 = sbr.rel target = $region13
      $region12: #{custom-call.16} parent=4 // pred_region
        %s11 = ssub.s32 256, 1
        loop: start=0, step=1, limit=1
        $region14: #{custom-call.16} parent=12 // loop_pre_header
          _
        $region15: #{custom-call.16} parent=12 // loop_header
          %s13 = sphi 0, %s17
          %p14 = scmp.ge.s32.totalorder %s13, 1
          %s18 = sphi %s0, %s0
          %s19 = sphi [#allocation0], [#allocation0]
        $region16: #{custom-call.16} parent=12 // loop_header_branch
          %16 = sbr.rel (%p14) target = $region20
        $region17: #{custom-call.16} parent=12 // loop_body
          %v20 = vld [vmem:[%s18] sm:%s11]
          %21 = vst [vmem:[%s19] sm:%s11] %v20
        $region18: #{custom-call.16} parent=12 // loop_footer
          %s17 = sadd.s32 1, %s13
        $region19: #{custom-call.16} parent=12 // loop_footer_branch
          %12 = sbr.rel target = $region15
        $region20: #{custom-call.16} parent=12 // loop_exit
          _
      $region13: #{custom-call.16} parent=4 // pred_fallthru
        _
    $region5: #{custom-call.16} parent=1 // pred_fallthru
      _
    %36 = vnop
    %v37 = vld [vmem:[#allocation0] sm:$0xff]
    %38 = vst [vmem:[#allocation1] sm:$0xff] %v37
    %39 = vst [vmem:[#allocation2] sm:$0x1] 0.0
    loop: start=0, step=1, limit=8
    $region36: #{custom-call.16} parent=1 // loop_pre_header
      _
    $region37: #{custom-call.16} parent=1 // loop_header
      %s41 = sphi 0, %s45
      %p42 = scmp.ge.s32.totalorder %s41, 8
    $region38: #{custom-call.16} parent=1 // loop_header_branch
      %44 = sbr.rel (%p42) target = $region42
    $region39: #{custom-call.16} parent=1 // loop_body
      %v46 = vld [vmem:[#allocation1] sm:$0xff]
      %v47 = vlaneseq
      %v48 = vshrl.u32 %v47, 7
      %v50 = vstv %s41
      %vm51 = vcmp.gt.s32.totalorder %v48, %v50
      %vm52 = vcmp.lt.s32.totalorder %v48, 8
      %vm53 = vmand %vm51, %vm52
      %v54 = vsel %vm53, %v46, 0.0
      %v55 = vmul.f32 %v54, %v54
      %v56 = vrot.slane %v55, 4
      %v57 = vadd.f32 %v55, %v56
      %v58 = vrot.slane %v57, 2
      %v59 = vadd.f32 %v57, %v58
      %v60 = vrot.slane %v59, 1
      %v61 = vadd.f32 %v59, %v60
      %v62 = vrsqrt.pop %v61
      %v63 = vmul.f32 %v61, %v62
      %vm64 = vcmp.eq.f32.partialorder %v61, inf
      %v65 = vsel %vm64, %v61, %v63
      %vm66 = vcmp.eq.f32.partialorder %v61, 0.0
      %v67 = vand.u32 %v61, 2147483648
      %v68 = vsel %vm66, %v67, %v65
      %vm69 = vcmp.eq.f32.partialorder %v61, 0.0
      %s70 = sshrl.u32 %s41, 3
      %s71 = sand.u32 %s41, 7
      %s72 = smul.addr %s70, 8
      %s73 = sadd.s32 %s71, %s72
      %s74 = scalar_lea.vmem [#allocation1], %s73
      %v75 = vld [vmem:[%s74] ss:$0 sm:$0xff]
      %v76 = vand.u32 2147483647, %v75
      %v77 = vmax.f32 %v76, 0.0
      %v78 = vand.u32 2147483647, %v68
      %v79 = vmax.f32 %v77, %v78
      %v80 = vrcp.pop %v79
      %v81 = vmul.f32 %v76, %v80
      %v82 = vmul.f32 %v81, %v81
      %v83 = vrcp.pop %v79
      %v84 = vmul.f32 0.0, %v83
      %v85 = vmul.f32 %v84, %v84
      %v86 = vadd.f32 %v82, %v85
      %v87 = vrcp.pop %v79
      %v88 = vmul.f32 %v78, %v87
      %v89 = vmul.f32 %v88, %v88
      %v90 = vadd.f32 %v86, %v89
      %vm91 = vcmp.eq.f32.partialorder %v79, 0.0
      %v92 = vrsqrt.pop %v90
      %v93 = vmul.f32 %v90, %v92
      %vm94 = vcmp.eq.f32.partialorder %v90, inf
      %v95 = vsel %vm94, %v90, %v93
      %vm96 = vcmp.eq.f32.partialorder %v90, 0.0
      %v97 = vand.u32 %v90, 2147483648
      %v98 = vsel %vm96, %v97, %v95
      %v99 = vmul.f32 %v79, %v98
      %v100 = vsel %vm91, 0.0, %v99
      %vm101 = vcmp.lt.f32.partialorder %v75, 0.0
      %v102 = vxor.u32 %v100, 2147483648
      %v103 = vsel %vm101, %v100, %v102
      %v104 = vsub.f32 %v103, %v75
      %v105 = vrcp.pop %v103
      %v106 = vmul.f32 %v104, %v105
      %v107 = vsel %vm69, %v75, %v103
      %v108 = vsel %vm69, 0.0, %v106
      %v109 = vsub.f32 %v75, %v107
      %s110 = smov [#allocation1]
      %v111 = vlaneseq
      %v112 = vshrl.u32 %v111, 7
      %v113 = vmov %v112
      %v114 = vld [vmem:[%s110] sm:$0xff]
      %v116 = vstv %s41
      %vm117 = vcmp.gt.s32.totalorder %v113, %v116
      %vm118 = vcmp.lt.s32.totalorder %v113, 8
      %vm119 = vmand %vm117, %vm118
      %v120 = vsel %vm119, %v114, 0.0
      %v121 = vrcp.pop %v109
      %v122 = vmul.f32 %v120, %v121
      %v123 = vsel %vm69, 0.0, %v122
      %v124 = vstv %s41
      %v125 = vlaneseq
      %v126 = vand.u32 %v125, 127
      %vm127 = vcmp.eq.s32.totalorder %v126, %v124
      %v128 = vsel %vm127, %v123, 0.0
      %129 = vadd.xlane.f32.xlu0 %v128
      %v130 = vpop.xlane.xlu0 %129
      %131 = vst [vmem:[#allocation4] sm:$0xff] %v130
      %s132 = scalar_lea.vmem [#allocation4], %s41
      %133 = vst [vmem:[%s132] sm:$0x1] 1.0
      %v134 = vstv %s41
      %v135 = vlaneseq
      %v136 = vand.u32 %v135, 127
      %vm137 = vcmp.eq.s32.totalorder %v136, %v134
      %v138 = vsel %vm137, %v108, 0.0
      %139 = vadd.xlane.f32.xlu0 %v138
      %v140 = vpop.xlane.xlu0 %139
      %v141 = vstv %s41
      %v142 = vlaneseq
      %v143 = vand.u32 %v142, 127
      %vm144 = vcmp.eq.s32.totalorder %v143, %v141
      %v145 = vld [vmem:[#allocation2] ss:$0 sm:$0xff]
      %v146 = vsel %vm144, %v140, %v145
      %147 = vst [vmem:[#allocation2] sm:$0x1] %v146
      %s148 = smov [#allocation1]
      %s149 = smov [#allocation4]
      %v150 = vlaneseq
      %v151 = vshrl.u32 %v150, 7
      %v152 = vmov %v151
      %v154 = vld [vmem:[%s149] sm:$0xff]
      %v155 = vld [vmem:[%s148] sm:$0xff]
      %v156 = vmul.f32 %v154, %v155
      %vm157 = vcmp.lt.s32.totalorder %v152, 8
      %v158 = vsel %vm157, %v156, 0.0
      %v159 = vrot.slane %v158, 4
      %v160 = vadd.f32 %v158, %v159
      %v161 = vrot.slane %v160, 2
      %v162 = vadd.f32 %v160, %v161
      %v163 = vrot.slane %v162, 1
      %v164 = vadd.f32 %v162, %v163
      %s165 = smov %s148
      %s166 = smov %s149
      %v167 = vlaneseq
      %v168 = vshrl.u32 %v167, 7
      %v169 = vmov %v168
      %v170 = vmul.f32 %v164, %v140
      %v172 = vlaneseq
      %v173 = vand.u32 %v172, 127
      %v174 = vld [vmem:[%s166] sm:$0xff]
      %v175 = vmul.f32 %v174, %v170
      %v176 = vld [vmem:[%s165] sm:$0xff]
      %v177 = vstv %s41
      %vm178 = vcmp.gt.s32.totalorder %v173, %v177
      %v179 = vsub.f32 %v176, %v175
      %v180 = vsel %vm178, %v179, %v176
      %v181 = vstv %s41
      %v182 = vlaneseq
      %v183 = vand.u32 %v182, 127
      %vm184 = vcmp.eq.s32.totalorder %v183, %v181
      %v185 = vstv %s41
      %vm186 = vcmp.ge.s32.totalorder %v169, %v185
      %vm187 = vmand %vm184, %vm186
      %v188 = vsel %vm187, %v174, %v180
      %189 = vst [vmem:[%s165] sm:$0xff] %v188
      %s190 = scalar_lea.vmem %s165, %s41
      %v191 = vld [vmem:[%s190] ss:$0 sm:$0xff]
      %v192 = vstv %s41
      %v193 = vlaneseq
      %v194 = vand.u32 %v193, 127
      %vm195 = vcmp.eq.s32.totalorder %v194, %v192
      %v196 = vsel %vm195, %v107, %v191
      %197 = vst [vmem:[%s190] sm:$0x1] %v196
    $region40: #{custom-call.16} parent=1 // loop_footer
      %s45 = sadd.s32 1, %s41
    $region41: #{custom-call.16} parent=1 // loop_footer_branch
      %40 = sbr.rel target = $region37
    $region42: #{custom-call.16} parent=1 // loop_exit
      _
    %s199 = sshll.u32 1, 1
    %s200 = ssub.s32 %s199, 1
    %v202 = vld [vmem:[#allocation2] sm:%s200]
    %s203 = sshll.u32 1, 1
    %s204 = ssub.s32 %s203, 1
    %205 = vst [vmem:[#allocation3] sm:%s204] %v202
    // Predicated region
    $region43: #{custom-call.16} parent=1 // pred_check
      _
    $region44: #{custom-call.16} parent=1 // pred_check_branch
      %207 = sbr.rel (0) target = $region46
    $region45: #{custom-call.16} parent=1 // pred_region
      // Predicated region
      $region47: #{custom-call.16} parent=45 // pred_check
        _
      $region48: #{custom-call.16} parent=45 // pred_check_branch
        %209 = sbr.rel (0) target = $region50
      $region49: #{custom-call.16} parent=45 // pred_region
        // Predicated region
        $region62: #{custom-call.16} parent=49 // pred_check
          _
        $region63: #{custom-call.16} parent=49 // pred_check_branch
          %225 = sbr.rel (0) target = $region65
        $region64: #{custom-call.16} parent=49 // pred_region
          loop: start=0, step=1, limit=1
          $region66: #{custom-call.16} parent=64 // loop_pre_header
            _
          $region67: #{custom-call.16} parent=64 // loop_header
            %s227 = sphi 0, %s231
            %p228 = scmp.ge.s32.totalorder %s227, 1
            %s232 = sphi [#allocation1], [#allocation1]
            %s233 = sphi %s1, %s1
          $region68: #{custom-call.16} parent=64 // loop_header_branch
            %230 = sbr.rel (%p228) target = $region72
          $region69: #{custom-call.16} parent=64 // loop_body
            %v234 = vld [vmem:[%s232] sm:$0xff]
            %235 = vst [vmem:[%s233] sm:$0xff] %v234
          $region70: #{custom-call.16} parent=64 // loop_footer
            %s231 = sadd.s32 1, %s227
          $region71: #{custom-call.16} parent=64 // loop_footer_branch
            %226 = sbr.rel target = $region67
          $region72: #{custom-call.16} parent=64 // loop_exit
            _
        $region65: #{custom-call.16} parent=49 // pred_fallthru
          _
        // Predicated region
        $region73: #{custom-call.16} parent=49 // pred_check
          _
        $region74: #{custom-call.16} parent=49 // pred_check_branch
          %237 = sbr.rel target = $region76
        $region75: #{custom-call.16} parent=49 // pred_region
          _
        $region76: #{custom-call.16} parent=49 // pred_fallthru
          _
      $region50: #{custom-call.16} parent=45 // pred_fallthru
        _
      // Predicated region
      $region51: #{custom-call.16} parent=45 // pred_check
        _
      $region52: #{custom-call.16} parent=45 // pred_check_branch
        %211 = sbr.rel target = $region54
      $region53: #{custom-call.16} parent=45 // pred_region
        %s213 = ssub.s32 256, 1
        loop: start=0, step=1, limit=1
        $region55: #{custom-call.16} parent=53 // loop_pre_header
          _
        $region56: #{custom-call.16} parent=53 // loop_header
          %s215 = sphi 0, %s219
          %p216 = scmp.ge.s32.totalorder %s215, 1
          %s220 = sphi [#allocation1], [#allocation1]
          %s221 = sphi %s1, %s1
        $region57: #{custom-call.16} parent=53 // loop_header_branch
          %218 = sbr.rel (%p216) target = $region61
        $region58: #{custom-call.16} parent=53 // loop_body
          %v222 = vld [vmem:[%s220] sm:%s213]
          %223 = vst [vmem:[%s221] sm:%s213] %v222
        $region59: #{custom-call.16} parent=53 // loop_footer
          %s219 = sadd.s32 1, %s215
        $region60: #{custom-call.16} parent=53 // loop_footer_branch
          %214 = sbr.rel target = $region56
        $region61: #{custom-call.16} parent=53 // loop_exit
          _
      $region54: #{custom-call.16} parent=45 // pred_fallthru
        _
    $region46: #{custom-call.16} parent=1 // pred_fallthru
      _
    %238 = vnop
    // Predicated region
    $region77: #{custom-call.16} parent=1 // pred_check
      _
    $region78: #{custom-call.16} parent=1 // pred_check_branch
      %240 = sbr.rel (0) target = $region80
    $region79: #{custom-call.16} parent=1 // pred_region
      // Predicated region
      $region81: #{custom-call.16} parent=79 // pred_check
        _
      $region82: #{custom-call.16} parent=79 // pred_check_branch
        %242 = sbr.rel (0) target = $region84
      $region83: #{custom-call.16} parent=79 // pred_region
        // Predicated region
        $region85: #{custom-call.16} parent=83 // pred_check
          _
        $region86: #{custom-call.16} parent=83 // pred_check_branch
          %244 = sbr.rel target = $region88
        $region87: #{custom-call.16} parent=83 // pred_region
          // Predicated region
          $region100: #{custom-call.16} parent=87 // pred_check
            _
          $region101: #{custom-call.16} parent=87 // pred_check_branch
            %260 = sbr.rel (0) target = $region103
          $region102: #{custom-call.16} parent=87 // pred_region
            %s262 = ssub.s32 2, 1
            loop: start=0, step=1, limit=1
            $region104: #{custom-call.16} parent=102 // loop_pre_header
              _
            $region105: #{custom-call.16} parent=102 // loop_header
              %s264 = sphi 0, %s268
              %p265 = scmp.ge.s32.totalorder %s264, 1
              %s269 = sphi [#allocation3], [#allocation3]
              %s270 = sphi %s2, %s2
            $region106: #{custom-call.16} parent=102 // loop_header_branch
              %267 = sbr.rel (%p265) target = $region110
            $region107: #{custom-call.16} parent=102 // loop_body
              %v271 = vld [vmem:[%s269] sm:%s262]
              %272 = vst [vmem:[%s270] sm:%s262] %v271
            $region108: #{custom-call.16} parent=102 // loop_footer
              %s268 = sadd.s32 1, %s264
            $region109: #{custom-call.16} parent=102 // loop_footer_branch
              %263 = sbr.rel target = $region105
            $region110: #{custom-call.16} parent=102 // loop_exit
              _
          $region103: #{custom-call.16} parent=87 // pred_fallthru
            _
        $region88: #{custom-call.16} parent=83 // pred_fallthru
          _
        // Predicated region
        $region89: #{custom-call.16} parent=83 // pred_check
          _
        $region90: #{custom-call.16} parent=83 // pred_check_branch
          %246 = sbr.rel (0) target = $region92
        $region91: #{custom-call.16} parent=83 // pred_region
          %s248 = ssub.s32 2, 1
          loop: start=0, step=1, limit=1
          $region93: #{custom-call.16} parent=91 // loop_pre_header
            _
          $region94: #{custom-call.16} parent=91 // loop_header
            %s250 = sphi 0, %s254
            %p251 = scmp.ge.s32.totalorder %s250, 1
            %s255 = sphi [#allocation3], [#allocation3]
            %s256 = sphi %s2, %s2
          $region95: #{custom-call.16} parent=91 // loop_header_branch
            %253 = sbr.rel (%p251) target = $region99
          $region96: #{custom-call.16} parent=91 // loop_body
            %v257 = vld [vmem:[%s255] sm:%s248]
            %258 = vst [vmem:[%s256] sm:%s248] %v257
          $region97: #{custom-call.16} parent=91 // loop_footer
            %s254 = sadd.s32 1, %s250
          $region98: #{custom-call.16} parent=91 // loop_footer_branch
            %249 = sbr.rel target = $region94
          $region99: #{custom-call.16} parent=91 // loop_exit
            _
        $region92: #{custom-call.16} parent=83 // pred_fallthru
          _
      $region84: #{custom-call.16} parent=79 // pred_fallthru
        _
      %273 = vnop
    $region80: #{custom-call.16} parent=1 // pred_fallthru
      _
    // Predicated region
    $region111: #{custom-call.16} parent=1 // pred_check
      _
    $region112: #{custom-call.16} parent=1 // pred_check_branch
      %275 = sbr.rel (0) target = $region114
    $region113: #{custom-call.16} parent=1 // pred_region
      _
    $region114: #{custom-call.16} parent=1 // pred_fallthru
      _

// kernel: meta_learning_forward.1
$region0: #{meta_learning_forward.1}
  #allocation0 [shape = 'u32[]', space=smem, size = 0x4, offset = 0x4, fixed_abs, tag = 'smem constant byte address 0x4 - core index']
  #allocation1 [shape = 'u32[144,128]{1,0:T(1,128)}', space=vmem, size = 0x12000, scoped, tag = 'internal scratch']
  %s0 = inlined_call_operand.vmem [shape: f32[8,3], index: 0, kind: input, shape index: {}]
  %s1 = inlined_call_operand.vmem [shape: f32[4,2], index: 1, kind: input, shape index: {}]
  %s2 = inlined_call_operand.vmem [shape: f32[2,8], index: 2, kind: input, shape index: {}]
  %s3 = inlined_call_operand.vmem [shape: f32[3,256], index: 3, kind: input, shape index: {}]
  %s4 = inlined_call_operand.vmem [shape: f32[2,512], index: 4, kind: input, shape index: {}]
  %s5 = inlined_call_operand.vmem [shape: f32[256,1282], index: 5, kind: input, shape index: {}]
  %s6 = inlined_call_operand.vmem [shape: f32[2,768], index: 6, kind: input, shape index: {}]
  %s7 = inlined_call_operand.vmem [shape: f32[2], index: 7, kind: input, shape index: {}]
  %s8 = inlined_call_operand.vmem [shape: f32[12,9], index: 8, kind: output, shape index: {}]
  %s9 = sld [smem:[#allocation0]]
  $region46: #{meta_learning_forward.1} parent=0
    _
  %s11 = ssub.s32 1, %s9
  %s12 = scalar_select 0, %s11, %s9
  $region1: #{meta_learning_forward.1} parent=0
    #allocation2 [shape = 'u8[512]{0}', space=smem, size = 0x200, scoped, tag = 'input window, operand 7, single buffered']
    #allocation3 [shape = 's32[1]{0}', space=sflag, size = 0x4, scoped, tag = 'scoped memory for meta_learning_forward.1']
    %13 = vsyncpa [#allocation3], 0
    // Predicated region
    $region2: #{meta_learning_forward.1} parent=1 // pred_check
      _
    $region3: #{meta_learning_forward.1} parent=1 // pred_check_branch
      %15 = sbr.rel (0) target = $region5
    $region4: #{meta_learning_forward.1} parent=1 // pred_region
      _
    $region5: #{meta_learning_forward.1} parent=1 // pred_fallthru
      _
    // Predicated region
    $region6: #{meta_learning_forward.1} parent=1 // pred_check
      _
    $region7: #{meta_learning_forward.1} parent=1 // pred_check_branch
      %17 = sbr.rel (0) target = $region9
    $region8: #{meta_learning_forward.1} parent=1 // pred_region
      _
    $region9: #{meta_learning_forward.1} parent=1 // pred_fallthru
      _
    // Predicated region
    $region10: #{meta_learning_forward.1} parent=1 // pred_check
      _
    $region11: #{meta_learning_forward.1} parent=1 // pred_check_branch
      %19 = sbr.rel (0) target = $region13
    $region12: #{meta_learning_forward.1} parent=1 // pred_region
      _
    $region13: #{meta_learning_forward.1} parent=1 // pred_fallthru
      _
    // Predicated region
    $region14: #{meta_learning_forward.1} parent=1 // pred_check
      _
    $region15: #{meta_learning_forward.1} parent=1 // pred_check_branch
      %21 = sbr.rel (0) target = $region17
    $region16: #{meta_learning_forward.1} parent=1 // pred_region
      _
    $region17: #{meta_learning_forward.1} parent=1 // pred_fallthru
      _
    // Predicated region
    $region18: #{meta_learning_forward.1} parent=1 // pred_check
      _
    $region19: #{meta_learning_forward.1} parent=1 // pred_check_branch
      %23 = sbr.rel (0) target = $region21
    $region20: #{meta_learning_forward.1} parent=1 // pred_region
      _
    $region21: #{meta_learning_forward.1} parent=1 // pred_fallthru
      _
    // Predicated region
    $region22: #{meta_learning_forward.1} parent=1 // pred_check
      _
    $region23: #{meta_learning_forward.1} parent=1 // pred_check_branch
      %25 = sbr.rel (0) target = $region25
    $region24: #{meta_learning_forward.1} parent=1 // pred_region
      _
    $region25: #{meta_learning_forward.1} parent=1 // pred_fallthru
      _
    // Predicated region
    $region26: #{meta_learning_forward.1} parent=1 // pred_check
      _
    $region27: #{meta_learning_forward.1} parent=1 // pred_check_branch
      %27 = sbr.rel (0) target = $region29
    $region28: #{meta_learning_forward.1} parent=1 // pred_region
      _
    $region29: #{meta_learning_forward.1} parent=1 // pred_fallthru
      _
    // Predicated region
    $region30: #{meta_learning_forward.1} parent=1 // pred_check
      _
    $region31: #{meta_learning_forward.1} parent=1 // pred_check_branch
      %29 = sbr.rel (0) target = $region33
    $region32: #{meta_learning_forward.1} parent=1 // pred_region
      %s31 = ssub.s32 16, 16
      %32 = vsyncadd [#allocation3], %s31
      %s34 = sshll.u32 %s7, 4
      %s35 = int_to_ptr.vmem [resolvable:$true] %s34
      %37 = dma.vmem_to_smem %s35, 16, [#allocation2], [#allocation3]
    $region33: #{meta_learning_forward.1} parent=1 // pred_fallthru
      _
    // Predicated region
    $region34: #{meta_learning_forward.1} parent=1 // pred_check
      _
    $region35: #{meta_learning_forward.1} parent=1 // pred_check_branch
      %39 = sbr.rel (0) target = $region37
    $region36: #{meta_learning_forward.1} parent=1 // pred_region
      %40 = dma.done [#allocation3], 16
    $region37: #{meta_learning_forward.1} parent=1 // pred_fallthru
      _
    %41 = sfence
    %v42 = vld [vmem:[%s0] sm:$0xff]
    %v43 = vld [vmem:[%s1] sm:$0xf]
    %v44 = vld [vmem:[%s2] sm:$0x3]
    %v45 = vld [vmem:[%s6] sm:$0xff]
    %v46 = vld [vmem:[%s6 + $0x8] sm:$0xf]
    %v47 = vld [vmem:[%s3] sm:$0x77]
    %v49 = vlaneseq
    %v50 = vshrl.u32 %v49, 7
    %v51 = vsub.s32 0, %v50
    %v52 = vrot.slane %v45, %v51
    %v53 = vlaneseq
    %v54 = vshrl.u32 %v53, 7
    %v55 = vsub.s32 2, %v54
    %v56 = vrot.slane %v45, %v55
    %v59 = vlaneseq
    %v60 = vshrl.u32 %v59, 7
    %v61 = vsub.s32 0, %v60
    %v62 = vrot.slane %v52, %v61
    %v63 = vlaneseq
    %v64 = vshrl.u32 %v63, 7
    %v65 = vsub.s32 0, %v64
    %v66 = vrot.slane %v56, %v65
    %v68 = vcombine.high %v47, %v47
    %vm69 = vcmask 23552
    %v71 = vsel %vm69, %v42, 0
    %vm73 = vcmask 1042432
    %v74 = vsel %vm73, %v47, 0
    %v76 = vsel %vm73, %v68, 0
    %78 = vmatprep.subr.mxu0 0.0
    %79 = vmatpush1.msra.mxu0 0.0
    %80 = vmatprep.subr.mxu0 0.0
    %81 = vmatpush1.msra.mxu0 0.0
    %82 = vmatprep.subr.mxu0 0.0
    %83 = vmatpush1.msra.mxu0 0.0
    %84 = vmatprep.subr.mxu0 0.0
    %85 = vmatpush1.msra.mxu0 0.0
    %86 = vmatprep.subr.mxu0 0.0
    %87 = vmatpush1.msra.mxu0 0.0
    %88 = vmatprep.subr.mxu0 0.0
    %89 = vmatpush1.msra.mxu0 0.0
    %90 = vmatprep.subr.mxu0 0.0
    %91 = vmatpush1.msra.mxu0 0.0
    %92 = vmatprep.subr.mxu0 0.0
    %93 = vmatpush1.msra.mxu0 0.0
    %94 = vmatprep.subr.mxu0 0.0
    %95 = vmatpush1.msra.mxu0 0.0
    %96 = vmatprep.subr.mxu0 0.0
    %97 = vmatpush1.msra.mxu0 0.0
    %98 = vmatprep.subr.mxu0 0.0
    %99 = vmatpush1.msra.mxu0 0.0
    %100 = vmatprep.subr.mxu0 0.0
    %101 = vmatpush1.msra.mxu0 0.0
    %102 = vmatprep.subr.mxu0 0.0
    %103 = vmatpush1.msra.mxu0 0.0
    %104 = vmatprep.subr.mxu0 0.0
    %105 = vmatpush1.msra.mxu0 0.0
    %106 = vmatprep.subr.mxu0 0.0
    %107 = vmatpush1.msra.mxu0 0.0
    %108 = vmatprep.subr.mxu0 %v76
    %109 = vmatpush1.msra.mxu0 %v74
    %110 = vmatprep.subr.mxu0 0.0
    %111 = vmatpush2.msra.mxu0 0.0
    %112 = vmatprep.subr.mxu0 0.0
    %113 = vmatpush2.msra.mxu0 0.0
    %114 = vmatprep.subr.mxu0 0.0
    %115 = vmatpush2.msra.mxu0 0.0
    %116 = vmatprep.subr.mxu0 0.0
    %117 = vmatpush2.msra.mxu0 0.0
    %118 = vmatprep.subr.mxu0 0.0
    %119 = vmatpush2.msra.mxu0 0.0
    %120 = vmatprep.subr.mxu0 0.0
    %121 = vmatpush2.msra.mxu0 0.0
    %122 = vmatprep.subr.mxu0 0.0
    %123 = vmatpush2.msra.mxu0 0.0
    %124 = vmatprep.subr.mxu0 0.0
    %125 = vmatpush2.msra.mxu0 0.0
    %126 = vmatprep.subr.mxu0 0.0
    %127 = vmatpush2.msra.mxu0 0.0
    %128 = vmatprep.subr.mxu0 0.0
    %129 = vmatpush2.msra.mxu0 0.0
    %130 = vmatprep.subr.mxu0 0.0
    %131 = vmatpush2.msra.mxu0 0.0
    %132 = vmatprep.subr.mxu0 0.0
    %133 = vmatpush2.msra.mxu0 0.0
    %134 = vmatprep.subr.mxu0 0.0
    %135 = vmatpush2.msra.mxu0 0.0
    %136 = vmatprep.subr.mxu0 0.0
    %137 = vmatpush2.msra.mxu0 0.0
    %138 = vmatprep.subr.mxu0 0.0
    %139 = vmatpush2.msra.mxu0 0.0
    %140 = vmatprep.subr.mxu0 0.0
    %141 = vmatpush2.msra.mxu0 0.0
    %142 = vmatprep.mubr.f32.mxu0 0.0
    %143 = vmatmul.mubr.f32.gmra.mxu0 %v71
    %v144 = vpop.f32.mrf.mxu0
    %v145 = vadd.f32 %v62, %v144
    %v146 = vpop.f32.mrf.mxu0
    %v147 = vadd.f32 %v66, %v146
    %148 = vdwg.mxu0
    %v149 = vmax.f32 %v145, 0.0
    %v150 = vmax.f32 %v147, 0.0
    %v151 = vrot.slane %v149, 4
    %v152 = vadd.f32 %v149, %v151
    %v153 = vrot.slane %v152, 2
    %v154 = vadd.f32 %v152, %v153
    %v155 = vrot.slane %v154, 1
    %v156 = vadd.f32 %v154, %v155
    %v157 = vrot.slane %v150, 4
    %v158 = vadd.f32 %v150, %v157
    %v159 = vrot.slane %v158, 2
    %v160 = vadd.f32 %v158, %v159
    %v161 = vrot.slane %v160, 1
    %v162 = vadd.f32 %v160, %v161
    %v163 = vrcp.pop 8.0
    %v164 = vmul.f32 %v156, %v163
    %v165 = vmul.f32 %v162, %v163
    %v166 = vld [vmem:[%s5] sm:$0xff]
    %v167 = vld [vmem:[%s5 + $0x8] sm:$0xff]
    %v168 = vld [vmem:[%s5 + $0x58] sm:$0xff]
    %v169 = vld [vmem:[%s5 + $0x60] sm:$0xff]
    %v170 = vld [vmem:[%s5 + $0xb0] sm:$0xff]
    %v171 = vld [vmem:[%s5 + $0xb8] sm:$0xff]
    %v172 = vld [vmem:[%s5 + $0x108] sm:$0xff]
    %v173 = vld [vmem:[%s5 + $0x110] sm:$0xff]
    %v174 = vld [vmem:[%s5 + $0x160] sm:$0xff]
    %v175 = vld [vmem:[%s5 + $0x168] sm:$0xff]
    %v176 = vld [vmem:[%s5 + $0x1b8] sm:$0xff]
    %v177 = vld [vmem:[%s5 + $0x1c0] sm:$0xff]
    %v178 = vld [vmem:[%s5 + $0x210] sm:$0xff]
    %v179 = vld [vmem:[%s5 + $0x218] sm:$0xff]
    %v180 = vld [vmem:[%s5 + $0x268] sm:$0xff]
    %v181 = vld [vmem:[%s5 + $0x270] sm:$0xff]
    %v182 = vld [vmem:[%s5 + $0x2c0] sm:$0xff]
    %v183 = vld [vmem:[%s5 + $0x2c8] sm:$0xff]
    %v184 = vld [vmem:[%s5 + $0x318] sm:$0xff]
    %v185 = vld [vmem:[%s5 + $0x320] sm:$0xff]
    %v186 = vld [vmem:[%s5 + $0x370] sm:$0xff]
    %v187 = vld [vmem:[%s5 + $0x378] sm:$0xff]
    %v188 = vld [vmem:[%s5 + $0x3c8] sm:$0xff]
    %v189 = vld [vmem:[%s5 + $0x3d0] sm:$0xff]
    %v190 = vld [vmem:[%s5 + $0x420] sm:$0xff]
    %v191 = vld [vmem:[%s5 + $0x428] sm:$0xff]
    %v192 = vld [vmem:[%s5 + $0x478] sm:$0xff]
    %v193 = vld [vmem:[%s5 + $0x480] sm:$0xff]
    %v194 = vld [vmem:[%s5 + $0x4d0] sm:$0xff]
    %v195 = vld [vmem:[%s5 + $0x4d8] sm:$0xff]
    %v196 = vld [vmem:[%s5 + $0x528] sm:$0xff]
    %v197 = vld [vmem:[%s5 + $0x530] sm:$0xff]
    %v198 = vld [vmem:[%s5 + $0x580] sm:$0xff]
    %v199 = vld [vmem:[%s5 + $0x588] sm:$0xff]
    %v200 = vld [vmem:[%s5 + $0x5d8] sm:$0xff]
    %v201 = vld [vmem:[%s5 + $0x5e0] sm:$0xff]
    %v202 = vld [vmem:[%s5 + $0x630] sm:$0xff]
    %v203 = vld [vmem:[%s5 + $0x638] sm:$0xff]
    %v204 = vld [vmem:[%s5 + $0x688] sm:$0xff]
    %v205 = vld [vmem:[%s5 + $0x690] sm:$0xff]
    %v206 = vld [vmem:[%s5 + $0x6e0] sm:$0xff]
    %v207 = vld [vmem:[%s5 + $0x6e8] sm:$0xff]
    %v208 = vld [vmem:[%s5 + $0x738] sm:$0xff]
    %v209 = vld [vmem:[%s5 + $0x740] sm:$0xff]
    %v210 = vld [vmem:[%s5 + $0x790] sm:$0xff]
    %v211 = vld [vmem:[%s5 + $0x798] sm:$0xff]
    %v212 = vld [vmem:[%s5 + $0x7e8] sm:$0xff]
    %v213 = vld [vmem:[%s5 + $0x7f0] sm:$0xff]
    %v214 = vld [vmem:[%s5 + $0x840] sm:$0xff]
    %v215 = vld [vmem:[%s5 + $0x848] sm:$0xff]
    %v216 = vld [vmem:[%s5 + $0x898] sm:$0xff]
    %v217 = vld [vmem:[%s5 + $0x8a0] sm:$0xff]
    %v218 = vld [vmem:[%s5 + $0x8f0] sm:$0xff]
    %v219 = vld [vmem:[%s5 + $0x8f8] sm:$0xff]
    %v220 = vld [vmem:[%s5 + $0x948] sm:$0xff]
    %v221 = vld [vmem:[%s5 + $0x950] sm:$0xff]
    %v222 = vld [vmem:[%s5 + $0x9a0] sm:$0xff]
    %v223 = vld [vmem:[%s5 + $0x9a8] sm:$0xff]
    %v224 = vld [vmem:[%s5 + $0x9f8] sm:$0xff]
    %v225 = vld [vmem:[%s5 + $0xa00] sm:$0xff]
    %v226 = vld [vmem:[%s5 + $0xa50] sm:$0xff]
    %v227 = vld [vmem:[%s5 + $0xa58] sm:$0xff]
    %v228 = vld [vmem:[%s5 + $0xaa8] sm:$0xff]
    %v229 = vld [vmem:[%s5 + $0xab0] sm:$0xff]
    %v230 = vlaneseq
    %v231 = vshrl.u32 %v230, 7
    %v232 = vsub.s32 4, %v231
    %v233 = vrot.slane %v45, %v232
    %v234 = vlaneseq
    %v235 = vshrl.u32 %v234, 7
    %v236 = vsub.s32 6, %v235
    %v237 = vrot.slane %v45, %v236
    %240 = vmatprep.subr.mxu0 %v197
    %241 = vmatpush1.msra.mxu0 %v196
    %242 = vmatprep.subr.mxu0 %v195
    %243 = vmatpush1.msra.mxu0 %v194
    %244 = vmatprep.subr.mxu0 %v193
    %245 = vmatpush1.msra.mxu0 %v192
    %246 = vmatprep.subr.mxu0 %v191
    %247 = vmatpush1.msra.mxu0 %v190
    %248 = vmatprep.subr.mxu0 %v189
    %249 = vmatpush1.msra.mxu0 %v188
    %250 = vmatprep.subr.mxu0 %v187
    %251 = vmatpush1.msra.mxu0 %v186
    %252 = vmatprep.subr.mxu0 %v185
    %253 = vmatpush1.msra.mxu0 %v184
    %254 = vmatprep.subr.mxu0 %v183
    %255 = vmatpush1.msra.mxu0 %v182
    %256 = vmatprep.subr.mxu0 %v181
    %257 = vmatpush1.msra.mxu0 %v180
    %258 = vmatprep.subr.mxu0 %v179
    %259 = vmatpush1.msra.mxu0 %v178
    %260 = vmatprep.subr.mxu0 %v177
    %261 = vmatpush1.msra.mxu0 %v176
    %262 = vmatprep.subr.mxu0 %v175
    %263 = vmatpush1.msra.mxu0 %v174
    %264 = vmatprep.subr.mxu0 %v173
    %265 = vmatpush1.msra.mxu0 %v172
    %266 = vmatprep.subr.mxu0 %v171
    %267 = vmatpush1.msra.mxu0 %v170
    %268 = vmatprep.subr.mxu0 %v169
    %269 = vmatpush1.msra.mxu0 %v168
    %270 = vmatprep.subr.mxu0 %v167
    %271 = vmatpush1.msra.mxu0 %v166
    %272 = vmatprep.subr.mxu0 %v229
    %273 = vmatpush2.msra.mxu0 %v228
    %274 = vmatprep.subr.mxu0 %v227
    %275 = vmatpush2.msra.mxu0 %v226
    %276 = vmatprep.subr.mxu0 %v225
    %277 = vmatpush2.msra.mxu0 %v224
    %278 = vmatprep.subr.mxu0 %v223
    %279 = vmatpush2.msra.mxu0 %v222
    %280 = vmatprep.subr.mxu0 %v221
    %281 = vmatpush2.msra.mxu0 %v220
    %282 = vmatprep.subr.mxu0 %v219
    %283 = vmatpush2.msra.mxu0 %v218
    %284 = vmatprep.subr.mxu0 %v217
    %285 = vmatpush2.msra.mxu0 %v216
    %286 = vmatprep.subr.mxu0 %v215
    %287 = vmatpush2.msra.mxu0 %v214
    %288 = vmatprep.subr.mxu0 %v213
    %289 = vmatpush2.msra.mxu0 %v212
    %290 = vmatprep.subr.mxu0 %v211
    %291 = vmatpush2.msra.mxu0 %v210
    %292 = vmatprep.subr.mxu0 %v209
    %293 = vmatpush2.msra.mxu0 %v208
    %294 = vmatprep.subr.mxu0 %v207
    %295 = vmatpush2.msra.mxu0 %v206
    %296 = vmatprep.subr.mxu0 %v205
    %297 = vmatpush2.msra.mxu0 %v204
    %298 = vmatprep.subr.mxu0 %v203
    %299 = vmatpush2.msra.mxu0 %v202
    %300 = vmatprep.subr.mxu0 %v201
    %301 = vmatpush2.msra.mxu0 %v200
    %302 = vmatprep.subr.mxu0 %v199
    %303 = vmatpush2.msra.mxu0 %v198
    %304 = vmatprep.mubr.f32.mxu0 %v165
    %305 = vmatmul.mubr.f32.gmra.mxu0 %v164
    %v306 = vpop.f32.mrf.mxu0
    %v307 = vadd.f32 %v233, %v306
    %v308 = vpop.f32.mrf.mxu0
    %v309 = vadd.f32 %v237, %v308
    %310 = vdwg.mxu0
    %v311 = vld [vmem:[%s5 + $0x10] sm:$0xff]
    %v312 = vld [vmem:[%s5 + $0x18] sm:$0xff]
    %v313 = vld [vmem:[%s5 + $0x20] sm:$0xff]
    %v314 = vld [vmem:[%s5 + $0x28] sm:$0xff]
    %v315 = vld [vmem:[%s5 + $0x30] sm:$0xff]
    %v316 = vld [vmem:[%s5 + $0x38] sm:$0xff]
    %v317 = vld [vmem:[%s5 + $0x68] sm:$0xff]
    %v318 = vld [vmem:[%s5 + $0x70] sm:$0xff]
    %v319 = vld [vmem:[%s5 + $0x78] sm:$0xff]
    %v320 = vld [vmem:[%s5 + $0x80] sm:$0xff]
    %v321 = vld [vmem:[%s5 + $0x88] sm:$0xff]
    %v322 = vld [vmem:[%s5 + $0x90] sm:$0xff]
    %v323 = vld [vmem:[%s5 + $0xc0] sm:$0xff]
    %v324 = vld [vmem:[%s5 + $0xc8] sm:$0xff]
    %v325 = vld [vmem:[%s5 + $0xd0] sm:$0xff]
    %v326 = vld [vmem:[%s5 + $0xd8] sm:$0xff]
    %v327 = vld [vmem:[%s5 + $0xe0] sm:$0xff]
    %v328 = vld [vmem:[%s5 + $0xe8] sm:$0xff]
    %v329 = vld [vmem:[%s5 + $0x118] sm:$0xff]
    %v330 = vld [vmem:[%s5 + $0x120] sm:$0xff]
    %v331 = vld [vmem:[%s5 + $0x128] sm:$0xff]
    %v332 = vld [vmem:[%s5 + $0x130] sm:$0xff]
    %v333 = vld [vmem:[%s5 + $0x138] sm:$0xff]
    %v334 = vld [vmem:[%s5 + $0x140] sm:$0xff]
    %v335 = vld [vmem:[%s5 + $0x170] sm:$0xff]
    %v336 = vld [vmem:[%s5 + $0x178] sm:$0xff]
    %v337 = vld [vmem:[%s5 + $0x180] sm:$0xff]
    %v338 = vld [vmem:[%s5 + $0x188] sm:$0xff]
    %v339 = vld [vmem:[%s5 + $0x190] sm:$0xff]
    %v340 = vld [vmem:[%s5 + $0x198] sm:$0xff]
    %v341 = vld [vmem:[%s5 + $0x1c8] sm:$0xff]
    %v342 = vld [vmem:[%s5 + $0x1d0] sm:$0xff]
    %v343 = vld [vmem:[%s5 + $0x1d8] sm:$0xff]
    %v344 = vld [vmem:[%s5 + $0x1e0] sm:$0xff]
    %v345 = vld [vmem:[%s5 + $0x1e8] sm:$0xff]
    %v346 = vld [vmem:[%s5 + $0x1f0] sm:$0xff]
    %v347 = vld [vmem:[%s5 + $0x220] sm:$0xff]
    %v348 = vld [vmem:[%s5 + $0x228] sm:$0xff]
    %v349 = vld [vmem:[%s5 + $0x230] sm:$0xff]
    %v350 = vld [vmem:[%s5 + $0x238] sm:$0xff]
    %v351 = vld [vmem:[%s5 + $0x240] sm:$0xff]
    %v352 = vld [vmem:[%s5 + $0x248] sm:$0xff]
    %v353 = vld [vmem:[%s5 + $0x278] sm:$0xff]
    %v354 = vld [vmem:[%s5 + $0x280] sm:$0xff]
    %v355 = vld [vmem:[%s5 + $0x288] sm:$0xff]
    %v356 = vld [vmem:[%s5 + $0x290] sm:$0xff]
    %v357 = vld [vmem:[%s5 + $0x298] sm:$0xff]
    %v358 = vld [vmem:[%s5 + $0x2a0] sm:$0xff]
    %v359 = vld [vmem:[%s5 + $0x2d0] sm:$0xff]
    %v360 = vld [vmem:[%s5 + $0x2d8] sm:$0xff]
    %v361 = vld [vmem:[%s5 + $0x2e0] sm:$0xff]
    %v362 = vld [vmem:[%s5 + $0x2e8] sm:$0xff]
    %v363 = vld [vmem:[%s5 + $0x2f0] sm:$0xff]
    %v364 = vld [vmem:[%s5 + $0x2f8] sm:$0xff]
    %v365 = vld [vmem:[%s5 + $0x328] sm:$0xff]
    %v366 = vld [vmem:[%s5 + $0x330] sm:$0xff]
    %v367 = vld [vmem:[%s5 + $0x338] sm:$0xff]
    %v368 = vld [vmem:[%s5 + $0x340] sm:$0xff]
    %v369 = vld [vmem:[%s5 + $0x348] sm:$0xff]
    %v370 = vld [vmem:[%s5 + $0x350] sm:$0xff]
    %v371 = vld [vmem:[%s5 + $0x380] sm:$0xff]
    %v372 = vld [vmem:[%s5 + $0x388] sm:$0xff]
    %v373 = vld [vmem:[%s5 + $0x390] sm:$0xff]
    %v374 = vld [vmem:[%s5 + $0x398] sm:$0xff]
    %v375 = vld [vmem:[%s5 + $0x3a0] sm:$0xff]
    %v376 = vld [vmem:[%s5 + $0x3a8] sm:$0xff]
    %v377 = vld [vmem:[%s5 + $0x3d8] sm:$0xff]
    %v378 = vld [vmem:[%s5 + $0x3e0] sm:$0xff]
    %v379 = vld [vmem:[%s5 + $0x3e8] sm:$0xff]
    %v380 = vld [vmem:[%s5 + $0x3f0] sm:$0xff]
    %v381 = vld [vmem:[%s5 + $0x3f8] sm:$0xff]
    %v382 = vld [vmem:[%s5 + $0x400] sm:$0xff]
    %v383 = vld [vmem:[%s5 + $0x430] sm:$0xff]
    %v384 = vld [vmem:[%s5 + $0x438] sm:$0xff]
    %v385 = vld [vmem:[%s5 + $0x440] sm:$0xff]
    %v386 = vld [vmem:[%s5 + $0x448] sm:$0xff]
    %v387 = vld [vmem:[%s5 + $0x450] sm:$0xff]
    %v388 = vld [vmem:[%s5 + $0x458] sm:$0xff]
    %v389 = vld [vmem:[%s5 + $0x488] sm:$0xff]
    %v390 = vld [vmem:[%s5 + $0x490] sm:$0xff]
    %v391 = vld [vmem:[%s5 + $0x498] sm:$0xff]
    %v392 = vld [vmem:[%s5 + $0x4a0] sm:$0xff]
    %v393 = vld [vmem:[%s5 + $0x4a8] sm:$0xff]
    %v394 = vld [vmem:[%s5 + $0x4b0] sm:$0xff]
    %v395 = vld [vmem:[%s5 + $0x4e0] sm:$0xff]
    %v396 = vld [vmem:[%s5 + $0x4e8] sm:$0xff]
    %v397 = vld [vmem:[%s5 + $0x4f0] sm:$0xff]
    %v398 = vld [vmem:[%s5 + $0x4f8] sm:$0xff]
    %v399 = vld [vmem:[%s5 + $0x500] sm:$0xff]
    %v400 = vld [vmem:[%s5 + $0x508] sm:$0xff]
    %v401 = vld [vmem:[%s5 + $0x538] sm:$0xff]
    %v402 = vld [vmem:[%s5 + $0x540] sm:$0xff]
    %v403 = vld [vmem:[%s5 + $0x548] sm:$0xff]
    %v404 = vld [vmem:[%s5 + $0x550] sm:$0xff]
    %v405 = vld [vmem:[%s5 + $0x558] sm:$0xff]
    %v406 = vld [vmem:[%s5 + $0x560] sm:$0xff]
    %v407 = vld [vmem:[%s5 + $0x590] sm:$0xff]
    %v408 = vld [vmem:[%s5 + $0x598] sm:$0xff]
    %v409 = vld [vmem:[%s5 + $0x5a0] sm:$0xff]
    %v410 = vld [vmem:[%s5 + $0x5a8] sm:$0xff]
    %v411 = vld [vmem:[%s5 + $0x5b0] sm:$0xff]
    %v412 = vld [vmem:[%s5 + $0x5b8] sm:$0xff]
    %v413 = vld [vmem:[%s5 + $0x5e8] sm:$0xff]
    %v414 = vld [vmem:[%s5 + $0x5f0] sm:$0xff]
    %v415 = vld [vmem:[%s5 + $0x5f8] sm:$0xff]
    %v416 = vld [vmem:[%s5 + $0x600] sm:$0xff]
    %v417 = vld [vmem:[%s5 + $0x608] sm:$0xff]
    %v418 = vld [vmem:[%s5 + $0x610] sm:$0xff]
    %v419 = vld [vmem:[%s5 + $0x640] sm:$0xff]
    %v420 = vld [vmem:[%s5 + $0x648] sm:$0xff]
    %v421 = vld [vmem:[%s5 + $0x650] sm:$0xff]
    %v422 = vld [vmem:[%s5 + $0x658] sm:$0xff]
    %v423 = vld [vmem:[%s5 + $0x660] sm:$0xff]
    %v424 = vld [vmem:[%s5 + $0x668] sm:$0xff]
    %v425 = vld [vmem:[%s5 + $0x698] sm:$0xff]
    %v426 = vld [vmem:[%s5 + $0x6a0] sm:$0xff]
    %v427 = vld [vmem:[%s5 + $0x6a8] sm:$0xff]
    %v428 = vld [vmem:[%s5 + $0x6b0] sm:$0xff]
    %v429 = vld [vmem:[%s5 + $0x6b8] sm:$0xff]
    %v430 = vld [vmem:[%s5 + $0x6c0] sm:$0xff]
    %v431 = vld [vmem:[%s5 + $0x6f0] sm:$0xff]
    %v432 = vld [vmem:[%s5 + $0x6f8] sm:$0xff]
    %v433 = vld [vmem:[%s5 + $0x700] sm:$0xff]
    %v434 = vld [vmem:[%s5 + $0x708] sm:$0xff]
    %v435 = vld [vmem:[%s5 + $0x710] sm:$0xff]
    %v436 = vld [vmem:[%s5 + $0x718] sm:$0xff]
    %v437 = vld [vmem:[%s5 + $0x748] sm:$0xff]
    %v438 = vld [vmem:[%s5 + $0x750] sm:$0xff]
    %v439 = vld [vmem:[%s5 + $0x758] sm:$0xff]
    %v440 = vld [vmem:[%s5 + $0x760] sm:$0xff]
    %v441 = vld [vmem:[%s5 + $0x768] sm:$0xff]
    %v442 = vld [vmem:[%s5 + $0x770] sm:$0xff]
    %v443 = vld [vmem:[%s5 + $0x7a0] sm:$0xff]
    %v444 = vld [vmem:[%s5 + $0x7a8] sm:$0xff]
    %v445 = vld [vmem:[%s5 + $0x7b0] sm:$0xff]
    %v446 = vld [vmem:[%s5 + $0x7b8] sm:$0xff]
    %v447 = vld [vmem:[%s5 + $0x7c0] sm:$0xff]
    %v448 = vld [vmem:[%s5 + $0x7c8] sm:$0xff]
    %v449 = vld [vmem:[%s5 + $0x7f8] sm:$0xff]
    %v450 = vld [vmem:[%s5 + $0x800] sm:$0xff]
    %v451 = vld [vmem:[%s5 + $0x808] sm:$0xff]
    %v452 = vld [vmem:[%s5 + $0x810] sm:$0xff]
    %v453 = vld [vmem:[%s5 + $0x818] sm:$0xff]
    %v454 = vld [vmem:[%s5 + $0x820] sm:$0xff]
    %v455 = vld [vmem:[%s5 + $0x850] sm:$0xff]
    %v456 = vld [vmem:[%s5 + $0x858] sm:$0xff]
    %v457 = vld [vmem:[%s5 + $0x860] sm:$0xff]
    %v458 = vld [vmem:[%s5 + $0x868] sm:$0xff]
    %v459 = vld [vmem:[%s5 + $0x870] sm:$0xff]
    %v460 = vld [vmem:[%s5 + $0x878] sm:$0xff]
    %v461 = vld [vmem:[%s5 + $0x8a8] sm:$0xff]
    %v462 = vld [vmem:[%s5 + $0x8b0] sm:$0xff]
    %v463 = vld [vmem:[%s5 + $0x8b8] sm:$0xff]
    %v464 = vld [vmem:[%s5 + $0x8c0] sm:$0xff]
    %v465 = vld [vmem:[%s5 + $0x8c8] sm:$0xff]
    %v466 = vld [vmem:[%s5 + $0x8d0] sm:$0xff]
    %v467 = vld [vmem:[%s5 + $0x900] sm:$0xff]
    %v468 = vld [vmem:[%s5 + $0x908] sm:$0xff]
    %v469 = vld [vmem:[%s5 + $0x910] sm:$0xff]
    %v470 = vld [vmem:[%s5 + $0x918] sm:$0xff]
    %v471 = vld [vmem:[%s5 + $0x920] sm:$0xff]
    %v472 = vld [vmem:[%s5 + $0x928] sm:$0xff]
    %v473 = vld [vmem:[%s5 + $0x958] sm:$0xff]
    %v474 = vld [vmem:[%s5 + $0x960] sm:$0xff]
    %v475 = vld [vmem:[%s5 + $0x968] sm:$0xff]
    %v476 = vld [vmem:[%s5 + $0x970] sm:$0xff]
    %v477 = vld [vmem:[%s5 + $0x978] sm:$0xff]
    %v478 = vld [vmem:[%s5 + $0x980] sm:$0xff]
    %v479 = vld [vmem:[%s5 + $0x9b0] sm:$0xff]
    %v480 = vld [vmem:[%s5 + $0x9b8] sm:$0xff]
    %v481 = vld [vmem:[%s5 + $0x9c0] sm:$0xff]
    %v482 = vld [vmem:[%s5 + $0x9c8] sm:$0xff]
    %v483 = vld [vmem:[%s5 + $0x9d0] sm:$0xff]
    %v484 = vld [vmem:[%s5 + $0x9d8] sm:$0xff]
    %v485 = vld [vmem:[%s5 + $0xa08] sm:$0xff]
    %v486 = vld [vmem:[%s5 + $0xa10] sm:$0xff]
    %v487 = vld [vmem:[%s5 + $0xa18] sm:$0xff]
    %v488 = vld [vmem:[%s5 + $0xa20] sm:$0xff]
    %v489 = vld [vmem:[%s5 + $0xa28] sm:$0xff]
    %v490 = vld [vmem:[%s5 + $0xa30] sm:$0xff]
    %v491 = vld [vmem:[%s5 + $0xa60] sm:$0xff]
    %v492 = vld [vmem:[%s5 + $0xa68] sm:$0xff]
    %v493 = vld [vmem:[%s5 + $0xa70] sm:$0xff]
    %v494 = vld [vmem:[%s5 + $0xa78] sm:$0xff]
    %v495 = vld [vmem:[%s5 + $0xa80] sm:$0xff]
    %v496 = vld [vmem:[%s5 + $0xa88] sm:$0xff]
    %v497 = vld [vmem:[%s5 + $0xab8] sm:$0xff]
    %v498 = vld [vmem:[%s5 + $0xac0] sm:$0xff]
    %v499 = vld [vmem:[%s5 + $0xac8] sm:$0xff]
    %v500 = vld [vmem:[%s5 + $0xad0] sm:$0xff]
    %v501 = vld [vmem:[%s5 + $0xad8] sm:$0xff]
    %v502 = vld [vmem:[%s5 + $0xae0] sm:$0xff]
    %v504 = vlaneseq
    %v505 = vshrl.u32 %v504, 7
    %v506 = vsub.s32 1, %v505
    %v507 = vrot.slane %v45, %v506
    %v508 = vlaneseq
    %v509 = vshrl.u32 %v508, 7
    %v510 = vsub.s32 3, %v509
    %v511 = vrot.slane %v45, %v510
    %v512 = vlaneseq
    %v513 = vshrl.u32 %v512, 7
    %v514 = vsub.s32 5, %v513
    %v515 = vrot.slane %v45, %v514
    %v516 = vlaneseq
    %v517 = vshrl.u32 %v516, 7
    %v518 = vsub.s32 7, %v517
    %v519 = vrot.slane %v45, %v518
    %v520 = vlaneseq
    %v521 = vshrl.u32 %v520, 7
    %v522 = vsub.s32 1, %v521
    %v523 = vrot.slane %v46, %v522
    %v524 = vlaneseq
    %v525 = vshrl.u32 %v524, 7
    %v526 = vsub.s32 3, %v525
    %v527 = vrot.slane %v46, %v526
    %534 = vmatprep.subr.mxu0 %v402
    %535 = vmatpush1.msra.mxu0 %v401
    %536 = vmatprep.subr.mxu0 %v396
    %537 = vmatpush1.msra.mxu0 %v395
    %538 = vmatprep.subr.mxu0 %v390
    %539 = vmatpush1.msra.mxu0 %v389
    %540 = vmatprep.subr.mxu0 %v384
    %541 = vmatpush1.msra.mxu0 %v383
    %542 = vmatprep.subr.mxu0 %v378
    %543 = vmatpush1.msra.mxu0 %v377
    %544 = vmatprep.subr.mxu0 %v372
    %545 = vmatpush1.msra.mxu0 %v371
    %546 = vmatprep.subr.mxu0 %v366
    %547 = vmatpush1.msra.mxu0 %v365
    %548 = vmatprep.subr.mxu0 %v360
    %549 = vmatpush1.msra.mxu0 %v359
    %550 = vmatprep.subr.mxu0 %v354
    %551 = vmatpush1.msra.mxu0 %v353
    %552 = vmatprep.subr.mxu0 %v348
    %553 = vmatpush1.msra.mxu0 %v347
    %554 = vmatprep.subr.mxu0 %v342
    %555 = vmatpush1.msra.mxu0 %v341
    %556 = vmatprep.subr.mxu0 %v336
    %557 = vmatpush1.msra.mxu0 %v335
    %558 = vmatprep.subr.mxu0 %v330
    %559 = vmatpush1.msra.mxu0 %v329
    %560 = vmatprep.subr.mxu0 %v324
    %561 = vmatpush1.msra.mxu0 %v323
    %562 = vmatprep.subr.mxu0 %v318
    %563 = vmatpush1.msra.mxu0 %v317
    %564 = vmatprep.subr.mxu0 %v312
    %565 = vmatpush1.msra.mxu0 %v311
    %566 = vmatprep.subr.mxu0 %v498
    %567 = vmatpush2.msra.mxu0 %v497
    %568 = vmatprep.subr.mxu0 %v492
    %569 = vmatpush2.msra.mxu0 %v491
    %570 = vmatprep.subr.mxu0 %v486
    %571 = vmatpush2.msra.mxu0 %v485
    %572 = vmatprep.subr.mxu0 %v480
    %573 = vmatpush2.msra.mxu0 %v479
    %574 = vmatprep.subr.mxu0 %v474
    %575 = vmatpush2.msra.mxu0 %v473
    %576 = vmatprep.subr.mxu0 %v468
    %577 = vmatpush2.msra.mxu0 %v467
    %578 = vmatprep.subr.mxu0 %v462
    %579 = vmatpush2.msra.mxu0 %v461
    %580 = vmatprep.subr.mxu0 %v456
    %581 = vmatpush2.msra.mxu0 %v455
    %582 = vmatprep.subr.mxu0 %v450
    %583 = vmatpush2.msra.mxu0 %v449
    %584 = vmatprep.subr.mxu0 %v444
    %585 = vmatpush2.msra.mxu0 %v443
    %586 = vmatprep.subr.mxu0 %v438
    %587 = vmatpush2.msra.mxu0 %v437
    %588 = vmatprep.subr.mxu0 %v432
    %589 = vmatpush2.msra.mxu0 %v431
    %590 = vmatprep.subr.mxu0 %v426
    %591 = vmatpush2.msra.mxu0 %v425
    %592 = vmatprep.subr.mxu0 %v420
    %593 = vmatpush2.msra.mxu0 %v419
    %594 = vmatprep.subr.mxu0 %v414
    %595 = vmatpush2.msra.mxu0 %v413
    %596 = vmatprep.subr.mxu0 %v408
    %597 = vmatpush2.msra.mxu0 %v407
    %598 = vmatprep.mubr.f32.mxu0 %v309
    %599 = vmatmul.mubr.f32.gmra.mxu0 %v307
    %v600 = vpop.f32.mrf.mxu0
    %v601 = vadd.f32 %v507, %v600
    %v602 = vpop.f32.mrf.mxu0
    %v603 = vadd.f32 %v511, %v602
    %604 = vdwg.mxu0
    %605 = vmatprep.subr.mxu0 %v404
    %606 = vmatpush1.msra.mxu0 %v403
    %607 = vmatprep.subr.mxu0 %v398
    %608 = vmatpush1.msra.mxu0 %v397
    %609 = vmatprep.subr.mxu0 %v392
    %610 = vmatpush1.msra.mxu0 %v391
    %611 = vmatprep.subr.mxu0 %v386
    %612 = vmatpush1.msra.mxu0 %v385
    %613 = vmatprep.subr.mxu0 %v380
    %614 = vmatpush1.msra.mxu0 %v379
    %615 = vmatprep.subr.mxu0 %v374
    %616 = vmatpush1.msra.mxu0 %v373
    %617 = vmatprep.subr.mxu0 %v368
    %618 = vmatpush1.msra.mxu0 %v367
    %619 = vmatprep.subr.mxu0 %v362
    %620 = vmatpush1.msra.mxu0 %v361
    %621 = vmatprep.subr.mxu0 %v356
    %622 = vmatpush1.msra.mxu0 %v355
    %623 = vmatprep.subr.mxu0 %v350
    %624 = vmatpush1.msra.mxu0 %v349
    %625 = vmatprep.subr.mxu0 %v344
    %626 = vmatpush1.msra.mxu0 %v343
    %627 = vmatprep.subr.mxu0 %v338
    %628 = vmatpush1.msra.mxu0 %v337
    %629 = vmatprep.subr.mxu0 %v332
    %630 = vmatpush1.msra.mxu0 %v331
    %631 = vmatprep.subr.mxu0 %v326
    %632 = vmatpush1.msra.mxu0 %v325
    %633 = vmatprep.subr.mxu0 %v320
    %634 = vmatpush1.msra.mxu0 %v319
    %635 = vmatprep.subr.mxu0 %v314
    %636 = vmatpush1.msra.mxu0 %v313
    %637 = vmatprep.subr.mxu0 %v500
    %638 = vmatpush2.msra.mxu0 %v499
    %639 = vmatprep.subr.mxu0 %v494
    %640 = vmatpush2.msra.mxu0 %v493
    %641 = vmatprep.subr.mxu0 %v488
    %642 = vmatpush2.msra.mxu0 %v487
    %643 = vmatprep.subr.mxu0 %v482
    %644 = vmatpush2.msra.mxu0 %v481
    %645 = vmatprep.subr.mxu0 %v476
    %646 = vmatpush2.msra.mxu0 %v475
    %647 = vmatprep.subr.mxu0 %v470
    %648 = vmatpush2.msra.mxu0 %v469
    %649 = vmatprep.subr.mxu0 %v464
    %650 = vmatpush2.msra.mxu0 %v463
    %651 = vmatprep.subr.mxu0 %v458
    %652 = vmatpush2.msra.mxu0 %v457
    %653 = vmatprep.subr.mxu0 %v452
    %654 = vmatpush2.msra.mxu0 %v451
    %655 = vmatprep.subr.mxu0 %v446
    %656 = vmatpush2.msra.mxu0 %v445
    %657 = vmatprep.subr.mxu0 %v440
    %658 = vmatpush2.msra.mxu0 %v439
    %659 = vmatprep.subr.mxu0 %v434
    %660 = vmatpush2.msra.mxu0 %v433
    %661 = vmatprep.subr.mxu0 %v428
    %662 = vmatpush2.msra.mxu0 %v427
    %663 = vmatprep.subr.mxu0 %v422
    %664 = vmatpush2.msra.mxu0 %v421
    %665 = vmatprep.subr.mxu0 %v416
    %666 = vmatpush2.msra.mxu0 %v415
    %667 = vmatprep.subr.mxu0 %v410
    %668 = vmatpush2.msra.mxu0 %v409
    %669 = vmatprep.mubr.f32.mxu0 %v309
    %670 = vmatmul.mubr.f32.gmra.mxu0 %v307
    %v671 = vpop.f32.mrf.mxu0
    %v672 = vadd.f32 %v515, %v671
    %v673 = vpop.f32.mrf.mxu0
    %v674 = vadd.f32 %v519, %v673
    %675 = vdwg.mxu0
    %676 = vmatprep.subr.mxu0 %v406
    %677 = vmatpush1.msra.mxu0 %v405
    %678 = vmatprep.subr.mxu0 %v400
    %679 = vmatpush1.msra.mxu0 %v399
    %680 = vmatprep.subr.mxu0 %v394
    %681 = vmatpush1.msra.mxu0 %v393
    %682 = vmatprep.subr.mxu0 %v388
    %683 = vmatpush1.msra.mxu0 %v387
    %684 = vmatprep.subr.mxu0 %v382
    %685 = vmatpush1.msra.mxu0 %v381
    %686 = vmatprep.subr.mxu0 %v376
    %687 = vmatpush1.msra.mxu0 %v375
    %688 = vmatprep.subr.mxu0 %v370
    %689 = vmatpush1.msra.mxu0 %v369
    %690 = vmatprep.subr.mxu0 %v364
    %691 = vmatpush1.msra.mxu0 %v363
    %692 = vmatprep.subr.mxu0 %v358
    %693 = vmatpush1.msra.mxu0 %v357
    %694 = vmatprep.subr.mxu0 %v352
    %695 = vmatpush1.msra.mxu0 %v351
    %696 = vmatprep.subr.mxu0 %v346
    %697 = vmatpush1.msra.mxu0 %v345
    %698 = vmatprep.subr.mxu0 %v340
    %699 = vmatpush1.msra.mxu0 %v339
    %700 = vmatprep.subr.mxu0 %v334
    %701 = vmatpush1.msra.mxu0 %v333
    %702 = vmatprep.subr.mxu0 %v328
    %703 = vmatpush1.msra.mxu0 %v327
    %704 = vmatprep.subr.mxu0 %v322
    %705 = vmatpush1.msra.mxu0 %v321
    %706 = vmatprep.subr.mxu0 %v316
    %707 = vmatpush1.msra.mxu0 %v315
    %708 = vmatprep.subr.mxu0 %v502
    %709 = vmatpush2.msra.mxu0 %v501
    %710 = vmatprep.subr.mxu0 %v496
    %711 = vmatpush2.msra.mxu0 %v495
    %712 = vmatprep.subr.mxu0 %v490
    %713 = vmatpush2.msra.mxu0 %v489
    %714 = vmatprep.subr.mxu0 %v484
    %715 = vmatpush2.msra.mxu0 %v483
    %716 = vmatprep.subr.mxu0 %v478
    %717 = vmatpush2.msra.mxu0 %v477
    %718 = vmatprep.subr.mxu0 %v472
    %719 = vmatpush2.msra.mxu0 %v471
    %720 = vmatprep.subr.mxu0 %v466
    %721 = vmatpush2.msra.mxu0 %v465
    %722 = vmatprep.subr.mxu0 %v460
    %723 = vmatpush2.msra.mxu0 %v459
    %724 = vmatprep.subr.mxu0 %v454
    %725 = vmatpush2.msra.mxu0 %v453
    %726 = vmatprep.subr.mxu0 %v448
    %727 = vmatpush2.msra.mxu0 %v447
    %728 = vmatprep.subr.mxu0 %v442
    %729 = vmatpush2.msra.mxu0 %v441
    %730 = vmatprep.subr.mxu0 %v436
    %731 = vmatpush2.msra.mxu0 %v435
    %732 = vmatprep.subr.mxu0 %v430
    %733 = vmatpush2.msra.mxu0 %v429
    %734 = vmatprep.subr.mxu0 %v424
    %735 = vmatpush2.msra.mxu0 %v423
    %736 = vmatprep.subr.mxu0 %v418
    %737 = vmatpush2.msra.mxu0 %v417
    %738 = vmatprep.subr.mxu0 %v412
    %739 = vmatpush2.msra.mxu0 %v411
    %740 = vmatprep.mubr.f32.mxu0 %v309
    %741 = vmatmul.mubr.f32.gmra.mxu0 %v307
    %v742 = vpop.f32.mrf.mxu0
    %v743 = vadd.f32 %v523, %v742
    %v744 = vpop.f32.mrf.mxu0
    %v745 = vadd.f32 %v527, %v744
    %746 = vdwg.mxu0
    %v747 = vmax.f32 %v601, 0.0
    %v748 = vmax.f32 %v603, 0.0
    %v749 = vld [vmem:[%s4] sm:$0xff]
    %v750 = vlaneseq
    %v751 = vshrl.u32 %v750, 7
    %v752 = vsub.s32 0, %v751
    %v753 = vrot.slane %v672, %v752
    %v754 = vlaneseq
    %v755 = vshrl.u32 %v754, 7
    %v756 = vsub.s32 0, %v755
    %v757 = vrot.slane %v674, %v756
    %v758 = vlaneseq
    %v759 = vshrl.u32 %v758, 7
    %v760 = vsub.s32 0, %v759
    %v761 = vrot.slane %v743, %v760
    %v762 = vlaneseq
    %v763 = vshrl.u32 %v762, 7
    %v764 = vsub.s32 0, %v763
    %v765 = vrot.slane %v745, %v764
    %v767 = vcombine.high %v749, %v749
    %v769 = vunpack.c.l.s4 1983009808
    %v770 = vunpack.c.0.s8 %v769
    %v771 = vlaneseq
    %v772 = vshrl.u32 %v771, 7
    %v773 = vsub.s32 %v770, %v772
    %v774 = vrot.slane %v749, %v773
    %v776 = vunpack.c.l.s4 1983009808
    %v777 = vunpack.c.0.s8 %v776
    %v778 = vlaneseq
    %v779 = vshrl.u32 %v778, 7
    %v780 = vsub.s32 %v777, %v779
    %v781 = vrot.slane %v767, %v780
    %v782 = vcombine.high %v774, %v774
    %v783 = vcombine.high %v781, %v781
    %vm784 = vcmask 15360
    %v785 = vsel %vm784, %v42, 0
    %v788 = vsel %vm784, %v43, 0
    %vm790 = vcmask 1041408
    %v791 = vsel %vm790, %v774, 0
    %v793 = vsel %vm790, %v782, 0
    %v795 = vsel %vm790, %v781, 0
    %v797 = vsel %vm790, %v783, 0
    %799 = vmatprep.subr.mxu0 0.0
    %800 = vmatpush1.msra.mxu0 0.0
    %801 = vmatprep.subr.mxu0 0.0
    %802 = vmatpush1.msra.mxu0 0.0
    %803 = vmatprep.subr.mxu0 0.0
    %804 = vmatpush1.msra.mxu0 0.0
    %805 = vmatprep.subr.mxu0 0.0
    %806 = vmatpush1.msra.mxu0 0.0
    %807 = vmatprep.subr.mxu0 0.0
    %808 = vmatpush1.msra.mxu0 0.0
    %809 = vmatprep.subr.mxu0 0.0
    %810 = vmatpush1.msra.mxu0 0.0
    %811 = vmatprep.subr.mxu0 0.0
    %812 = vmatpush1.msra.mxu0 0.0
    %813 = vmatprep.subr.mxu0 0.0
    %814 = vmatpush1.msra.mxu0 0.0
    %815 = vmatprep.subr.mxu0 0.0
    %816 = vmatpush1.msra.mxu0 0.0
    %817 = vmatprep.subr.mxu0 0.0
    %818 = vmatpush1.msra.mxu0 0.0
    %819 = vmatprep.subr.mxu0 0.0
    %820 = vmatpush1.msra.mxu0 0.0
    %821 = vmatprep.subr.mxu0 0.0
    %822 = vmatpush1.msra.mxu0 0.0
    %823 = vmatprep.subr.mxu0 0.0
    %824 = vmatpush1.msra.mxu0 0.0
    %825 = vmatprep.subr.mxu0 0.0
    %826 = vmatpush1.msra.mxu0 0.0
    %827 = vmatprep.subr.mxu0 0.0
    %828 = vmatpush1.msra.mxu0 0.0
    %829 = vmatprep.subr.mxu0 %v793
    %830 = vmatpush1.msra.mxu0 %v791
    %831 = vmatprep.subr.mxu0 0.0
    %832 = vmatpush2.msra.mxu0 0.0
    %833 = vmatprep.subr.mxu0 0.0
    %834 = vmatpush2.msra.mxu0 0.0
    %835 = vmatprep.subr.mxu0 0.0
    %836 = vmatpush2.msra.mxu0 0.0
    %837 = vmatprep.subr.mxu0 0.0
    %838 = vmatpush2.msra.mxu0 0.0
    %839 = vmatprep.subr.mxu0 0.0
    %840 = vmatpush2.msra.mxu0 0.0
    %841 = vmatprep.subr.mxu0 0.0
    %842 = vmatpush2.msra.mxu0 0.0
    %843 = vmatprep.subr.mxu0 0.0
    %844 = vmatpush2.msra.mxu0 0.0
    %845 = vmatprep.subr.mxu0 0.0
    %846 = vmatpush2.msra.mxu0 0.0
    %847 = vmatprep.subr.mxu0 0.0
    %848 = vmatpush2.msra.mxu0 0.0
    %849 = vmatprep.subr.mxu0 0.0
    %850 = vmatpush2.msra.mxu0 0.0
    %851 = vmatprep.subr.mxu0 0.0
    %852 = vmatpush2.msra.mxu0 0.0
    %853 = vmatprep.subr.mxu0 0.0
    %854 = vmatpush2.msra.mxu0 0.0
    %855 = vmatprep.subr.mxu0 0.0
    %856 = vmatpush2.msra.mxu0 0.0
    %857 = vmatprep.subr.mxu0 0.0
    %858 = vmatpush2.msra.mxu0 0.0
    %859 = vmatprep.subr.mxu0 0.0
    %860 = vmatpush2.msra.mxu0 0.0
    %861 = vmatprep.subr.mxu0 0.0
    %862 = vmatpush2.msra.mxu0 0.0
    %863 = vmatprep.mubr.f32.mxu0 0.0
    %864 = vmatmul.mubr.f32.gmra.mxu0 %v785
    %v865 = vpop.f32.mrf.mxu0
    %v866 = vadd.f32 %v753, %v865
    %v867 = vpop.f32.mrf.mxu0
    %v868 = vadd.f32 %v757, %v867
    %869 = vmatprep.mubr.f32.mxu0 0.0
    %870 = vmatmul.mubr.f32.gmra.mxu0 %v788
    %v871 = vpop.f32.mrf.mxu0
    %v872 = vadd.f32 %v753, %v871
    %v873 = vpop.f32.mrf.mxu0
    %v874 = vadd.f32 %v757, %v873
    %875 = vdwg.mxu0
    %876 = vmatprep.subr.mxu0 0.0
    %877 = vmatpush1.msra.mxu0 0.0
    %878 = vmatprep.subr.mxu0 0.0
    %879 = vmatpush1.msra.mxu0 0.0
    %880 = vmatprep.subr.mxu0 0.0
    %881 = vmatpush1.msra.mxu0 0.0
    %882 = vmatprep.subr.mxu0 0.0
    %883 = vmatpush1.msra.mxu0 0.0
    %884 = vmatprep.subr.mxu0 0.0
    %885 = vmatpush1.msra.mxu0 0.0
    %886 = vmatprep.subr.mxu0 0.0
    %887 = vmatpush1.msra.mxu0 0.0
    %888 = vmatprep.subr.mxu0 0.0
    %889 = vmatpush1.msra.mxu0 0.0
    %890 = vmatprep.subr.mxu0 0.0
    %891 = vmatpush1.msra.mxu0 0.0
    %892 = vmatprep.subr.mxu0 0.0
    %893 = vmatpush1.msra.mxu0 0.0
    %894 = vmatprep.subr.mxu0 0.0
    %895 = vmatpush1.msra.mxu0 0.0
    %896 = vmatprep.subr.mxu0 0.0
    %897 = vmatpush1.msra.mxu0 0.0
    %898 = vmatprep.subr.mxu0 0.0
    %899 = vmatpush1.msra.mxu0 0.0
    %900 = vmatprep.subr.mxu0 0.0
    %901 = vmatpush1.msra.mxu0 0.0
    %902 = vmatprep.subr.mxu0 0.0
    %903 = vmatpush1.msra.mxu0 0.0
    %904 = vmatprep.subr.mxu0 0.0
    %905 = vmatpush1.msra.mxu0 0.0
    %906 = vmatprep.subr.mxu0 %v797
    %907 = vmatpush1.msra.mxu0 %v795
    %908 = vmatprep.subr.mxu0 0.0
    %909 = vmatpush2.msra.mxu0 0.0
    %910 = vmatprep.subr.mxu0 0.0
    %911 = vmatpush2.msra.mxu0 0.0
    %912 = vmatprep.subr.mxu0 0.0
    %913 = vmatpush2.msra.mxu0 0.0
    %914 = vmatprep.subr.mxu0 0.0
    %915 = vmatpush2.msra.mxu0 0.0
    %916 = vmatprep.subr.mxu0 0.0
    %917 = vmatpush2.msra.mxu0 0.0
    %918 = vmatprep.subr.mxu0 0.0
    %919 = vmatpush2.msra.mxu0 0.0
    %920 = vmatprep.subr.mxu0 0.0
    %921 = vmatpush2.msra.mxu0 0.0
    %922 = vmatprep.subr.mxu0 0.0
    %923 = vmatpush2.msra.mxu0 0.0
    %924 = vmatprep.subr.mxu0 0.0
    %925 = vmatpush2.msra.mxu0 0.0
    %926 = vmatprep.subr.mxu0 0.0
    %927 = vmatpush2.msra.mxu0 0.0
    %928 = vmatprep.subr.mxu0 0.0
    %929 = vmatpush2.msra.mxu0 0.0
    %930 = vmatprep.subr.mxu0 0.0
    %931 = vmatpush2.msra.mxu0 0.0
    %932 = vmatprep.subr.mxu0 0.0
    %933 = vmatpush2.msra.mxu0 0.0
    %934 = vmatprep.subr.mxu0 0.0
    %935 = vmatpush2.msra.mxu0 0.0
    %936 = vmatprep.subr.mxu0 0.0
    %937 = vmatpush2.msra.mxu0 0.0
    %938 = vmatprep.subr.mxu0 0.0
    %939 = vmatpush2.msra.mxu0 0.0
    %940 = vmatprep.mubr.f32.mxu0 0.0
    %941 = vmatmul.mubr.f32.gmra.mxu0 %v785
    %v942 = vpop.f32.mrf.mxu0
    %v943 = vadd.f32 %v761, %v942
    %v944 = vpop.f32.mrf.mxu0
    %v945 = vadd.f32 %v765, %v944
    %946 = vmatprep.mubr.f32.mxu0 0.0
    %947 = vmatmul.mubr.f32.gmra.mxu0 %v788
    %v948 = vpop.f32.mrf.mxu0
    %v949 = vadd.f32 %v761, %v948
    %v950 = vpop.f32.mrf.mxu0
    %v951 = vadd.f32 %v765, %v950
    %952 = vdwg.mxu0
    %v953 = vmax.f32 %v866, 0.0
    %v954 = vmax.f32 %v868, 0.0
    %v955 = vmax.f32 %v943, 0.0
    %v956 = vmax.f32 %v945, 0.0
    %v957 = vmax.f32 %v872, 0.0
    %v958 = vmax.f32 %v874, 0.0
    %v959 = vmax.f32 %v949, 0.0
    %v960 = vmax.f32 %v951, 0.0
    %vm965 = vcmask 1040384
    %v966 = vrot.slane %v953, 7
    %v967 = vrot.slane %v954, 7
    %v968 = vrot.slane %v957, 7
    %v969 = vsel %vm965, %v966, %v968
    %v970 = vrot.slane %v958, 7
    %v971 = vsel %vm965, %v967, %v970
    %v976 = vsel %vm965, %v747, %v966
    %v977 = vsel %vm965, %v748, %v967
    %v978 = vld [vmem:[%s5 + $0x50] sm:$0xff]
    %v979 = vld [vmem:[%s5 + $0xa8] sm:$0xff]
    %v980 = vld [vmem:[%s5 + $0x100] sm:$0xff]
    %v981 = vld [vmem:[%s5 + $0x158] sm:$0xff]
    %v982 = vld [vmem:[%s5 + $0x1b0] sm:$0xff]
    %v983 = vld [vmem:[%s5 + $0x208] sm:$0xff]
    %v984 = vld [vmem:[%s5 + $0x260] sm:$0xff]
    %v985 = vld [vmem:[%s5 + $0x2b8] sm:$0xff]
    %v986 = vld [vmem:[%s5 + $0x310] sm:$0xff]
    %v987 = vld [vmem:[%s5 + $0x368] sm:$0xff]
    %v988 = vld [vmem:[%s5 + $0x3c0] sm:$0xff]
    %v989 = vld [vmem:[%s5 + $0x418] sm:$0xff]
    %v990 = vld [vmem:[%s5 + $0x470] sm:$0xff]
    %v991 = vld [vmem:[%s5 + $0x4c8] sm:$0xff]
    %v992 = vld [vmem:[%s5 + $0x520] sm:$0xff]
    %v993 = vld [vmem:[%s5 + $0x578] sm:$0xff]
    %v994 = vld [vmem:[%s5 + $0x5d0] sm:$0xff]
    %v995 = vld [vmem:[%s5 + $0x628] sm:$0xff]
    %v996 = vld [vmem:[%s5 + $0x680] sm:$0xff]
    %v997 = vld [vmem:[%s5 + $0x6d8] sm:$0xff]
    %v998 = vld [vmem:[%s5 + $0x730] sm:$0xff]
    %v999 = vld [vmem:[%s5 + $0x788] sm:$0xff]
    %v1000 = vld [vmem:[%s5 + $0x7e0] sm:$0xff]
    %v1001 = vld [vmem:[%s5 + $0x838] sm:$0xff]
    %v1002 = vld [vmem:[%s5 + $0x890] sm:$0xff]
    %v1003 = vld [vmem:[%s5 + $0x8e8] sm:$0xff]
    %v1004 = vld [vmem:[%s5 + $0x940] sm:$0xff]
    %v1005 = vld [vmem:[%s5 + $0x998] sm:$0xff]
    %v1006 = vld [vmem:[%s5 + $0x9f0] sm:$0xff]
    %v1007 = vld [vmem:[%s5 + $0xa48] sm:$0xff]
    %v1008 = vld [vmem:[%s5 + $0xaa0] sm:$0xff]
    %v1009 = vld [vmem:[%s5 + $0xaf8] sm:$0xff]
    %1010 = vmatprep.subr.mxu0 0.0
    %1011 = vmatpush1.msra.mxu0 %v993
    %1012 = vmatprep.subr.mxu0 0.0
    %1013 = vmatpush1.msra.mxu0 %v992
    %1014 = vmatprep.subr.mxu0 0.0
    %1015 = vmatpush1.msra.mxu0 %v991
    %1016 = vmatprep.subr.mxu0 0.0
    %1017 = vmatpush1.msra.mxu0 %v990
    %1018 = vmatprep.subr.mxu0 0.0
    %1019 = vmatpush1.msra.mxu0 %v989
    %1020 = vmatprep.subr.mxu0 0.0
    %1021 = vmatpush1.msra.mxu0 %v988
    %1022 = vmatprep.subr.mxu0 0.0
    %1023 = vmatpush1.msra.mxu0 %v987
    %1024 = vmatprep.subr.mxu0 0.0
    %1025 = vmatpush1.msra.mxu0 %v986
    %1026 = vmatprep.subr.mxu0 0.0
    %1027 = vmatpush1.msra.mxu0 %v985
    %1028 = vmatprep.subr.mxu0 0.0
    %1029 = vmatpush1.msra.mxu0 %v984
    %1030 = vmatprep.subr.mxu0 0.0
    %1031 = vmatpush1.msra.mxu0 %v983
    %1032 = vmatprep.subr.mxu0 0.0
    %1033 = vmatpush1.msra.mxu0 %v982
    %1034 = vmatprep.subr.mxu0 0.0
    %1035 = vmatpush1.msra.mxu0 %v981
    %1036 = vmatprep.subr.mxu0 0.0
    %1037 = vmatpush1.msra.mxu0 %v980
    %1038 = vmatprep.subr.mxu0 0.0
    %1039 = vmatpush1.msra.mxu0 %v979
    %1040 = vmatprep.subr.mxu0 0.0
    %1041 = vmatpush1.msra.mxu0 %v978
    %1042 = vmatprep.subr.mxu0 0.0
    %1043 = vmatpush2.msra.mxu0 %v1009
    %1044 = vmatprep.subr.mxu0 0.0
    %1045 = vmatpush2.msra.mxu0 %v1008
    %1046 = vmatprep.subr.mxu0 0.0
    %1047 = vmatpush2.msra.mxu0 %v1007
    %1048 = vmatprep.subr.mxu0 0.0
    %1049 = vmatpush2.msra.mxu0 %v1006
    %1050 = vmatprep.subr.mxu0 0.0
    %1051 = vmatpush2.msra.mxu0 %v1005
    %1052 = vmatprep.subr.mxu0 0.0
    %1053 = vmatpush2.msra.mxu0 %v1004
    %1054 = vmatprep.subr.mxu0 0.0
    %1055 = vmatpush2.msra.mxu0 %v1003
    %1056 = vmatprep.subr.mxu0 0.0
    %1057 = vmatpush2.msra.mxu0 %v1002
    %1058 = vmatprep.subr.mxu0 0.0
    %1059 = vmatpush2.msra.mxu0 %v1001
    %1060 = vmatprep.subr.mxu0 0.0
    %1061 = vmatpush2.msra.mxu0 %v1000
    %1062 = vmatprep.subr.mxu0 0.0
    %1063 = vmatpush2.msra.mxu0 %v999
    %1064 = vmatprep.subr.mxu0 0.0
    %1065 = vmatpush2.msra.mxu0 %v998
    %1066 = vmatprep.subr.mxu0 0.0
    %1067 = vmatpush2.msra.mxu0 %v997
    %1068 = vmatprep.subr.mxu0 0.0
    %1069 = vmatpush2.msra.mxu0 %v996
    %1070 = vmatprep.subr.mxu0 0.0
    %1071 = vmatpush2.msra.mxu0 %v995
    %1072 = vmatprep.subr.mxu0 0.0
    %1073 = vmatpush2.msra.mxu0 %v994
    %1074 = vmatprep.mubr.f32.mxu0 %v977
    %1075 = vmatmul.mubr.f32.gmra.mxu0 %v976
    %v1076 = vpop.f32.mrf.mxu0
    %v1077 = vadd.f32 0.0, %v1076
    %v1078 = vpop.f32.mrf.mxu0
    %1079 = vmatprep.mubr.f32.mxu0 %v971
    %1080 = vmatmul.mubr.f32.gmra.mxu0 %v969
    %v1081 = vpop.f32.mrf.mxu0
    %v1082 = vadd.f32 0.0, %v1081
    %v1083 = vpop.f32.mrf.mxu0
    %1084 = vdwg.mxu0
    %s1085 = sld [smem:[#allocation2]]
    %v1086 = vstv %s1085
    %v1087 = vadd.f32 %v1077, %v1086
    %s1088 = sld [smem:[#allocation2 + $0x1]]
    %v1089 = vstv %s1088
    %v1090 = vadd.f32 %v1077, %v1089
    %v1091 = vadd.f32 %v1082, %v1089
    %v1092 = vld [vmem:[%s5 + $0x40] sm:$0xff]
    %v1093 = vld [vmem:[%s5 + $0x48] sm:$0xff]
    %v1094 = vld [vmem:[%s5 + $0x98] sm:$0xff]
    %v1095 = vld [vmem:[%s5 + $0xa0] sm:$0xff]
    %v1096 = vld [vmem:[%s5 + $0xf0] sm:$0xff]
    %v1097 = vld [vmem:[%s5 + $0xf8] sm:$0xff]
    %v1098 = vld [vmem:[%s5 + $0x148] sm:$0xff]
    %v1099 = vld [vmem:[%s5 + $0x150] sm:$0xff]
    %v1100 = vld [vmem:[%s5 + $0x1a0] sm:$0xff]
    %v1101 = vld [vmem:[%s5 + $0x1a8] sm:$0xff]
    %v1102 = vld [vmem:[%s5 + $0x1f8] sm:$0xff]
    %v1103 = vld [vmem:[%s5 + $0x200] sm:$0xff]
    %v1104 = vld [vmem:[%s5 + $0x250] sm:$0xff]
    %v1105 = vld [vmem:[%s5 + $0x258] sm:$0xff]
    %v1106 = vld [vmem:[%s5 + $0x2a8] sm:$0xff]
    %v1107 = vld [vmem:[%s5 + $0x2b0] sm:$0xff]
    %v1108 = vld [vmem:[%s5 + $0x300] sm:$0xff]
    %v1109 = vld [vmem:[%s5 + $0x308] sm:$0xff]
    %v1110 = vld [vmem:[%s5 + $0x358] sm:$0xff]
    %v1111 = vld [vmem:[%s5 + $0x360] sm:$0xff]
    %v1112 = vld [vmem:[%s5 + $0x3b0] sm:$0xff]
    %v1113 = vld [vmem:[%s5 + $0x3b8] sm:$0xff]
    %v1114 = vld [vmem:[%s5 + $0x408] sm:$0xff]
    %v1115 = vld [vmem:[%s5 + $0x410] sm:$0xff]
    %v1116 = vld [vmem:[%s5 + $0x460] sm:$0xff]
    %v1117 = vld [vmem:[%s5 + $0x468] sm:$0xff]
    %v1118 = vld [vmem:[%s5 + $0x4b8] sm:$0xff]
    %v1119 = vld [vmem:[%s5 + $0x4c0] sm:$0xff]
    %v1120 = vld [vmem:[%s5 + $0x510] sm:$0xff]
    %v1121 = vld [vmem:[%s5 + $0x518] sm:$0xff]
    %v1122 = vld [vmem:[%s5 + $0x568] sm:$0xff]
    %v1123 = vld [vmem:[%s5 + $0x570] sm:$0xff]
    %v1124 = vld [vmem:[%s5 + $0x5c0] sm:$0xff]
    %v1125 = vld [vmem:[%s5 + $0x5c8] sm:$0xff]
    %v1126 = vld [vmem:[%s5 + $0x618] sm:$0xff]
    %v1127 = vld [vmem:[%s5 + $0x620] sm:$0xff]
    %v1128 = vld [vmem:[%s5 + $0x670] sm:$0xff]
    %v1129 = vld [vmem:[%s5 + $0x678] sm:$0xff]
    %v1130 = vld [vmem:[%s5 + $0x6c8] sm:$0xff]
    %v1131 = vld [vmem:[%s5 + $0x6d0] sm:$0xff]
    %v1132 = vld [vmem:[%s5 + $0x720] sm:$0xff]
    %v1133 = vld [vmem:[%s5 + $0x728] sm:$0xff]
    %v1134 = vld [vmem:[%s5 + $0x778] sm:$0xff]
    %v1135 = vld [vmem:[%s5 + $0x780] sm:$0xff]
    %v1136 = vld [vmem:[%s5 + $0x7d0] sm:$0xff]
    %v1137 = vld [vmem:[%s5 + $0x7d8] sm:$0xff]
    %v1138 = vld [vmem:[%s5 + $0x828] sm:$0xff]
    %v1139 = vld [vmem:[%s5 + $0x830] sm:$0xff]
    %v1140 = vld [vmem:[%s5 + $0x880] sm:$0xff]
    %v1141 = vld [vmem:[%s5 + $0x888] sm:$0xff]
    %v1142 = vld [vmem:[%s5 + $0x8d8] sm:$0xff]
    %v1143 = vld [vmem:[%s5 + $0x8e0] sm:$0xff]
    %v1144 = vld [vmem:[%s5 + $0x930] sm:$0xff]
    %v1145 = vld [vmem:[%s5 + $0x938] sm:$0xff]
    %v1146 = vld [vmem:[%s5 + $0x988] sm:$0xff]
    %v1147 = vld [vmem:[%s5 + $0x990] sm:$0xff]
    %v1148 = vld [vmem:[%s5 + $0x9e0] sm:$0xff]
    %v1149 = vld [vmem:[%s5 + $0x9e8] sm:$0xff]
    %v1150 = vld [vmem:[%s5 + $0xa38] sm:$0xff]
    %v1151 = vld [vmem:[%s5 + $0xa40] sm:$0xff]
    %v1152 = vld [vmem:[%s5 + $0xa90] sm:$0xff]
    %v1153 = vld [vmem:[%s5 + $0xa98] sm:$0xff]
    %v1154 = vld [vmem:[%s5 + $0xae8] sm:$0xff]
    %v1155 = vld [vmem:[%s5 + $0xaf0] sm:$0xff]
    %v1156 = vlaneseq
    %v1157 = vshrl.u32 %v1156, 7
    %v1158 = vsub.s32 0, %v1157
    %v1159 = vrot.slane %v46, %v1158
    %v1160 = vlaneseq
    %v1161 = vshrl.u32 %v1160, 7
    %v1162 = vsub.s32 2, %v1161
    %v1163 = vrot.slane %v46, %v1162
    %v1166 = vlaneseq
    %v1167 = vshrl.u32 %v1166, 7
    %v1168 = vsub.s32 0, %v1167
    %v1169 = vrot.slane %v1159, %v1168
    %v1170 = vlaneseq
    %v1171 = vshrl.u32 %v1170, 7
    %v1172 = vsub.s32 0, %v1171
    %v1173 = vrot.slane %v1163, %v1172
    %1174 = vmatprep.subr.mxu0 %v1123
    %1175 = vmatpush1.msra.mxu0 %v1122
    %1176 = vmatprep.subr.mxu0 %v1121
    %1177 = vmatpush1.msra.mxu0 %v1120
    %1178 = vmatprep.subr.mxu0 %v1119
    %1179 = vmatpush1.msra.mxu0 %v1118
    %1180 = vmatprep.subr.mxu0 %v1117
    %1181 = vmatpush1.msra.mxu0 %v1116
    %1182 = vmatprep.subr.mxu0 %v1115
    %1183 = vmatpush1.msra.mxu0 %v1114
    %1184 = vmatprep.subr.mxu0 %v1113
    %1185 = vmatpush1.msra.mxu0 %v1112
    %1186 = vmatprep.subr.mxu0 %v1111
    %1187 = vmatpush1.msra.mxu0 %v1110
    %1188 = vmatprep.subr.mxu0 %v1109
    %1189 = vmatpush1.msra.mxu0 %v1108
    %1190 = vmatprep.subr.mxu0 %v1107
    %1191 = vmatpush1.msra.mxu0 %v1106
    %1192 = vmatprep.subr.mxu0 %v1105
    %1193 = vmatpush1.msra.mxu0 %v1104
    %1194 = vmatprep.subr.mxu0 %v1103
    %1195 = vmatpush1.msra.mxu0 %v1102
    %1196 = vmatprep.subr.mxu0 %v1101
    %1197 = vmatpush1.msra.mxu0 %v1100
    %1198 = vmatprep.subr.mxu0 %v1099
    %1199 = vmatpush1.msra.mxu0 %v1098
    %1200 = vmatprep.subr.mxu0 %v1097
    %1201 = vmatpush1.msra.mxu0 %v1096
    %1202 = vmatprep.subr.mxu0 %v1095
    %1203 = vmatpush1.msra.mxu0 %v1094
    %1204 = vmatprep.subr.mxu0 %v1093
    %1205 = vmatpush1.msra.mxu0 %v1092
    %1206 = vmatprep.subr.mxu0 %v1155
    %1207 = vmatpush2.msra.mxu0 %v1154
    %1208 = vmatprep.subr.mxu0 %v1153
    %1209 = vmatpush2.msra.mxu0 %v1152
    %1210 = vmatprep.subr.mxu0 %v1151
    %1211 = vmatpush2.msra.mxu0 %v1150
    %1212 = vmatprep.subr.mxu0 %v1149
    %1213 = vmatpush2.msra.mxu0 %v1148
    %1214 = vmatprep.subr.mxu0 %v1147
    %1215 = vmatpush2.msra.mxu0 %v1146
    %1216 = vmatprep.subr.mxu0 %v1145
    %1217 = vmatpush2.msra.mxu0 %v1144
    %1218 = vmatprep.subr.mxu0 %v1143
    %1219 = vmatpush2.msra.mxu0 %v1142
    %1220 = vmatprep.subr.mxu0 %v1141
    %1221 = vmatpush2.msra.mxu0 %v1140
    %1222 = vmatprep.subr.mxu0 %v1139
    %1223 = vmatpush2.msra.mxu0 %v1138
    %1224 = vmatprep.subr.mxu0 %v1137
    %1225 = vmatpush2.msra.mxu0 %v1136
    %1226 = vmatprep.subr.mxu0 %v1135
    %1227 = vmatpush2.msra.mxu0 %v1134
    %1228 = vmatprep.subr.mxu0 %v1133
    %1229 = vmatpush2.msra.mxu0 %v1132
    %1230 = vmatprep.subr.mxu0 %v1131
    %1231 = vmatpush2.msra.mxu0 %v1130
    %1232 = vmatprep.subr.mxu0 %v1129
    %1233 = vmatpush2.msra.mxu0 %v1128
    %1234 = vmatprep.subr.mxu0 %v1127
    %1235 = vmatpush2.msra.mxu0 %v1126
    %1236 = vmatprep.subr.mxu0 %v1125
    %1237 = vmatpush2.msra.mxu0 %v1124
    %1238 = vmatprep.mubr.f32.mxu0 %v956
    %1239 = vmatmul.mubr.f32.gmra.mxu0 %v955
    %v1240 = vpop.f32.mrf.mxu0
    %v1241 = vadd.f32 %v1169, %v1240
    %v1242 = vpop.f32.mrf.mxu0
    %v1243 = vadd.f32 %v1173, %v1242
    %1244 = vmatprep.mubr.f32.mxu0 %v960
    %1245 = vmatmul.mubr.f32.gmra.mxu0 %v959
    %v1246 = vpop.f32.mrf.mxu0
    %v1247 = vadd.f32 %v1169, %v1246
    %v1248 = vpop.f32.mrf.mxu0
    %v1249 = vadd.f32 %v1173, %v1248
    %1250 = vdwg.mxu0
    %1251 = vmatprep.subr.mxu0 0.0
    %1252 = vmatpush1.xpose.msra.mxu0 0.0
    %1253 = vmatprep.subr.mxu0 0.0
    %1254 = vmatpush1.xpose.msra.mxu0 0.0
    %1255 = vmatprep.subr.mxu0 0.0
    %1256 = vmatpush1.xpose.msra.mxu0 0.0
    %1257 = vmatprep.subr.mxu0 0.0
    %1258 = vmatpush1.xpose.msra.mxu0 0.0
    %1259 = vmatprep.subr.mxu0 0.0
    %1260 = vmatpush1.xpose.msra.mxu0 0.0
    %1261 = vmatprep.subr.mxu0 0.0
    %1262 = vmatpush1.xpose.msra.mxu0 0.0
    %1263 = vmatprep.subr.mxu0 0.0
    %1264 = vmatpush1.xpose.msra.mxu0 0.0
    %1265 = vmatprep.subr.mxu0 0.0
    %1266 = vmatpush1.xpose.msra.mxu0 0.0
    %1267 = vmatprep.subr.mxu0 0.0
    %1268 = vmatpush1.xpose.msra.mxu0 0.0
    %1269 = vmatprep.subr.mxu0 0.0
    %1270 = vmatpush1.xpose.msra.mxu0 0.0
    %1271 = vmatprep.subr.mxu0 0.0
    %1272 = vmatpush1.xpose.msra.mxu0 0.0
    %1273 = vmatprep.subr.mxu0 0.0
    %1274 = vmatpush1.xpose.msra.mxu0 0.0
    %1275 = vmatprep.subr.mxu0 0.0
    %1276 = vmatpush1.xpose.msra.mxu0 0.0
    %1277 = vmatprep.subr.mxu0 0.0
    %1278 = vmatpush1.xpose.msra.mxu0 0.0
    %1279 = vmatprep.subr.mxu0 0.0
    %1280 = vmatpush1.xpose.msra.mxu0 0.0
    %1281 = vmatprep.subr.mxu0 %v1243
    %1282 = vmatpush1.xpose.msra.mxu0 %v1241
    %1283 = vmatprep.subr.mxu0 0.0
    %1284 = vmatpush2.xpose.msra.mxu0 0.0
    %1285 = vmatprep.subr.mxu0 0.0
    %1286 = vmatpush2.xpose.msra.mxu0 0.0
    %1287 = vmatprep.subr.mxu0 0.0
    %1288 = vmatpush2.xpose.msra.mxu0 0.0
    %1289 = vmatprep.subr.mxu0 0.0
    %1290 = vmatpush2.xpose.msra.mxu0 0.0
    %1291 = vmatprep.subr.mxu0 0.0
    %1292 = vmatpush2.xpose.msra.mxu0 0.0
    %1293 = vmatprep.subr.mxu0 0.0
    %1294 = vmatpush2.xpose.msra.mxu0 0.0
    %1295 = vmatprep.subr.mxu0 0.0
    %1296 = vmatpush2.xpose.msra.mxu0 0.0
    %1297 = vmatprep.subr.mxu0 0.0
    %1298 = vmatpush2.xpose.msra.mxu0 0.0
    %1299 = vmatprep.subr.mxu0 0.0
    %1300 = vmatpush2.xpose.msra.mxu0 0.0
    %1301 = vmatprep.subr.mxu0 0.0
    %1302 = vmatpush2.xpose.msra.mxu0 0.0
    %1303 = vmatprep.subr.mxu0 0.0
    %1304 = vmatpush2.xpose.msra.mxu0 0.0
    %1305 = vmatprep.subr.mxu0 0.0
    %1306 = vmatpush2.xpose.msra.mxu0 0.0
    %1307 = vmatprep.subr.mxu0 0.0
    %1308 = vmatpush2.xpose.msra.mxu0 0.0
    %1309 = vmatprep.subr.mxu0 0.0
    %1310 = vmatpush2.xpose.msra.mxu0 0.0
    %1311 = vmatprep.subr.mxu0 0.0
    %1312 = vmatpush2.xpose.msra.mxu0 0.0
    %1313 = vmatprep.subr.mxu0 0.0
    %1314 = vmatpush2.xpose.msra.mxu0 0.0
    %1315 = vmatprep.mubr.f32.mxu0 %v1243
    %1316 = vmatmul.mubr.f32.gmra.mxu0 %v1241
    %v1317 = vpop.f32.mrf.mxu0
    %v1318 = vadd.f32 0.0, %v1317
    %v1319 = vpop.f32.mrf.mxu0
    %1320 = vmatprep.mubr.f32.mxu0 %v1249
    %1321 = vmatmul.mubr.f32.gmra.mxu0 %v1247
    %v1322 = vpop.f32.mrf.mxu0
    %v1323 = vadd.f32 0.0, %v1322
    %v1324 = vpop.f32.mrf.mxu0
    %1325 = vdwg.mxu0
    %v1326 = vlaneseq
    %v1327 = vshrl.u32 %v1326, 7
    %v1328 = vadd.s32 %v1327, 8
    %v1329 = vlaneseq
    %v1330 = vand.u32 %v1329, 127
    %vm1331 = vcmp.eq.s32.totalorder %v1327, %v1330
    %vm1332 = vcmp.eq.s32.totalorder %v1328, %v1330
    %v1333 = vsel %vm1331, 1.0, 0.0
    %v1334 = vsel %vm1332, 1.0, 0.0
    %v1335 = vmul.f32 %v1318, %v1333
    %v1336 = vmul.f32 %v1323, %v1334
    %vm1337 = vcmask 64512
    %v1338 = vsel %vm1337, %v1335, 0.0
    %vm1339 = vcmask 60416
    %v1340 = vsel %vm1339, %v1336, 0.0
    %v1341 = vadd.f32 %v1338, %v1340
    %v1342 = vrot.slane %v1341, 4
    %v1343 = vadd.f32 %v1341, %v1342
    %v1344 = vrot.slane %v1343, 2
    %v1345 = vadd.f32 %v1343, %v1344
    %v1346 = vrot.slane %v1345, 1
    %v1347 = vadd.f32 %v1345, %v1346
    %1348 = vadd.xlane.f32.xlu0 %v1338
    %v1349 = vpop.xlane.xlu0 %1348
    %1350 = vadd.xlane.f32.xlu0 %v1340
    %v1351 = vpop.xlane.xlu0 %1350
    %v1352 = vmul.f32 %v1241, %v1241
    %v1353 = vmul.f32 %v1243, %v1243
    %v1354 = vmul.f32 %v1247, %v1247
    %v1355 = vmul.f32 %v1249, %v1249
    %v1356 = vadd.f32 %v1352, %v1353
    %1357 = vadd.xlane.f32.xlu0 %v1356
    %v1358 = vpop.xlane.xlu0 %1357
    %vm1359 = vcmask 1043456
    %v1360 = vsel %vm1359, %v1354, 0.0
    %v1361 = vsel %vm1359, %v1355, 0.0
    %v1362 = vadd.f32 %v1360, %v1361
    %1363 = vadd.xlane.f32.xlu0 %v1362
    %v1364 = vpop.xlane.xlu0 %1363
    %vm1365 = vcmp.lt.s32.totalorder %v1327, 8
    %vm1366 = vcmp.lt.s32.totalorder %v1328, 8
    %v1367 = vsel %vm1365, %v1349, %v1358
    %v1368 = vsel %vm1366, %v1351, %v1364
    %v1369 = vadd.f32 %v1367, %v1347
    %v1370 = vadd.f32 %v1368, %v1347
    %v1371 = vmul.f32 %v1318, 2.0
    %v1372 = vmul.f32 %v1323, 2.0
    %v1373 = vsub.f32 %v1369, %v1371
    %v1374 = vsub.f32 %v1370, %v1372
    %v1375 = vmax.f32 %v1373, 0.0
    %v1376 = vmax.f32 %v1374, 0.0
    %1377 = vset.pattern.permute.xlu0 0
    %1378 = vperm.xlu0 %1377, %v42
    %v1379 = vpop.permute.xlu0 %1378
    %1381 = vset.pattern.permute.xlu0 0
    %1382 = vperm.xlu0 %1381, %v43
    %v1383 = vpop.permute.xlu0 %1382
    %v1385 = vlaneseq
    %v1386 = vshrl.u32 %v1385, 7
    %v1387 = vsub.s32 0, %v1386
    %v1388 = vrot.slane %v44, %v1387
    %vm1389 = vcmp.eq.f32.partialorder %v1379, %v1388
    %vm1390 = vcmp.eq.f32.partialorder %v1383, %v1388
    %1391 = vset.pattern.permute.xlu0 1
    %1392 = vperm.xlu0 %1391, %v42
    %v1393 = vpop.permute.xlu0 %1392
    %1395 = vset.pattern.permute.xlu0 1
    %1396 = vperm.xlu0 %1395, %v43
    %v1397 = vpop.permute.xlu0 %1396
    %v1399 = vlaneseq
    %v1400 = vshrl.u32 %v1399, 7
    %v1401 = vsub.s32 1, %v1400
    %v1402 = vrot.slane %v44, %v1401
    %vm1403 = vcmp.eq.f32.partialorder %v1393, %v1402
    %vm1404 = vcmp.eq.f32.partialorder %v1397, %v1402
    %vm1405 = vmand %vm1389, %vm1403
    %vm1406 = vmand %vm1390, %vm1404
    %v1407 = vsel %vm1405, 1.0, 0.0
    %v1408 = vsel %vm1406, 1.0, 0.0
    %vm1409 = vcmp.gt.f32.partialorder %v1407, 0.5
    %vm1410 = vcmp.gt.f32.partialorder %v1408, 0.5
    %v1411 = vsel %vm1409, 0.0, %v1375
    %v1412 = vsel %vm1410, 0.0, %v1376
    %v1413 = vrsqrt.pop %v1411
    %v1414 = vmul.f32 %v1411, %v1413
    %vm1415 = vcmp.eq.f32.partialorder %v1411, inf
    %v1416 = vsel %vm1415, %v1411, %v1414
    %vm1417 = vcmp.eq.f32.partialorder %v1411, 0.0
    %v1418 = vand.u32 %v1411, 2147483648
    %v1419 = vsel %vm1417, %v1418, %v1416
    %v1420 = vrsqrt.pop %v1412
    %v1421 = vmul.f32 %v1412, %v1420
    %vm1422 = vcmp.eq.f32.partialorder %v1412, inf
    %v1423 = vsel %vm1422, %v1412, %v1421
    %vm1424 = vcmp.eq.f32.partialorder %v1412, 0.0
    %v1425 = vand.u32 %v1412, 2147483648
    %v1426 = vsel %vm1424, %v1425, %v1423
    %v1427 = vsub.f32 0.0, %v1419
    %v1428 = vsub.f32 0.0, %v1426
    %v1429 = vmul.f32 %v1427, 1.442695
    %v1430 = vpow.pop %v1429
    %v1431 = vmul.f32 %v1428, 1.442695
    %v1432 = vpow.pop %v1431
    %s1434 = vtos %v1087
    %v1435 = vstv %s1434
    %v1437 = vmul.f32 %v1435, %v1407
    %v1438 = vmul.f32 %v1435, %v1408
    %v1439 = vadd.f32 %v1430, %v1437
    %v1440 = vadd.f32 %v1432, %v1438
    %1441 = vst.msk [vmem:[%s8] sm:$0xff] %vm1337, %v1439
    %1442 = vst.msk [vmem:[%s8 + $0x8] sm:$0xf] %vm1339, %v1440
    %vm1445 = vcmask 1046528
    %v1446 = vrot.slane %v1090, 1
    %v1447 = vrot.slane %v1091, 1
    %v1448 = vsel %vm1445, %v1446, %v1447
    %1449 = vrot.lane.b32.xlu0 %v1448, 1
    %v1450 = vpop.permute.xlu0 %1449
    %v1452 = vsub.f32 %v42, %v1450
    %1454 = vrot.lane.b32.xlu0 %v1452, 6
    %v1455 = vpop.permute.xlu0 %1454
    %vm1457 = vcmask 72768
    %1458 = vst.msk [vmem:[%s8] sm:$0xff] %vm1457, %v1455
    %1459 = vrot.lane.b32.xlu0 %v1091, 7
    %v1460 = vpop.permute.xlu0 %1459
    %vm1462 = vcmask 69697
    %1463 = vst.msk [vmem:[%s8 + $0x7] sm:$0x1e] %vm1462, %v1460
    // Predicated region
    $region38: #{meta_learning_forward.1} parent=1 // pred_check
      _
    $region39: #{meta_learning_forward.1} parent=1 // pred_check_branch
      %1465 = sbr.rel (0) target = $region41
    $region40: #{meta_learning_forward.1} parent=1 // pred_region
      _
    $region41: #{meta_learning_forward.1} parent=1 // pred_fallthru
      _
    // Predicated region
    $region42: #{meta_learning_forward.1} parent=1 // pred_check
      _
    $region43: #{meta_learning_forward.1} parent=1 // pred_check_branch
      %1467 = sbr.rel (0) target = $region45
    $region44: #{meta_learning_forward.1} parent=1 // pred_region
      _
    $region45: #{meta_learning_forward.1} parent=1 // pred_fallthru
      _
    %1468 = vsyncpa [#allocation3], 1

</llo_original>
